<compile_context>
chip_gen: v7x
topology: tpu7x:2x2x1
jax: 0.10.0
libtpu: 0.0.40
codegen_flags: <defaults>
</compile_context>

<pallas_src>
import jax
import jax.numpy as jnp
from jax.experimental import pallas as pl
from jax.experimental.pallas import tpu as pltpu


BB = 8                       # images per grid step (keep grid >= 2 on v7x)
M1 = BB * 32                 # conv1 rows per step (32-row padded slab / image)
M2 = BB * 16                 # conv2 rows per step (16-row padded slab / image)
NCLS = 10


# ----------------------------------------------------------------------------
# Fused kernel: conv1 + ReLU + pool1 + conv2 + ReLU + pool2 + flatten + fc1.
# All BB images of the grid step are stacked along the sublane (M) dimension.
# ----------------------------------------------------------------------------
def _cnn_kernel(xp_ref, wb1_ref, b1_ref, s1e_ref, s1o_ref, p1e_ref, p1o_ref,
                wb2_ref, b2_ref, s2e_ref, s2o_ref, p2e_ref, p2o_ref,
                wcat_ref, mask_ref, bfc_ref, out_ref, p1scr_ref):
    f32, bf16 = jnp.float32, jnp.bfloat16

    # ---- conv1 (3x3, pad 1, 1->8) + bias + ReLU ------------------------------
    # Image i occupies rows i*32..i*32+31 of the host-prepadded slab (padded
    # 30x30 image at rows/lanes 0..29, zeros elsewhere).  Each dh tap is one
    # (M1,128)@(128,224) matmul against a banded (dw-fused) weight slab; valid
    # conv rows land at i*32 + h (h=0..27), the 28..31 band is don't-care.
    acc1 = jnp.dot(xp_ref[0:M1, :].astype(bf16), wb1_ref[0],
                   preferred_element_type=f32)
    for dh in (1, 2):
        acc1 = acc1 + jnp.dot(xp_ref[dh:dh + M1, :].astype(bf16), wb1_ref[dh],
                              preferred_element_type=f32)
    a1 = jnp.maximum(acc1 + b1_ref[...], 0.0).astype(bf16)        # (256, 224)

    # ---- maxpool 2x2: lane-parity then row-parity 0/1 selection matmuls ------
    hm1 = jnp.maximum(
        jnp.dot(a1, s1e_ref[...], preferred_element_type=f32),
        jnp.dot(a1, s1o_ref[...], preferred_element_type=f32)).astype(bf16)
    p1 = jnp.maximum(
        jnp.dot(p1e_ref[...], hm1, preferred_element_type=f32),
        jnp.dot(p1o_ref[...], hm1, preferred_element_type=f32))    # (128, 128)

    # p1 already carries conv2's zero padding (rows i*16+{0,15} and lanes
    # 0..7 / 120..127 are zero).  Stage it in VMEM so the dh taps can be read
    # at a row offset; zero the 8 tail rows so tap overhang stays finite.
    p1scr_ref[0:M2, :] = p1
    p1scr_ref[M2:, :] = jnp.zeros((p1scr_ref.shape[0] - M2, 128), f32)

    # ---- conv2 (3x3, pad 1, 8->16) + bias + ReLU -----------------------------
    acc2 = jnp.dot(p1scr_ref[0:M2, :].astype(bf16), wb2_ref[0],
                   preferred_element_type=f32)
    for dh in (1, 2):
        acc2 = acc2 + jnp.dot(p1scr_ref[dh:dh + M2, :].astype(bf16),
                              wb2_ref[dh], preferred_element_type=f32)
    a2 = jnp.maximum(acc2 + b2_ref[...], 0.0).astype(bf16)         # (128, 224)

    # ---- maxpool 2x2 ----------------------------------------------------------
    hm2 = jnp.maximum(
        jnp.dot(a2, s2e_ref[...], preferred_element_type=f32),
        jnp.dot(a2, s2o_ref[...], preferred_element_type=f32)).astype(bf16)
    p2 = jnp.maximum(
        jnp.dot(p2e_ref[...], hm2, preferred_element_type=f32),
        jnp.dot(p2o_ref[...], hm2, preferred_element_type=f32))     # (64, 112)

    # ---- fc1: one batched matmul + diagonal mask + exact f32 reductions ------
    # q[i*8+r, ho*10+n] = p2[i*8+r, :] . Wfc[ho, :, n]; keep only r == ho,
    # then sum over the 8 rows of each image and over the 7 ho lane-blocks.
    q = jnp.dot(p2.astype(bf16), wcat_ref[...],
                preferred_element_type=f32) * mask_ref[...]         # (64, 70)
    qs = q.reshape(BB, 8, 7 * NCLS).sum(axis=1)                     # (8, 70)
    logits = bfc_ref[...]                                           # (1, 10)
    for ho in range(7):
        logits = logits + qs[:, ho * NCLS:(ho + 1) * NCLS]
    out_ref[...] = logits                                           # one store


# ----------------------------------------------------------------------------
# Forward pass wrapper: host-side input prepad + constant building, then one
# fused pallas_call over batch blocks of BB images.
# ----------------------------------------------------------------------------
@jax.jit
def cnn_forward(x_nchw, params):
    w1, b1, w2, b2, wf, bfc = params
    f32, bf16 = jnp.float32, jnp.bfloat16
    B = x_nchw.shape[0]
    assert x_nchw.shape[1:] == (1, 28, 28), "fc1 requires 1x28x28 inputs"
    Bp = ((B + BB - 1) // BB) * BB
    nb = Bp // BB

    # ---- input: exact per-image padded slab layout, built host-side ---------
    x = x_nchw.reshape(B, 28, 28).astype(f32)
    xp = jnp.pad(x, ((0, Bp - B), (1, 3), (1, 99)))      # (Bp, 32, 128)
    xp = xp.reshape(nb, BB * 32, 128)
    xp = jnp.pad(xp, ((0, 0), (0, 8), (0, 0)))           # (nb, BB*32+8, 128)

    # ---- conv1: banded (dw-fused) weights, one (128, 224) slab per dh --------
    ind1 = (jnp.arange(128)[None, :, None] ==
            (jnp.arange(28)[None, None, :] + jnp.arange(3)[:, None, None])
            ).astype(f32)                                 # (dw, wp, w)
    w1t = w1.astype(f32)[:, 0].transpose(1, 2, 0)         # (dh, dw, co)
    wb1 = jnp.einsum('dpw,hdc->hpwc', ind1, w1t).reshape(3, 128, 224).astype(bf16)
    b1r = jnp.tile(b1.astype(f32), 28).reshape(1, 224)

    # ---- conv2: banded weights over the (wp*8 + ci) padded lane layout -------
    ind2 = (jnp.arange(16)[None, :, None] ==
            (jnp.arange(14)[None, None, :] + jnp.arange(3)[:, None, None])
            ).astype(f32)                                 # (dw, wp, w)
    w2t = w2.astype(f32).transpose(2, 3, 1, 0)            # (dh, dw, ci, co)
    wb2 = jnp.einsum('dpw,hdic->hpiwc', ind2, w2t).reshape(3, 128, 224).astype(bf16)
    b2r = jnp.tile(b2.astype(f32), 14).reshape(1, 224)

    # ---- pool1 selectors (lane-parity into padded conv2 layout, row-parity) --
    wo = jnp.arange(14)
    s1e = jnp.kron(jnp.zeros((28, 16), f32).at[2 * wo, wo + 1].set(1.0),
                   jnp.eye(8, dtype=f32)).astype(bf16)              # (224, 128)
    s1o = jnp.kron(jnp.zeros((28, 16), f32).at[2 * wo + 1, wo + 1].set(1.0),
                   jnp.eye(8, dtype=f32)).astype(bf16)
    eyeB = jnp.eye(BB, dtype=f32)
    p1e = jnp.kron(eyeB, jnp.zeros((16, 32), f32)
                   .at[wo + 1, 2 * wo].set(1.0)).astype(bf16)       # (128, 256)
    p1o = jnp.kron(eyeB, jnp.zeros((16, 32), f32)
                   .at[wo + 1, 2 * wo + 1].set(1.0)).astype(bf16)

    # ---- pool2 selectors ------------------------------------------------------
    wo2 = jnp.arange(7)
    s2e = jnp.kron(jnp.zeros((14, 7), f32).at[2 * wo2, wo2].set(1.0),
                   jnp.eye(16, dtype=f32)).astype(bf16)             # (224, 112)
    s2o = jnp.kron(jnp.zeros((14, 7), f32).at[2 * wo2 + 1, wo2].set(1.0),
                   jnp.eye(16, dtype=f32)).astype(bf16)
    p2e = jnp.kron(eyeB, jnp.zeros((8, 16), f32)
                   .at[wo2, 2 * wo2].set(1.0)).astype(bf16)         # (64, 128)
    p2o = jnp.kron(eyeB, jnp.zeros((8, 16), f32)
                   .at[wo2, 2 * wo2 + 1].set(1.0)).astype(bf16)

    # ---- fc1: per-ho weights lane-concatenated + diagonal (row==ho) mask ------
    # PyTorch flatten order of (16,7,7) is c*49 + ho*7 + wo; p2 lanes are
    # wo*16 + co, rows within an image are ho.
    wcat = (wf.astype(f32).reshape(NCLS, 16, 7, 7)        # (n, c, ho, wo)
              .transpose(3, 1, 2, 0)                      # (wo, c, ho, n)
              .reshape(112, 7 * NCLS)).astype(bf16)
    mask = jnp.tile((jnp.arange(8)[:, None] ==
                     (jnp.arange(7 * NCLS) // NCLS)[None, :]).astype(f32),
                    (BB, 1))                               # (64, 70)
    bfr = bfc.astype(f32).reshape(1, NCLS)

    def cst(shape):
        return pl.BlockSpec(shape, lambda i: (0,) * len(shape))

    out = pl.pallas_call(
        _cnn_kernel,
        out_shape=jax.ShapeDtypeStruct((Bp, NCLS), f32),
        grid=(nb,),
        in_specs=[
            pl.BlockSpec((None, BB * 32 + 8, 128), lambda i: (i, 0, 0)),  # xp
            cst((3, 128, 224)), cst((1, 224)),                # wb1, b1r
            cst((224, 128)), cst((224, 128)),                 # s1e, s1o
            cst((BB * 16, BB * 32)), cst((BB * 16, BB * 32)), # p1e, p1o
            cst((3, 128, 224)), cst((1, 224)),                # wb2, b2r
            cst((224, 112)), cst((224, 112)),                 # s2e, s2o
            cst((BB * 8, BB * 16)), cst((BB * 8, BB * 16)),   # p2e, p2o
            cst((112, 7 * NCLS)), cst((BB * 8, 7 * NCLS)),    # wcat, mask
            cst((1, NCLS)),                                   # fc bias
        ],
        out_specs=pl.BlockSpec((BB, NCLS), lambda i: (i, 0)),
        scratch_shapes=[pltpu.VMEM((BB * 16 + 8, 128), f32)],  # conv2 pad slab
        compiler_params=pltpu.CompilerParams(
            dimension_semantics=("parallel",)),
    )(xp, wb1, b1r, s1e, s1o, p1e, p1o, wb2, b2r, s2e, s2o, p2e, p2o,
      wcat, mask, bfr)
    return out[:B]


# ----------------------------------------------------------------------------
# Pure-JAX reference (mirrors the PyTorch module exactly).
# ----------------------------------------------------------------------------
def ref_forward(x, params):
    w1, b1, w2, b2, wf, bfc = params
    dn = ("NCHW", "OIHW", "NCHW")

    def pool(y):
        b, c, h, w = y.shape
        return y.reshape(b, c, h // 2, 2, w // 2, 2).max(axis=(3, 5))

    y = jax.lax.conv_general_dilated(x, w1, (1, 1), ((1, 1), (1, 1)),
                                     dimension_numbers=dn)
    y = jnp.maximum(y + b1.reshape(1, -1, 1, 1), 0.0)
    y = pool(y)
    y = jax.lax.conv_general_dilated(y, w2, (1, 1), ((1, 1), (1, 1)),
                                     dimension_numbers=dn)
    y = jnp.maximum(y + b2.reshape(1, -1, 1, 1), 0.0)
    y = pool(y)
    y = y.reshape(y.shape[0], -1)
    return y @ wf.T + bfc


if __name__ == "__main__":
    key = jax.random.PRNGKey(0)
    k1, k2, k3, k4, k5, k6, kx = jax.random.split(key, 7)

    def q(a):  # snap to the bf16 grid so bf16 storage / MXU passes are lossless
        return a.astype(jnp.bfloat16).astype(jnp.float32)

    # deterministic parameters, PyTorch shapes
    w1 = q(0.1 * jax.random.normal(k1, (8, 1, 3, 3), jnp.float32))      # conv1.weight
    b1 = q(0.1 * jax.random.normal(k2, (8,), jnp.float32))              # conv1.bias
    w2 = q(0.1 * jax.random.normal(k3, (16, 8, 3, 3), jnp.float32))     # conv2.weight
    b2 = q(0.1 * jax.random.normal(k4, (16,), jnp.float32))             # conv2.bias
    wf = q(0.1 * jax.random.normal(k5, (10, 16 * 7 * 7), jnp.float32))  # fc1.weight
    bfc = q(0.1 * jax.random.normal(k6, (10,), jnp.float32))            # fc1.bias
    params = (w1, b1, w2, b2, wf, bfc)

    # batch=16 (two grid steps of 8 images), channels=1, 28x28 (required by fc1)
    x = q(jax.random.normal(kx, (16, 1, 28, 28), jnp.float32))

    out = jax.block_until_ready(cnn_forward(x, params))
    ref = jax.block_until_ready(ref_forward(x, params))

    assert out.shape == (16, 10) and out.dtype == jnp.float32
    assert jnp.allclose(out, ref, rtol=2e-2, atol=2e-2), (
        float(jnp.max(jnp.abs(out - ref))))
    print("KERNEL_OK")
</pallas_src>

<mosaic_0001>
module attributes {stable_mosaic.version = 11 : i64} {
  func.func @_cnn_kernel(%arg0: i32, %arg1: memref<1x264x128xf32, #tpu.memory_space<vmem>>, %arg2: memref<3x128x224xbf16, #tpu.memory_space<vmem>>, %arg3: memref<1x224xf32, #tpu.memory_space<vmem>>, %arg4: memref<224x128xbf16, #tpu.memory_space<vmem>>, %arg5: memref<224x128xbf16, #tpu.memory_space<vmem>>, %arg6: memref<128x256xbf16, #tpu.memory_space<vmem>>, %arg7: memref<128x256xbf16, #tpu.memory_space<vmem>>, %arg8: memref<3x128x224xbf16, #tpu.memory_space<vmem>>, %arg9: memref<1x224xf32, #tpu.memory_space<vmem>>, %arg10: memref<224x112xbf16, #tpu.memory_space<vmem>>, %arg11: memref<224x112xbf16, #tpu.memory_space<vmem>>, %arg12: memref<64x128xbf16, #tpu.memory_space<vmem>>, %arg13: memref<64x128xbf16, #tpu.memory_space<vmem>>, %arg14: memref<112x70xbf16, #tpu.memory_space<vmem>>, %arg15: memref<64x70xf32, #tpu.memory_space<vmem>>, %arg16: memref<1x10xf32, #tpu.memory_space<vmem>>, %arg17: memref<8x10xf32, #tpu.memory_space<vmem>>, %arg18: memref<136x128xf32, #tpu.memory_space<vmem>>) attributes {dimension_semantics = [#tpu.dimension_semantics<parallel>], iteration_bounds = array<i64: 2>, scalar_prefetch = 0 : i64, scratch_operands = 1 : i64, tpu.core_type = #tpu.core_type<tc>, window_params = [{transform_indices = @transform_0, window_bounds = array<i64: 1, 264, 128>}, {pipeline_mode = #tpu.pipeline_mode<synchronous>, transform_indices = @transform_1, window_bounds = array<i64: 3, 128, 224>}, {pipeline_mode = #tpu.pipeline_mode<synchronous>, transform_indices = @transform_2, window_bounds = array<i64: 1, 224>}, {pipeline_mode = #tpu.pipeline_mode<synchronous>, transform_indices = @transform_3, window_bounds = array<i64: 224, 128>}, {pipeline_mode = #tpu.pipeline_mode<synchronous>, transform_indices = @transform_4, window_bounds = array<i64: 224, 128>}, {pipeline_mode = #tpu.pipeline_mode<synchronous>, transform_indices = @transform_5, window_bounds = array<i64: 128, 256>}, {pipeline_mode = #tpu.pipeline_mode<synchronous>, transform_indices = @transform_6, window_bounds = array<i64: 128, 256>}, {pipeline_mode = #tpu.pipeline_mode<synchronous>, transform_indices = @transform_7, window_bounds = array<i64: 3, 128, 224>}, {pipeline_mode = #tpu.pipeline_mode<synchronous>, transform_indices = @transform_8, window_bounds = array<i64: 1, 224>}, {pipeline_mode = #tpu.pipeline_mode<synchronous>, transform_indices = @transform_9, window_bounds = array<i64: 224, 112>}, {pipeline_mode = #tpu.pipeline_mode<synchronous>, transform_indices = @transform_10, window_bounds = array<i64: 224, 112>}, {pipeline_mode = #tpu.pipeline_mode<synchronous>, transform_indices = @transform_11, window_bounds = array<i64: 64, 128>}, {pipeline_mode = #tpu.pipeline_mode<synchronous>, transform_indices = @transform_12, window_bounds = array<i64: 64, 128>}, {pipeline_mode = #tpu.pipeline_mode<synchronous>, transform_indices = @transform_13, window_bounds = array<i64: 112, 70>}, {pipeline_mode = #tpu.pipeline_mode<synchronous>, transform_indices = @transform_14, window_bounds = array<i64: 64, 70>}, {pipeline_mode = #tpu.pipeline_mode<synchronous>, transform_indices = @transform_15, window_bounds = array<i64: 1, 10>}, {transform_indices = @transform_16, window_bounds = array<i64: 8, 10>}]} {
    %c0 = arith.constant 0 : index
    %c0_0 = arith.constant 0 : index
    %c0_1 = arith.constant 0 : index
    %0 = vector.load %arg1[%c0, %c0_0, %c0_1] : memref<1x264x128xf32, #tpu.memory_space<vmem>>, vector<1x256x128xf32>
    %1 = vector.shape_cast %0 : vector<1x256x128xf32> to vector<256x128xf32>
    %2 = arith.truncf %1 : vector<256x128xf32> to vector<256x128xbf16>
    %c0_2 = arith.constant 0 : index
    %c0_3 = arith.constant 0 : index
    %c0_4 = arith.constant 0 : index
    %3 = vector.load %arg2[%c0_2, %c0_3, %c0_4] : memref<3x128x224xbf16, #tpu.memory_space<vmem>>, vector<1x128x224xbf16>
    %4 = vector.shape_cast %3 : vector<1x128x224xbf16> to vector<128x224xbf16>
    %cst = arith.constant dense<0.000000e+00> : vector<256x224xf32>
    %5 = tpu.matmul %2, %4, %cst {dimension_numbers = #tpu.dot_dimension_numbers<[1], [0], [0], [1], [0, 0, 1, 1], [], []>} : vector<256x128xbf16>, vector<128x224xbf16>, vector<256x224xf32> -> vector<256x224xf32>
    %c0_5 = arith.constant 0 : index
    %c1 = arith.constant 1 : index
    %c0_6 = arith.constant 0 : index
    %6 = vector.load %arg1[%c0_5, %c1, %c0_6] : memref<1x264x128xf32, #tpu.memory_space<vmem>>, vector<1x256x128xf32>
    %7 = vector.shape_cast %6 : vector<1x256x128xf32> to vector<256x128xf32>
    %8 = arith.truncf %7 : vector<256x128xf32> to vector<256x128xbf16>
    %c1_7 = arith.constant 1 : index
    %c0_8 = arith.constant 0 : index
    %c0_9 = arith.constant 0 : index
    %9 = vector.load %arg2[%c1_7, %c0_8, %c0_9] : memref<3x128x224xbf16, #tpu.memory_space<vmem>>, vector<1x128x224xbf16>
    %10 = vector.shape_cast %9 : vector<1x128x224xbf16> to vector<128x224xbf16>
    %cst_10 = arith.constant dense<0.000000e+00> : vector<256x224xf32>
    %11 = tpu.matmul %8, %10, %cst_10 {dimension_numbers = #tpu.dot_dimension_numbers<[1], [0], [0], [1], [0, 0, 1, 1], [], []>} : vector<256x128xbf16>, vector<128x224xbf16>, vector<256x224xf32> -> vector<256x224xf32>
    %12 = arith.addf %5, %11 : vector<256x224xf32>
    %c0_11 = arith.constant 0 : index
    %c2 = arith.constant 2 : index
    %c0_12 = arith.constant 0 : index
    %13 = vector.load %arg1[%c0_11, %c2, %c0_12] : memref<1x264x128xf32, #tpu.memory_space<vmem>>, vector<1x256x128xf32>
    %14 = vector.shape_cast %13 : vector<1x256x128xf32> to vector<256x128xf32>
    %15 = arith.truncf %14 : vector<256x128xf32> to vector<256x128xbf16>
    %c2_13 = arith.constant 2 : index
    %c0_14 = arith.constant 0 : index
    %c0_15 = arith.constant 0 : index
    %16 = vector.load %arg2[%c2_13, %c0_14, %c0_15] : memref<3x128x224xbf16, #tpu.memory_space<vmem>>, vector<1x128x224xbf16>
    %17 = vector.shape_cast %16 : vector<1x128x224xbf16> to vector<128x224xbf16>
    %cst_16 = arith.constant dense<0.000000e+00> : vector<256x224xf32>
    %18 = tpu.matmul %15, %17, %cst_16 {dimension_numbers = #tpu.dot_dimension_numbers<[1], [0], [0], [1], [0, 0, 1, 1], [], []>} : vector<256x128xbf16>, vector<128x224xbf16>, vector<256x224xf32> -> vector<256x224xf32>
    %19 = arith.addf %12, %18 : vector<256x224xf32>
    %c0_17 = arith.constant 0 : index
    %c0_18 = arith.constant 0 : index
    %20 = vector.load %arg3[%c0_17, %c0_18] : memref<1x224xf32, #tpu.memory_space<vmem>>, vector<1x224xf32>
    %21 = vector.broadcast %20 : vector<1x224xf32> to vector<256x224xf32>
    %22 = arith.addf %19, %21 : vector<256x224xf32>
    %cst_19 = arith.constant 0.000000e+00 : f32
    %23 = vector.broadcast %cst_19 : f32 to vector<256x224xf32>
    %24 = arith.maximumf %22, %23 : vector<256x224xf32>
    %25 = arith.truncf %24 : vector<256x224xf32> to vector<256x224xbf16>
    %c0_20 = arith.constant 0 : index
    %c0_21 = arith.constant 0 : index
    %26 = vector.load %arg4[%c0_20, %c0_21] : memref<224x128xbf16, #tpu.memory_space<vmem>>, vector<224x128xbf16>
    %cst_22 = arith.constant dense<0.000000e+00> : vector<256x128xf32>
    %27 = tpu.matmul %25, %26, %cst_22 {dimension_numbers = #tpu.dot_dimension_numbers<[1], [0], [0], [1], [0, 0, 1, 1], [], []>} : vector<256x224xbf16>, vector<224x128xbf16>, vector<256x128xf32> -> vector<256x128xf32>
    %c0_23 = arith.constant 0 : index
    %c0_24 = arith.constant 0 : index
    %28 = vector.load %arg5[%c0_23, %c0_24] : memref<224x128xbf16, #tpu.memory_space<vmem>>, vector<224x128xbf16>
    %cst_25 = arith.constant dense<0.000000e+00> : vector<256x128xf32>
    %29 = tpu.matmul %25, %28, %cst_25 {dimension_numbers = #tpu.dot_dimension_numbers<[1], [0], [0], [1], [0, 0, 1, 1], [], []>} : vector<256x224xbf16>, vector<224x128xbf16>, vector<256x128xf32> -> vector<256x128xf32>
    %30 = arith.maximumf %27, %29 : vector<256x128xf32>
    %31 = arith.truncf %30 : vector<256x128xf32> to vector<256x128xbf16>
    %c0_26 = arith.constant 0 : index
    %c0_27 = arith.constant 0 : index
    %32 = vector.load %arg6[%c0_26, %c0_27] : memref<128x256xbf16, #tpu.memory_space<vmem>>, vector<128x256xbf16>
    %cst_28 = arith.constant dense<0.000000e+00> : vector<128x128xf32>
    %33 = tpu.matmul %32, %31, %cst_28 {dimension_numbers = #tpu.dot_dimension_numbers<[1], [0], [0], [1], [0, 0, 1, 1], [], []>} : vector<128x256xbf16>, vector<256x128xbf16>, vector<128x128xf32> -> vector<128x128xf32>
    %c0_29 = arith.constant 0 : index
    %c0_30 = arith.constant 0 : index
    %34 = vector.load %arg7[%c0_29, %c0_30] : memref<128x256xbf16, #tpu.memory_space<vmem>>, vector<128x256xbf16>
    %cst_31 = arith.constant dense<0.000000e+00> : vector<128x128xf32>
    %35 = tpu.matmul %34, %31, %cst_31 {dimension_numbers = #tpu.dot_dimension_numbers<[1], [0], [0], [1], [0, 0, 1, 1], [], []>} : vector<128x256xbf16>, vector<256x128xbf16>, vector<128x128xf32> -> vector<128x128xf32>
    %36 = arith.maximumf %33, %35 : vector<128x128xf32>
    %c0_32 = arith.constant 0 : index
    %c0_33 = arith.constant 0 : index
    %37 = vector.load %arg18[%c0_32, %c0_33] : memref<136x128xf32, #tpu.memory_space<vmem>>, vector<128x128xf32>
    tpu.vector_store %arg18[%c0_32, %c0_33], %36 {strides = array<i32>} : memref<136x128xf32, #tpu.memory_space<vmem>>, vector<128x128xf32>,
    %cst_34 = arith.constant 0.000000e+00 : f32
    %38 = vector.broadcast %cst_34 : f32 to vector<8x128xf32>
    %c128 = arith.constant 128 : index
    %c0_35 = arith.constant 0 : index
    %39 = vector.load %arg18[%c128, %c0_35] : memref<136x128xf32, #tpu.memory_space<vmem>>, vector<8x128xf32>
    tpu.vector_store %arg18[%c128, %c0_35], %38 {strides = array<i32>} : memref<136x128xf32, #tpu.memory_space<vmem>>, vector<8x128xf32>,
    %c0_36 = arith.constant 0 : index
    %c0_37 = arith.constant 0 : index
    %40 = vector.load %arg18[%c0_36, %c0_37] : memref<136x128xf32, #tpu.memory_space<vmem>>, vector<128x128xf32>
    %41 = arith.truncf %40 : vector<128x128xf32> to vector<128x128xbf16>
    %c0_38 = arith.constant 0 : index
    %c0_39 = arith.constant 0 : index
    %c0_40 = arith.constant 0 : index
    %42 = vector.load %arg8[%c0_38, %c0_39, %c0_40] : memref<3x128x224xbf16, #tpu.memory_space<vmem>>, vector<1x128x224xbf16>
    %43 = vector.shape_cast %42 : vector<1x128x224xbf16> to vector<128x224xbf16>
    %cst_41 = arith.constant dense<0.000000e+00> : vector<128x224xf32>
    %44 = tpu.matmul %41, %43, %cst_41 {dimension_numbers = #tpu.dot_dimension_numbers<[1], [0], [0], [1], [0, 0, 1, 1], [], []>} : vector<128x128xbf16>, vector<128x224xbf16>, vector<128x224xf32> -> vector<128x224xf32>
    %c1_42 = arith.constant 1 : index
    %c0_43 = arith.constant 0 : index
    %45 = vector.load %arg18[%c1_42, %c0_43] : memref<136x128xf32, #tpu.memory_space<vmem>>, vector<128x128xf32>
    %46 = arith.truncf %45 : vector<128x128xf32> to vector<128x128xbf16>
    %c1_44 = arith.constant 1 : index
    %c0_45 = arith.constant 0 : index
    %c0_46 = arith.constant 0 : index
    %47 = vector.load %arg8[%c1_44, %c0_45, %c0_46] : memref<3x128x224xbf16, #tpu.memory_space<vmem>>, vector<1x128x224xbf16>
    %48 = vector.shape_cast %47 : vector<1x128x224xbf16> to vector<128x224xbf16>
    %cst_47 = arith.constant dense<0.000000e+00> : vector<128x224xf32>
    %49 = tpu.matmul %46, %48, %cst_47 {dimension_numbers = #tpu.dot_dimension_numbers<[1], [0], [0], [1], [0, 0, 1, 1], [], []>} : vector<128x128xbf16>, vector<128x224xbf16>, vector<128x224xf32> -> vector<128x224xf32>
    %50 = arith.addf %44, %49 : vector<128x224xf32>
    %c2_48 = arith.constant 2 : index
    %c0_49 = arith.constant 0 : index
    %51 = vector.load %arg18[%c2_48, %c0_49] : memref<136x128xf32, #tpu.memory_space<vmem>>, vector<128x128xf32>
    %52 = arith.truncf %51 : vector<128x128xf32> to vector<128x128xbf16>
    %c2_50 = arith.constant 2 : index
    %c0_51 = arith.constant 0 : index
    %c0_52 = arith.constant 0 : index
    %53 = vector.load %arg8[%c2_50, %c0_51, %c0_52] : memref<3x128x224xbf16, #tpu.memory_space<vmem>>, vector<1x128x224xbf16>
    %54 = vector.shape_cast %53 : vector<1x128x224xbf16> to vector<128x224xbf16>
    %cst_53 = arith.constant dense<0.000000e+00> : vector<128x224xf32>
    %55 = tpu.matmul %52, %54, %cst_53 {dimension_numbers = #tpu.dot_dimension_numbers<[1], [0], [0], [1], [0, 0, 1, 1], [], []>} : vector<128x128xbf16>, vector<128x224xbf16>, vector<128x224xf32> -> vector<128x224xf32>
    %56 = arith.addf %50, %55 : vector<128x224xf32>
    %c0_54 = arith.constant 0 : index
    %c0_55 = arith.constant 0 : index
    %57 = vector.load %arg9[%c0_54, %c0_55] : memref<1x224xf32, #tpu.memory_space<vmem>>, vector<1x224xf32>
    %58 = vector.broadcast %57 : vector<1x224xf32> to vector<128x224xf32>
    %59 = arith.addf %56, %58 : vector<128x224xf32>
    %cst_56 = arith.constant 0.000000e+00 : f32
    %60 = vector.broadcast %cst_56 : f32 to vector<128x224xf32>
    %61 = arith.maximumf %59, %60 : vector<128x224xf32>
    %62 = arith.truncf %61 : vector<128x224xf32> to vector<128x224xbf16>
    %c0_57 = arith.constant 0 : index
    %c0_58 = arith.constant 0 : index
    %63 = vector.load %arg10[%c0_57, %c0_58] : memref<224x112xbf16, #tpu.memory_space<vmem>>, vector<224x112xbf16>
    %cst_59 = arith.constant dense<0.000000e+00> : vector<128x112xf32>
    %64 = tpu.matmul %62, %63, %cst_59 {dimension_numbers = #tpu.dot_dimension_numbers<[1], [0], [0], [1], [0, 0, 1, 1], [], []>} : vector<128x224xbf16>, vector<224x112xbf16>, vector<128x112xf32> -> vector<128x112xf32>
    %c0_60 = arith.constant 0 : index
    %c0_61 = arith.constant 0 : index
    %65 = vector.load %arg11[%c0_60, %c0_61] : memref<224x112xbf16, #tpu.memory_space<vmem>>, vector<224x112xbf16>
    %cst_62 = arith.constant dense<0.000000e+00> : vector<128x112xf32>
    %66 = tpu.matmul %62, %65, %cst_62 {dimension_numbers = #tpu.dot_dimension_numbers<[1], [0], [0], [1], [0, 0, 1, 1], [], []>} : vector<128x224xbf16>, vector<224x112xbf16>, vector<128x112xf32> -> vector<128x112xf32>
    %67 = arith.maximumf %64, %66 : vector<128x112xf32>
    %68 = arith.truncf %67 : vector<128x112xf32> to vector<128x112xbf16>
    %c0_63 = arith.constant 0 : index
    %c0_64 = arith.constant 0 : index
    %69 = vector.load %arg12[%c0_63, %c0_64] : memref<64x128xbf16, #tpu.memory_space<vmem>>, vector<64x128xbf16>
    %cst_65 = arith.constant dense<0.000000e+00> : vector<64x112xf32>
    %70 = tpu.matmul %69, %68, %cst_65 {dimension_numbers = #tpu.dot_dimension_numbers<[1], [0], [0], [1], [0, 0, 1, 1], [], []>} : vector<64x128xbf16>, vector<128x112xbf16>, vector<64x112xf32> -> vector<64x112xf32>
    %c0_66 = arith.constant 0 : index
    %c0_67 = arith.constant 0 : index
    %71 = vector.load %arg13[%c0_66, %c0_67] : memref<64x128xbf16, #tpu.memory_space<vmem>>, vector<64x128xbf16>
    %cst_68 = arith.constant dense<0.000000e+00> : vector<64x112xf32>
    %72 = tpu.matmul %71, %68, %cst_68 {dimension_numbers = #tpu.dot_dimension_numbers<[1], [0], [0], [1], [0, 0, 1, 1], [], []>} : vector<64x128xbf16>, vector<128x112xbf16>, vector<64x112xf32> -> vector<64x112xf32>
    %73 = arith.maximumf %70, %72 : vector<64x112xf32>
    %74 = arith.truncf %73 : vector<64x112xf32> to vector<64x112xbf16>
    %c0_69 = arith.constant 0 : index
    %c0_70 = arith.constant 0 : index
    %75 = vector.load %arg14[%c0_69, %c0_70] : memref<112x70xbf16, #tpu.memory_space<vmem>>, vector<112x70xbf16>
    %cst_71 = arith.constant dense<0.000000e+00> : vector<64x70xf32>
    %76 = tpu.matmul %74, %75, %cst_71 {dimension_numbers = #tpu.dot_dimension_numbers<[1], [0], [0], [1], [0, 0, 1, 1], [], []>} : vector<64x112xbf16>, vector<112x70xbf16>, vector<64x70xf32> -> vector<64x70xf32>
    %c0_72 = arith.constant 0 : index
    %c0_73 = arith.constant 0 : index
    %77 = vector.load %arg15[%c0_72, %c0_73] : memref<64x70xf32, #tpu.memory_space<vmem>>, vector<64x70xf32>
    %78 = arith.mulf %76, %77 : vector<64x70xf32>
    %79 = vector.shape_cast %78 : vector<64x70xf32> to vector<8x8x70xf32>
    %cst_74 = arith.constant dense<0.000000e+00> : vector<8x70xf32>
    %80 = vector.multi_reduction <add>, %79, %cst_74 [1] : vector<8x8x70xf32> to vector<8x70xf32>
    %c0_75 = arith.constant 0 : index
    %c0_76 = arith.constant 0 : index
    %81 = vector.load %arg16[%c0_75, %c0_76] : memref<1x10xf32, #tpu.memory_space<vmem>>, vector<1x10xf32>
    %82 = vector.extract_strided_slice %80 {offsets = [0, 0], sizes = [8, 10], strides = [1, 1]} : vector<8x70xf32> to vector<8x10xf32>
    %83 = vector.broadcast %81 : vector<1x10xf32> to vector<8x10xf32>
    %84 = arith.addf %83, %82 : vector<8x10xf32>
    %85 = vector.extract_strided_slice %80 {offsets = [0, 10], sizes = [8, 10], strides = [1, 1]} : vector<8x70xf32> to vector<8x10xf32>
    %86 = arith.addf %84, %85 : vector<8x10xf32>
    %87 = vector.extract_strided_slice %80 {offsets = [0, 20], sizes = [8, 10], strides = [1, 1]} : vector<8x70xf32> to vector<8x10xf32>
    %88 = arith.addf %86, %87 : vector<8x10xf32>
    %89 = vector.extract_strided_slice %80 {offsets = [0, 30], sizes = [8, 10], strides = [1, 1]} : vector<8x70xf32> to vector<8x10xf32>
    %90 = arith.addf %88, %89 : vector<8x10xf32>
    %91 = vector.extract_strided_slice %80 {offsets = [0, 40], sizes = [8, 10], strides = [1, 1]} : vector<8x70xf32> to vector<8x10xf32>
    %92 = arith.addf %90, %91 : vector<8x10xf32>
    %93 = vector.extract_strided_slice %80 {offsets = [0, 50], sizes = [8, 10], strides = [1, 1]} : vector<8x70xf32> to vector<8x10xf32>
    %94 = arith.addf %92, %93 : vector<8x10xf32>
    %95 = vector.extract_strided_slice %80 {offsets = [0, 60], sizes = [8, 10], strides = [1, 1]} : vector<8x70xf32> to vector<8x10xf32>
    %96 = arith.addf %94, %95 : vector<8x10xf32>
    %c0_77 = arith.constant 0 : index
    %c0_78 = arith.constant 0 : index
    %97 = vector.load %arg17[%c0_77, %c0_78] : memref<8x10xf32, #tpu.memory_space<vmem>>, vector<8x10xf32>
    tpu.vector_store %arg17[%c0_77, %c0_78], %96 {strides = array<i32>} : memref<8x10xf32, #tpu.memory_space<vmem>>, vector<8x10xf32>,
    return
  }
  func.func @transform_0(%arg0: i32) -> (i32, i32, i32) {
    %c0_i32 = arith.constant 0 : i32
    %c0_i32_0 = arith.constant 0 : i32
    %c0_i32_1 = arith.constant 0 : i32
    return %arg0, %c0_i32, %c0_i32_0 : i32, i32, i32
  }
  func.func @transform_1(%arg0: i32) -> (i32, i32, i32) {
    %c0_i32 = arith.constant 0 : i32
    %c0_i32_0 = arith.constant 0 : i32
    %c0_i32_1 = arith.constant 0 : i32
    %c0_i32_2 = arith.constant 0 : i32
    return %c0_i32, %c0_i32_0, %c0_i32_1 : i32, i32, i32
  }
  func.func @transform_2(%arg0: i32) -> (i32, i32) {
    %c0_i32 = arith.constant 0 : i32
    %c0_i32_0 = arith.constant 0 : i32
    %c0_i32_1 = arith.constant 0 : i32
    return %c0_i32, %c0_i32_0 : i32, i32
  }
  func.func @transform_3(%arg0: i32) -> (i32, i32) {
    %c0_i32 = arith.constant 0 : i32
    %c0_i32_0 = arith.constant 0 : i32
    %c0_i32_1 = arith.constant 0 : i32
    return %c0_i32, %c0_i32_0 : i32, i32
  }
  func.func @transform_4(%arg0: i32) -> (i32, i32) {
    %c0_i32 = arith.constant 0 : i32
    %c0_i32_0 = arith.constant 0 : i32
    %c0_i32_1 = arith.constant 0 : i32
    return %c0_i32, %c0_i32_0 : i32, i32
  }
  func.func @transform_5(%arg0: i32) -> (i32, i32) {
    %c0_i32 = arith.constant 0 : i32
    %c0_i32_0 = arith.constant 0 : i32
    %c0_i32_1 = arith.constant 0 : i32
    return %c0_i32, %c0_i32_0 : i32, i32
  }
  func.func @transform_6(%arg0: i32) -> (i32, i32) {
    %c0_i32 = arith.constant 0 : i32
    %c0_i32_0 = arith.constant 0 : i32
    %c0_i32_1 = arith.constant 0 : i32
    return %c0_i32, %c0_i32_0 : i32, i32
  }
  func.func @transform_7(%arg0: i32) -> (i32, i32, i32) {
    %c0_i32 = arith.constant 0 : i32
    %c0_i32_0 = arith.constant 0 : i32
    %c0_i32_1 = arith.constant 0 : i32
    %c0_i32_2 = arith.constant 0 : i32
    return %c0_i32, %c0_i32_0, %c0_i32_1 : i32, i32, i32
  }
  func.func @transform_8(%arg0: i32) -> (i32, i32) {
    %c0_i32 = arith.constant 0 : i32
    %c0_i32_0 = arith.constant 0 : i32
    %c0_i32_1 = arith.constant 0 : i32
    return %c0_i32, %c0_i32_0 : i32, i32
  }
  func.func @transform_9(%arg0: i32) -> (i32, i32) {
    %c0_i32 = arith.constant 0 : i32
    %c0_i32_0 = arith.constant 0 : i32
    %c0_i32_1 = arith.constant 0 : i32
    return %c0_i32, %c0_i32_0 : i32, i32
  }
  func.func @transform_10(%arg0: i32) -> (i32, i32) {
    %c0_i32 = arith.constant 0 : i32
    %c0_i32_0 = arith.constant 0 : i32
    %c0_i32_1 = arith.constant 0 : i32
    return %c0_i32, %c0_i32_0 : i32, i32
  }
  func.func @transform_11(%arg0: i32) -> (i32, i32) {
    %c0_i32 = arith.constant 0 : i32
    %c0_i32_0 = arith.constant 0 : i32
    %c0_i32_1 = arith.constant 0 : i32
    return %c0_i32, %c0_i32_0 : i32, i32
  }
  func.func @transform_12(%arg0: i32) -> (i32, i32) {
    %c0_i32 = arith.constant 0 : i32
    %c0_i32_0 = arith.constant 0 : i32
    %c0_i32_1 = arith.constant 0 : i32
    return %c0_i32, %c0_i32_0 : i32, i32
  }
  func.func @transform_13(%arg0: i32) -> (i32, i32) {
    %c0_i32 = arith.constant 0 : i32
    %c0_i32_0 = arith.constant 0 : i32
    %c0_i32_1 = arith.constant 0 : i32
    return %c0_i32, %c0_i32_0 : i32, i32
  }
  func.func @transform_14(%arg0: i32) -> (i32, i32) {
    %c0_i32 = arith.constant 0 : i32
    %c0_i32_0 = arith.constant 0 : i32
    %c0_i32_1 = arith.constant 0 : i32
    return %c0_i32, %c0_i32_0 : i32, i32
  }
  func.func @transform_15(%arg0: i32) -> (i32, i32) {
    %c0_i32 = arith.constant 0 : i32
    %c0_i32_0 = arith.constant 0 : i32
    %c0_i32_1 = arith.constant 0 : i32
    return %c0_i32, %c0_i32_0 : i32, i32
  }
  func.func @transform_16(%arg0: i32) -> (i32, i32) {
    %c0_i32 = arith.constant 0 : i32
    %c0_i32_0 = arith.constant 0 : i32
    return %arg0, %c0_i32 : i32, i32
  }
}

</mosaic_0001>

<llo_original>
// kernel: tile.18
$region0: #{tile.18}
  #allocation0 [shape = 's32[1]{0}', space=sflag, size = 0x4, scoped, tag = 'scoped memory for tile.18']
  %s0 = inlined_call_operand.vmem [shape: f32[8], index: 0, kind: input, shape index: {}]
  %s1 = inlined_call_operand.vmem [shape: f32[28,8], index: 1, kind: output, shape index: {}]
  // Predicated region
  $region2: #{tile.18} parent=0 // pred_check
    _
  $region3: #{tile.18} parent=0 // pred_check_branch
    %3 = sbr.rel (0) target = $region5
  $region4: #{tile.18} parent=0 // pred_region
    _
  $region5: #{tile.18} parent=0 // pred_fallthru
    _
  %v4 = vld [vmem:[%s0] ss:$0 sm:$0xff]
  %5 = vst [vmem:[%s1] sm:$0xff] %v4
  %s6 = scalar_lea.vmem %s1, 8
  %7 = vst [vmem:[%s6] sm:$0xff] %v4
  %s8 = scalar_lea.vmem %s1, 16
  %9 = vst [vmem:[%s8] sm:$0xff] %v4
  %s10 = scalar_lea.vmem %s1, 24
  %11 = vst [vmem:[%s10] sm:$0xff] %v4

// kernel: tile.19
$region0: #{tile.19}
  %s0 = inlined_call_operand.vmem [shape: f32[28,8], index: 0, kind: input, shape index: {}]
  %s1 = inlined_call_operand.vmem [shape: f32[1,224], index: 1, kind: output, shape index: {}]
  $region1: #{tile.19} parent=0
    #allocation0 [shape = 'u8[8192]{0}', space=vmem, size = 0x2000, scoped, tag = 'scoped mem for output reshape']
    %s2 = smov 3
    %v3 = vld [vmem:[%s0] ss:$16 sm:%s2]
    %vm4 = vcmask 64512
    %5 = vst.msk [vmem:[#allocation0] ss:$8 sm:$0x3] %vm4, %v3
    %s6 = scalar_lea.vmem %s0, 15
    %v7 = vld [vmem:[%s6] sm:$0x1]
    %8 = vrot.lane.b32.xlu0 %v7, 120
    %v9 = vpop.permute.xlu0 %8
    %vm10 = vcmask 1048512
    %11 = vst.msk [vmem:[#allocation0] sm:$0x1] %vm10, %v9
    %s12 = scalar_lea.vmem %s0, 14
    %v13 = vld [vmem:[%s12] sm:$0x1]
    %14 = vrot.lane.b32.xlu0 %v13, 112
    %v15 = vpop.permute.xlu0 %14
    %vm16 = vcmask 982912
    %17 = vst.msk [vmem:[#allocation0] sm:$0x1] %vm16, %v15
    %s18 = scalar_lea.vmem %s0, 13
    %v19 = vld [vmem:[%s18] sm:$0x1]
    %20 = vrot.lane.b32.xlu0 %v19, 104
    %v21 = vpop.permute.xlu0 %20
    %vm22 = vcmask 917312
    %23 = vst.msk [vmem:[#allocation0] sm:$0x1] %vm22, %v21
    %s24 = scalar_lea.vmem %s0, 12
    %v25 = vld [vmem:[%s24] sm:$0x1]
    %26 = vrot.lane.b32.xlu0 %v25, 96
    %v27 = vpop.permute.xlu0 %26
    %vm28 = vcmask 851712
    %29 = vst.msk [vmem:[#allocation0] sm:$0x1] %vm28, %v27
    %s30 = scalar_lea.vmem %s0, 11
    %s31 = smov 3
    %v32 = vld [vmem:[%s30] ss:$16 sm:%s31]
    %33 = vrot.lane.b32.xlu0 %v32, 88
    %v34 = vpop.permute.xlu0 %33
    %vm35 = vcmask 786112
    %36 = vst.msk [vmem:[#allocation0] ss:$8 sm:$0x3] %vm35, %v34
    %s37 = scalar_lea.vmem %s0, 10
    %s38 = smov 3
    %v39 = vld [vmem:[%s37] ss:$16 sm:%s38]
    %40 = vrot.lane.b32.xlu0 %v39, 80
    %v41 = vpop.permute.xlu0 %40
    %vm42 = vcmask 720512
    %43 = vst.msk [vmem:[#allocation0] ss:$8 sm:$0x3] %vm42, %v41
    %s44 = scalar_lea.vmem %s0, 9
    %s45 = smov 3
    %v46 = vld [vmem:[%s44] ss:$16 sm:%s45]
    %47 = vrot.lane.b32.xlu0 %v46, 72
    %v48 = vpop.permute.xlu0 %47
    %vm49 = vcmask 654912
    %50 = vst.msk [vmem:[#allocation0] ss:$8 sm:$0x3] %vm49, %v48
    %s51 = scalar_lea.vmem %s0, 8
    %s52 = smov 3
    %v53 = vld [vmem:[%s51] ss:$16 sm:%s52]
    %54 = vrot.lane.b32.xlu0 %v53, 64
    %v55 = vpop.permute.xlu0 %54
    %vm56 = vcmask 589312
    %57 = vst.msk [vmem:[#allocation0] ss:$8 sm:$0x3] %vm56, %v55
    %s58 = scalar_lea.vmem %s0, 7
    %s59 = smov 3
    %v60 = vld [vmem:[%s58] ss:$16 sm:%s59]
    %61 = vrot.lane.b32.xlu0 %v60, 56
    %v62 = vpop.permute.xlu0 %61
    %vm63 = vcmask 523712
    %64 = vst.msk [vmem:[#allocation0] ss:$8 sm:$0x3] %vm63, %v62
    %s65 = scalar_lea.vmem %s0, 6
    %s66 = smov 3
    %v67 = vld [vmem:[%s65] ss:$16 sm:%s66]
    %68 = vrot.lane.b32.xlu0 %v67, 48
    %v69 = vpop.permute.xlu0 %68
    %vm70 = vcmask 458112
    %71 = vst.msk [vmem:[#allocation0] ss:$8 sm:$0x3] %vm70, %v69
    %s72 = scalar_lea.vmem %s0, 5
    %s73 = smov 3
    %v74 = vld [vmem:[%s72] ss:$16 sm:%s73]
    %75 = vrot.lane.b32.xlu0 %v74, 40
    %v76 = vpop.permute.xlu0 %75
    %vm77 = vcmask 392512
    %78 = vst.msk [vmem:[#allocation0] ss:$8 sm:$0x3] %vm77, %v76
    %s79 = scalar_lea.vmem %s0, 4
    %s80 = smov 3
    %v81 = vld [vmem:[%s79] ss:$16 sm:%s80]
    %82 = vrot.lane.b32.xlu0 %v81, 32
    %v83 = vpop.permute.xlu0 %82
    %vm84 = vcmask 326912
    %85 = vst.msk [vmem:[#allocation0] ss:$8 sm:$0x3] %vm84, %v83
    %s86 = scalar_lea.vmem %s0, 3
    %s87 = smov 3
    %v88 = vld [vmem:[%s86] ss:$16 sm:%s87]
    %89 = vrot.lane.b32.xlu0 %v88, 24
    %v90 = vpop.permute.xlu0 %89
    %vm91 = vcmask 261312
    %92 = vst.msk [vmem:[#allocation0] ss:$8 sm:$0x3] %vm91, %v90
    %s93 = scalar_lea.vmem %s0, 2
    %s94 = smov 3
    %v95 = vld [vmem:[%s93] ss:$16 sm:%s94]
    %96 = vrot.lane.b32.xlu0 %v95, 16
    %v97 = vpop.permute.xlu0 %96
    %vm98 = vcmask 195712
    %99 = vst.msk [vmem:[#allocation0] ss:$8 sm:$0x3] %vm98, %v97
    %s100 = scalar_lea.vmem %s0, 1
    %s101 = smov 3
    %v102 = vld [vmem:[%s100] ss:$16 sm:%s101]
    %103 = vrot.lane.b32.xlu0 %v102, 8
    %v104 = vpop.permute.xlu0 %103
    %vm105 = vcmask 130112
    %106 = vst.msk [vmem:[#allocation0] ss:$8 sm:$0x3] %vm105, %v104
    %s108 = sshllo.u32 0, 1
    %v110 = vld [vmem:[#allocation0] sm:%s108]
    %s111 = sshllo.u32 0, 1
    %112 = vst [vmem:[%s1] sm:%s111] %v110
    %s113 = scalar_lea.vmem [#allocation0], 8
    %v114 = vld [vmem:[%s113] sm:%s108]
    %s115 = sshllo.u32 0, 1
    %s116 = scalar_lea.vmem %s1, 1
    %117 = vst [vmem:[%s116] sm:%s115] %v114

// kernel: tile.23
$region0: #{tile.23}
  #allocation0 [shape = 's32[1]{0}', space=sflag, size = 0x4, scoped, tag = 'scoped memory for tile.23']
  %s0 = inlined_call_operand.vmem [shape: f32[16], index: 0, kind: input, shape index: {}]
  %s1 = inlined_call_operand.vmem [shape: f32[14,16], index: 1, kind: output, shape index: {}]
  // Predicated region
  $region2: #{tile.23} parent=0 // pred_check
    _
  $region3: #{tile.23} parent=0 // pred_check_branch
    %3 = sbr.rel (0) target = $region5
  $region4: #{tile.23} parent=0 // pred_region
    _
  $region5: #{tile.23} parent=0 // pred_fallthru
    _
  %v4 = vld [vmem:[%s0] ss:$0 sm:$0xff]
  %5 = vst [vmem:[%s1] sm:$0xff] %v4
  %s6 = scalar_lea.vmem %s1, 8
  %7 = vst [vmem:[%s6] sm:$0xff] %v4

// kernel: tile.24
$region0: #{tile.24}
  %s0 = inlined_call_operand.vmem [shape: f32[14,16], index: 0, kind: input, shape index: {}]
  %s1 = inlined_call_operand.vmem [shape: f32[1,224], index: 1, kind: output, shape index: {}]
  $region1: #{tile.24} parent=0
    #allocation0 [shape = 'u8[8192]{0}', space=vmem, size = 0x2000, scoped, tag = 'scoped mem for output reshape']
    %s2 = smov 3
    %v3 = vld [vmem:[%s0] ss:$8 sm:%s2]
    %vm4 = vcmask 130048
    %5 = vst.msk [vmem:[#allocation0] ss:$8 sm:$0x3] %vm4, %v3
    %s6 = scalar_lea.vmem %s0, 7
    %v7 = vld [vmem:[%s6] sm:$0x1]
    %8 = vrot.lane.b32.xlu0 %v7, 112
    %v9 = vpop.permute.xlu0 %8
    %vm10 = vcmask 1048448
    %11 = vst.msk [vmem:[#allocation0] sm:$0x1] %vm10, %v9
    %s12 = scalar_lea.vmem %s0, 6
    %v13 = vld [vmem:[%s12] sm:$0x1]
    %14 = vrot.lane.b32.xlu0 %v13, 96
    %v15 = vpop.permute.xlu0 %14
    %vm16 = vcmask 917248
    %17 = vst.msk [vmem:[#allocation0] sm:$0x1] %vm16, %v15
    %s18 = scalar_lea.vmem %s0, 5
    %s19 = smov 3
    %v20 = vld [vmem:[%s18] ss:$8 sm:%s19]
    %21 = vrot.lane.b32.xlu0 %v20, 80
    %v22 = vpop.permute.xlu0 %21
    %vm23 = vcmask 786048
    %24 = vst.msk [vmem:[#allocation0] ss:$8 sm:$0x3] %vm23, %v22
    %s25 = scalar_lea.vmem %s0, 4
    %s26 = smov 3
    %v27 = vld [vmem:[%s25] ss:$8 sm:%s26]
    %28 = vrot.lane.b32.xlu0 %v27, 64
    %v29 = vpop.permute.xlu0 %28
    %vm30 = vcmask 654848
    %31 = vst.msk [vmem:[#allocation0] ss:$8 sm:$0x3] %vm30, %v29
    %s32 = scalar_lea.vmem %s0, 3
    %s33 = smov 3
    %v34 = vld [vmem:[%s32] ss:$8 sm:%s33]
    %35 = vrot.lane.b32.xlu0 %v34, 48
    %v36 = vpop.permute.xlu0 %35
    %vm37 = vcmask 523648
    %38 = vst.msk [vmem:[#allocation0] ss:$8 sm:$0x3] %vm37, %v36
    %s39 = scalar_lea.vmem %s0, 2
    %s40 = smov 3
    %v41 = vld [vmem:[%s39] ss:$8 sm:%s40]
    %42 = vrot.lane.b32.xlu0 %v41, 32
    %v43 = vpop.permute.xlu0 %42
    %vm44 = vcmask 392448
    %45 = vst.msk [vmem:[#allocation0] ss:$8 sm:$0x3] %vm44, %v43
    %s46 = scalar_lea.vmem %s0, 1
    %s47 = smov 3
    %v48 = vld [vmem:[%s46] ss:$8 sm:%s47]
    %49 = vrot.lane.b32.xlu0 %v48, 16
    %v50 = vpop.permute.xlu0 %49
    %vm51 = vcmask 261248
    %52 = vst.msk [vmem:[#allocation0] ss:$8 sm:$0x3] %vm51, %v50
    %s54 = sshllo.u32 0, 1
    %v56 = vld [vmem:[#allocation0] sm:%s54]
    %s57 = sshllo.u32 0, 1
    %58 = vst [vmem:[%s1] sm:%s57] %v56
    %s59 = scalar_lea.vmem [#allocation0], 8
    %v60 = vld [vmem:[%s59] sm:%s54]
    %s61 = sshllo.u32 0, 1
    %s62 = scalar_lea.vmem %s1, 1
    %63 = vst [vmem:[%s62] sm:%s61] %v60

// kernel: cnn_forward.1
$region0: #{cnn_forward.1}
  #allocation0 [shape = 'u32[]', space=smem, size = 0x4, offset = 0x4, fixed_abs, tag = 'smem constant byte address 0x4 - core index']
  #allocation1 [shape = 'u32[144,128]{1,0:T(1,128)}', space=vmem, size = 0x12000, scoped, tag = 'internal scratch']
  #allocation2 [shape = 'f32[136,128]{1,0:T(8,128)}', space=vmem, size = 0x11000, scoped, tag = 'scratch operand']
  %s0 = inlined_call_operand.vmem [shape: f32[2,264,128], index: 0, kind: input, shape index: {}]
  %s1 = inlined_call_operand.vmem [shape: bf16[3,128,224], index: 1, kind: input, shape index: {}]
  %s2 = inlined_call_operand.vmem [shape: f32[1,224], index: 2, kind: input, shape index: {}]
  %s3 = inlined_call_operand.vmem [shape: bf16[224,128], index: 3, kind: input, shape index: {}]
  %s4 = inlined_call_operand.vmem [shape: bf16[224,128], index: 4, kind: input, shape index: {}]
  %s5 = inlined_call_operand.vmem [shape: bf16[128,256], index: 5, kind: input, shape index: {}]
  %s6 = inlined_call_operand.vmem [shape: bf16[128,256], index: 6, kind: input, shape index: {}]
  %s7 = inlined_call_operand.vmem [shape: bf16[3,128,224], index: 7, kind: input, shape index: {}]
  %s8 = inlined_call_operand.vmem [shape: f32[1,224], index: 8, kind: input, shape index: {}]
  %s9 = inlined_call_operand.vmem [shape: bf16[224,112], index: 9, kind: input, shape index: {}]
  %s10 = inlined_call_operand.vmem [shape: bf16[224,112], index: 10, kind: input, shape index: {}]
  %s11 = inlined_call_operand.vmem [shape: bf16[64,128], index: 11, kind: input, shape index: {}]
  %s12 = inlined_call_operand.vmem [shape: bf16[64,128], index: 12, kind: input, shape index: {}]
  %s13 = inlined_call_operand.vmem [shape: bf16[112,70], index: 13, kind: input, shape index: {}]
  %s14 = inlined_call_operand.vmem [shape: f32[64,70], index: 14, kind: input, shape index: {}]
  %s15 = inlined_call_operand.vmem [shape: f32[1,10], index: 15, kind: input, shape index: {}]
  %s16 = inlined_call_operand.hbm [shape: f32[16,10], index: 16, kind: output, shape index: {}]
  %s17 = sld [smem:[#allocation0]]
  $region97: #{cnn_forward.1} parent=0
    _
  %s19 = ssub.s32 1, %s17
  %s20 = scalar_select 0, %s19, %s17
  $region1: #{cnn_forward.1} parent=0
    #allocation3 [shape = 'u8[8192]{0}', space=vmem, size = 0x2000, scoped, tag = 'output window, operand 0']
    #allocation4 [shape = 's32[2]{0}', space=sflag, size = 0x8, scoped, tag = 'scoped memory for cnn_forward.1']
    %21 = vsyncpa [#allocation4], 0
    %s22 = scalar_lea.sflag [#allocation4], 1
    %23 = vsyncpa %s22, 0
    loop: start=0, step=1, limit=4
    $region2: #{cnn_forward.1} parent=1 // loop_pre_header
      _
    $region3: #{cnn_forward.1} parent=1 // loop_header
      %s25 = sphi 0, %s29
      %p26 = scmp.ge.s32.totalorder %s25, 4
      %s35 = sphi 0, %s37
      %s38 = sphi 0, %s35
      %s39 = sphi 0, %s38
      %s55 = sphi 0, %s39
      %s59 = sphi 0, %s59
      %s61 = sphi 0, %s59
      %s62 = sphi 0, %s61
      %s76 = sphi 0, %s62
      %s80 = sphi 0, %s80
      %s82 = sphi 0, %s80
      %s83 = sphi 0, %s82
      %s97 = sphi 0, %s83
      %s101 = sphi 0, %s101
      %s103 = sphi 0, %s101
      %s104 = sphi 0, %s103
      %s118 = sphi 0, %s104
      %s122 = sphi 0, %s122
      %s124 = sphi 0, %s122
      %s125 = sphi 0, %s124
      %s139 = sphi 0, %s125
      %s143 = sphi 0, %s143
      %s145 = sphi 0, %s143
      %s146 = sphi 0, %s145
      %s160 = sphi 0, %s146
      %s164 = sphi 0, %s164
      %s166 = sphi 0, %s164
      %s167 = sphi 0, %s166
      %s181 = sphi 0, %s167
      %s185 = sphi 0, %s185
      %s187 = sphi 0, %s185
      %s188 = sphi 0, %s187
      %s202 = sphi 0, %s188
      %s206 = sphi 0, %s206
      %s208 = sphi 0, %s206
      %s209 = sphi 0, %s208
      %s223 = sphi 0, %s209
      %s227 = sphi 0, %s227
      %s229 = sphi 0, %s227
      %s230 = sphi 0, %s229
      %s244 = sphi 0, %s230
      %s248 = sphi 0, %s248
      %s250 = sphi 0, %s248
      %s251 = sphi 0, %s250
      %s265 = sphi 0, %s251
      %s269 = sphi 0, %s269
      %s271 = sphi 0, %s269
      %s272 = sphi 0, %s271
      %s286 = sphi 0, %s272
      %s290 = sphi 0, %s290
      %s292 = sphi 0, %s290
      %s293 = sphi 0, %s292
      %s307 = sphi 0, %s293
      %s311 = sphi 0, %s311
      %s313 = sphi 0, %s311
      %s314 = sphi 0, %s313
      %s328 = sphi 0, %s314
      %s332 = sphi 0, %s332
      %s334 = sphi 0, %s332
      %s335 = sphi 0, %s334
      %s349 = sphi 0, %s335
      %s353 = sphi 0, %s353
      %s355 = sphi 0, %s353
      %s356 = sphi 0, %s355
      %s370 = sphi 0, %s356
      %s376 = sphi 0, %s378
      %s379 = sphi 0, %s376
      %s380 = sphi 0, %s379
      %s396 = sphi 0, %s380
    $region4: #{cnn_forward.1} parent=1 // loop_header_branch
      %28 = sbr.rel (%p26) target = $region8
    $region5: #{cnn_forward.1} parent=1 // loop_body
      %s30 = ssub.s32 %s25, 1
      %s31 = ssub.s32 %s25, 2
      %s32 = sadd.s32 %s25, 1
      %s33 = ssub.s32 %s25, %s32
      %p34 = scmp.eq.s32.totalorder %s33, 0
      %s36 = sadd.s32 %s35, 1
      %s37 = scalar_select %p34, %s35, %s36
      %p40 = pneg %p34
      %p41 = scmp.eq.s32.totalorder %s25, 1
      %p42 = por %p40, %p41
      %p43 = scmp.ne.s32.totalorder %s35, %s38
      %p44 = scmp.eq.s32.totalorder %s25, 0
      %p45 = por %p43, %p44
      %p46 = scmp.ne.s32.totalorder %s35, %s38
      %p47 = scmp.eq.s32.totalorder %s30, 1
      %p48 = por %p46, %p47
      %p49 = scmp.ne.s32.totalorder %s38, %s39
      %p50 = scmp.eq.s32.totalorder %s30, 0
      %p51 = por %p49, %p50
      %p52 = scmp.ne.s32.totalorder %s38, %s39
      %p53 = scmp.eq.s32.totalorder %s31, 1
      %p54 = por %p52, %p53
      %p56 = scmp.ne.s32.totalorder %s39, %s55
      %p57 = scmp.eq.s32.totalorder %s31, 0
      %p58 = por %p56, %p57
      %s60 = sadd.s32 %s59, 1
      %p63 = scmp.eq.s32.totalorder %s25, 1
      %p64 = scmp.ne.s32.totalorder %s59, %s61
      %p65 = scmp.eq.s32.totalorder %s25, 0
      %p66 = por %p64, %p65
      %p67 = scmp.ne.s32.totalorder %s59, %s61
      %p68 = scmp.eq.s32.totalorder %s30, 1
      %p69 = por %p67, %p68
      %p70 = scmp.ne.s32.totalorder %s61, %s62
      %p71 = scmp.eq.s32.totalorder %s30, 0
      %p72 = por %p70, %p71
      %p73 = scmp.ne.s32.totalorder %s61, %s62
      %p74 = scmp.eq.s32.totalorder %s31, 1
      %p75 = por %p73, %p74
      %p77 = scmp.ne.s32.totalorder %s62, %s76
      %p78 = scmp.eq.s32.totalorder %s31, 0
      %p79 = por %p77, %p78
      %s81 = sadd.s32 %s80, 1
      %p84 = scmp.eq.s32.totalorder %s25, 1
      %p85 = scmp.ne.s32.totalorder %s80, %s82
      %p86 = scmp.eq.s32.totalorder %s25, 0
      %p87 = por %p85, %p86
      %p88 = scmp.ne.s32.totalorder %s80, %s82
      %p89 = scmp.eq.s32.totalorder %s30, 1
      %p90 = por %p88, %p89
      %p91 = scmp.ne.s32.totalorder %s82, %s83
      %p92 = scmp.eq.s32.totalorder %s30, 0
      %p93 = por %p91, %p92
      %p94 = scmp.ne.s32.totalorder %s82, %s83
      %p95 = scmp.eq.s32.totalorder %s31, 1
      %p96 = por %p94, %p95
      %p98 = scmp.ne.s32.totalorder %s83, %s97
      %p99 = scmp.eq.s32.totalorder %s31, 0
      %p100 = por %p98, %p99
      %s102 = sadd.s32 %s101, 1
      %p105 = scmp.eq.s32.totalorder %s25, 1
      %p106 = scmp.ne.s32.totalorder %s101, %s103
      %p107 = scmp.eq.s32.totalorder %s25, 0
      %p108 = por %p106, %p107
      %p109 = scmp.ne.s32.totalorder %s101, %s103
      %p110 = scmp.eq.s32.totalorder %s30, 1
      %p111 = por %p109, %p110
      %p112 = scmp.ne.s32.totalorder %s103, %s104
      %p113 = scmp.eq.s32.totalorder %s30, 0
      %p114 = por %p112, %p113
      %p115 = scmp.ne.s32.totalorder %s103, %s104
      %p116 = scmp.eq.s32.totalorder %s31, 1
      %p117 = por %p115, %p116
      %p119 = scmp.ne.s32.totalorder %s104, %s118
      %p120 = scmp.eq.s32.totalorder %s31, 0
      %p121 = por %p119, %p120
      %s123 = sadd.s32 %s122, 1
      %p126 = scmp.eq.s32.totalorder %s25, 1
      %p127 = scmp.ne.s32.totalorder %s122, %s124
      %p128 = scmp.eq.s32.totalorder %s25, 0
      %p129 = por %p127, %p128
      %p130 = scmp.ne.s32.totalorder %s122, %s124
      %p131 = scmp.eq.s32.totalorder %s30, 1
      %p132 = por %p130, %p131
      %p133 = scmp.ne.s32.totalorder %s124, %s125
      %p134 = scmp.eq.s32.totalorder %s30, 0
      %p135 = por %p133, %p134
      %p136 = scmp.ne.s32.totalorder %s124, %s125
      %p137 = scmp.eq.s32.totalorder %s31, 1
      %p138 = por %p136, %p137
      %p140 = scmp.ne.s32.totalorder %s125, %s139
      %p141 = scmp.eq.s32.totalorder %s31, 0
      %p142 = por %p140, %p141
      %s144 = sadd.s32 %s143, 1
      %p147 = scmp.eq.s32.totalorder %s25, 1
      %p148 = scmp.ne.s32.totalorder %s143, %s145
      %p149 = scmp.eq.s32.totalorder %s25, 0
      %p150 = por %p148, %p149
      %p151 = scmp.ne.s32.totalorder %s143, %s145
      %p152 = scmp.eq.s32.totalorder %s30, 1
      %p153 = por %p151, %p152
      %p154 = scmp.ne.s32.totalorder %s145, %s146
      %p155 = scmp.eq.s32.totalorder %s30, 0
      %p156 = por %p154, %p155
      %p157 = scmp.ne.s32.totalorder %s145, %s146
      %p158 = scmp.eq.s32.totalorder %s31, 1
      %p159 = por %p157, %p158
      %p161 = scmp.ne.s32.totalorder %s146, %s160
      %p162 = scmp.eq.s32.totalorder %s31, 0
      %p163 = por %p161, %p162
      %s165 = sadd.s32 %s164, 1
      %p168 = scmp.eq.s32.totalorder %s25, 1
      %p169 = scmp.ne.s32.totalorder %s164, %s166
      %p170 = scmp.eq.s32.totalorder %s25, 0
      %p171 = por %p169, %p170
      %p172 = scmp.ne.s32.totalorder %s164, %s166
      %p173 = scmp.eq.s32.totalorder %s30, 1
      %p174 = por %p172, %p173
      %p175 = scmp.ne.s32.totalorder %s166, %s167
      %p176 = scmp.eq.s32.totalorder %s30, 0
      %p177 = por %p175, %p176
      %p178 = scmp.ne.s32.totalorder %s166, %s167
      %p179 = scmp.eq.s32.totalorder %s31, 1
      %p180 = por %p178, %p179
      %p182 = scmp.ne.s32.totalorder %s167, %s181
      %p183 = scmp.eq.s32.totalorder %s31, 0
      %p184 = por %p182, %p183
      %s186 = sadd.s32 %s185, 1
      %p189 = scmp.eq.s32.totalorder %s25, 1
      %p190 = scmp.ne.s32.totalorder %s185, %s187
      %p191 = scmp.eq.s32.totalorder %s25, 0
      %p192 = por %p190, %p191
      %p193 = scmp.ne.s32.totalorder %s185, %s187
      %p194 = scmp.eq.s32.totalorder %s30, 1
      %p195 = por %p193, %p194
      %p196 = scmp.ne.s32.totalorder %s187, %s188
      %p197 = scmp.eq.s32.totalorder %s30, 0
      %p198 = por %p196, %p197
      %p199 = scmp.ne.s32.totalorder %s187, %s188
      %p200 = scmp.eq.s32.totalorder %s31, 1
      %p201 = por %p199, %p200
      %p203 = scmp.ne.s32.totalorder %s188, %s202
      %p204 = scmp.eq.s32.totalorder %s31, 0
      %p205 = por %p203, %p204
      %s207 = sadd.s32 %s206, 1
      %p210 = scmp.eq.s32.totalorder %s25, 1
      %p211 = scmp.ne.s32.totalorder %s206, %s208
      %p212 = scmp.eq.s32.totalorder %s25, 0
      %p213 = por %p211, %p212
      %p214 = scmp.ne.s32.totalorder %s206, %s208
      %p215 = scmp.eq.s32.totalorder %s30, 1
      %p216 = por %p214, %p215
      %p217 = scmp.ne.s32.totalorder %s208, %s209
      %p218 = scmp.eq.s32.totalorder %s30, 0
      %p219 = por %p217, %p218
      %p220 = scmp.ne.s32.totalorder %s208, %s209
      %p221 = scmp.eq.s32.totalorder %s31, 1
      %p222 = por %p220, %p221
      %p224 = scmp.ne.s32.totalorder %s209, %s223
      %p225 = scmp.eq.s32.totalorder %s31, 0
      %p226 = por %p224, %p225
      %s228 = sadd.s32 %s227, 1
      %p231 = scmp.eq.s32.totalorder %s25, 1
      %p232 = scmp.ne.s32.totalorder %s227, %s229
      %p233 = scmp.eq.s32.totalorder %s25, 0
      %p234 = por %p232, %p233
      %p235 = scmp.ne.s32.totalorder %s227, %s229
      %p236 = scmp.eq.s32.totalorder %s30, 1
      %p237 = por %p235, %p236
      %p238 = scmp.ne.s32.totalorder %s229, %s230
      %p239 = scmp.eq.s32.totalorder %s30, 0
      %p240 = por %p238, %p239
      %p241 = scmp.ne.s32.totalorder %s229, %s230
      %p242 = scmp.eq.s32.totalorder %s31, 1
      %p243 = por %p241, %p242
      %p245 = scmp.ne.s32.totalorder %s230, %s244
      %p246 = scmp.eq.s32.totalorder %s31, 0
      %p247 = por %p245, %p246
      %s249 = sadd.s32 %s248, 1
      %p252 = scmp.eq.s32.totalorder %s25, 1
      %p253 = scmp.ne.s32.totalorder %s248, %s250
      %p254 = scmp.eq.s32.totalorder %s25, 0
      %p255 = por %p253, %p254
      %p256 = scmp.ne.s32.totalorder %s248, %s250
      %p257 = scmp.eq.s32.totalorder %s30, 1
      %p258 = por %p256, %p257
      %p259 = scmp.ne.s32.totalorder %s250, %s251
      %p260 = scmp.eq.s32.totalorder %s30, 0
      %p261 = por %p259, %p260
      %p262 = scmp.ne.s32.totalorder %s250, %s251
      %p263 = scmp.eq.s32.totalorder %s31, 1
      %p264 = por %p262, %p263
      %p266 = scmp.ne.s32.totalorder %s251, %s265
      %p267 = scmp.eq.s32.totalorder %s31, 0
      %p268 = por %p266, %p267
      %s270 = sadd.s32 %s269, 1
      %p273 = scmp.eq.s32.totalorder %s25, 1
      %p274 = scmp.ne.s32.totalorder %s269, %s271
      %p275 = scmp.eq.s32.totalorder %s25, 0
      %p276 = por %p274, %p275
      %p277 = scmp.ne.s32.totalorder %s269, %s271
      %p278 = scmp.eq.s32.totalorder %s30, 1
      %p279 = por %p277, %p278
      %p280 = scmp.ne.s32.totalorder %s271, %s272
      %p281 = scmp.eq.s32.totalorder %s30, 0
      %p282 = por %p280, %p281
      %p283 = scmp.ne.s32.totalorder %s271, %s272
      %p284 = scmp.eq.s32.totalorder %s31, 1
      %p285 = por %p283, %p284
      %p287 = scmp.ne.s32.totalorder %s272, %s286
      %p288 = scmp.eq.s32.totalorder %s31, 0
      %p289 = por %p287, %p288
      %s291 = sadd.s32 %s290, 1
      %p294 = scmp.eq.s32.totalorder %s25, 1
      %p295 = scmp.ne.s32.totalorder %s290, %s292
      %p296 = scmp.eq.s32.totalorder %s25, 0
      %p297 = por %p295, %p296
      %p298 = scmp.ne.s32.totalorder %s290, %s292
      %p299 = scmp.eq.s32.totalorder %s30, 1
      %p300 = por %p298, %p299
      %p301 = scmp.ne.s32.totalorder %s292, %s293
      %p302 = scmp.eq.s32.totalorder %s30, 0
      %p303 = por %p301, %p302
      %p304 = scmp.ne.s32.totalorder %s292, %s293
      %p305 = scmp.eq.s32.totalorder %s31, 1
      %p306 = por %p304, %p305
      %p308 = scmp.ne.s32.totalorder %s293, %s307
      %p309 = scmp.eq.s32.totalorder %s31, 0
      %p310 = por %p308, %p309
      %s312 = sadd.s32 %s311, 1
      %p315 = scmp.eq.s32.totalorder %s25, 1
      %p316 = scmp.ne.s32.totalorder %s311, %s313
      %p317 = scmp.eq.s32.totalorder %s25, 0
      %p318 = por %p316, %p317
      %p319 = scmp.ne.s32.totalorder %s311, %s313
      %p320 = scmp.eq.s32.totalorder %s30, 1
      %p321 = por %p319, %p320
      %p322 = scmp.ne.s32.totalorder %s313, %s314
      %p323 = scmp.eq.s32.totalorder %s30, 0
      %p324 = por %p322, %p323
      %p325 = scmp.ne.s32.totalorder %s313, %s314
      %p326 = scmp.eq.s32.totalorder %s31, 1
      %p327 = por %p325, %p326
      %p329 = scmp.ne.s32.totalorder %s314, %s328
      %p330 = scmp.eq.s32.totalorder %s31, 0
      %p331 = por %p329, %p330
      %s333 = sadd.s32 %s332, 1
      %p336 = scmp.eq.s32.totalorder %s25, 1
      %p337 = scmp.ne.s32.totalorder %s332, %s334
      %p338 = scmp.eq.s32.totalorder %s25, 0
      %p339 = por %p337, %p338
      %p340 = scmp.ne.s32.totalorder %s332, %s334
      %p341 = scmp.eq.s32.totalorder %s30, 1
      %p342 = por %p340, %p341
      %p343 = scmp.ne.s32.totalorder %s334, %s335
      %p344 = scmp.eq.s32.totalorder %s30, 0
      %p345 = por %p343, %p344
      %p346 = scmp.ne.s32.totalorder %s334, %s335
      %p347 = scmp.eq.s32.totalorder %s31, 1
      %p348 = por %p346, %p347
      %p350 = scmp.ne.s32.totalorder %s335, %s349
      %p351 = scmp.eq.s32.totalorder %s31, 0
      %p352 = por %p350, %p351
      %s354 = sadd.s32 %s353, 1
      %p357 = scmp.eq.s32.totalorder %s25, 1
      %p358 = scmp.ne.s32.totalorder %s353, %s355
      %p359 = scmp.eq.s32.totalorder %s25, 0
      %p360 = por %p358, %p359
      %p361 = scmp.ne.s32.totalorder %s353, %s355
      %p362 = scmp.eq.s32.totalorder %s30, 1
      %p363 = por %p361, %p362
      %p364 = scmp.ne.s32.totalorder %s355, %s356
      %p365 = scmp.eq.s32.totalorder %s30, 0
      %p366 = por %p364, %p365
      %p367 = scmp.ne.s32.totalorder %s355, %s356
      %p368 = scmp.eq.s32.totalorder %s31, 1
      %p369 = por %p367, %p368
      %p371 = scmp.ne.s32.totalorder %s356, %s370
      %p372 = scmp.eq.s32.totalorder %s31, 0
      %p373 = por %p371, %p372
      %s374 = ssub.s32 %s25, %s32
      %p375 = scmp.eq.s32.totalorder %s374, 0
      %s377 = sadd.s32 %s376, 1
      %s378 = scalar_select %p375, %s376, %s377
      %p381 = pneg %p375
      %p382 = scmp.eq.s32.totalorder %s25, 1
      %p383 = por %p381, %p382
      %p384 = scmp.ne.s32.totalorder %s376, %s379
      %p385 = scmp.eq.s32.totalorder %s25, 0
      %p386 = por %p384, %p385
      %p387 = scmp.ne.s32.totalorder %s376, %s379
      %p388 = scmp.eq.s32.totalorder %s30, 1
      %p389 = por %p387, %p388
      %p390 = scmp.ne.s32.totalorder %s379, %s380
      %p391 = scmp.eq.s32.totalorder %s30, 0
      %p392 = por %p390, %p391
      %p393 = scmp.ne.s32.totalorder %s379, %s380
      %p394 = scmp.eq.s32.totalorder %s31, 1
      %p395 = por %p393, %p394
      %p397 = scmp.ne.s32.totalorder %s380, %s396
      %p398 = scmp.eq.s32.totalorder %s31, 0
      %p399 = por %p397, %p398
      %p400 = scmp.le.s32.totalorder 1, %s25
      %p401 = scmp.lt.s32.totalorder %s25, 3
      %p402 = pnand %p400, %p401
      %p403 = pneg %p402
      // Predicated region
      $region9: #{cnn_forward.1} parent=5 // pred_check
        _
      $region10: #{cnn_forward.1} parent=5 // pred_check_branch
        %405 = sbr.rel (%p402) target = $region12
      $region11: #{cnn_forward.1} parent=5 // pred_region
        %s406 = ssub.s32 %s25, 1
        // Predicated region
        $region13: #{cnn_forward.1} parent=11 // pred_check
          %p407 = pneg %p72
        $region14: #{cnn_forward.1} parent=11 // pred_check_branch
          %409 = sbr.rel (%p407) target = $region16
        $region15: #{cnn_forward.1} parent=11 // pred_region
          _
        $region16: #{cnn_forward.1} parent=11 // pred_fallthru
          _
        // Predicated region
        $region17: #{cnn_forward.1} parent=11 // pred_check
          %p410 = pneg %p93
        $region18: #{cnn_forward.1} parent=11 // pred_check_branch
          %412 = sbr.rel (%p410) target = $region20
        $region19: #{cnn_forward.1} parent=11 // pred_region
          _
        $region20: #{cnn_forward.1} parent=11 // pred_fallthru
          _
        // Predicated region
        $region21: #{cnn_forward.1} parent=11 // pred_check
          %p413 = pneg %p114
        $region22: #{cnn_forward.1} parent=11 // pred_check_branch
          %415 = sbr.rel (%p413) target = $region24
        $region23: #{cnn_forward.1} parent=11 // pred_region
          _
        $region24: #{cnn_forward.1} parent=11 // pred_fallthru
          _
        // Predicated region
        $region25: #{cnn_forward.1} parent=11 // pred_check
          %p416 = pneg %p135
        $region26: #{cnn_forward.1} parent=11 // pred_check_branch
          %418 = sbr.rel (%p416) target = $region28
        $region27: #{cnn_forward.1} parent=11 // pred_region
          _
        $region28: #{cnn_forward.1} parent=11 // pred_fallthru
          _
        // Predicated region
        $region29: #{cnn_forward.1} parent=11 // pred_check
          %p419 = pneg %p156
        $region30: #{cnn_forward.1} parent=11 // pred_check_branch
          %421 = sbr.rel (%p419) target = $region32
        $region31: #{cnn_forward.1} parent=11 // pred_region
          _
        $region32: #{cnn_forward.1} parent=11 // pred_fallthru
          _
        // Predicated region
        $region33: #{cnn_forward.1} parent=11 // pred_check
          %p422 = pneg %p177
        $region34: #{cnn_forward.1} parent=11 // pred_check_branch
          %424 = sbr.rel (%p422) target = $region36
        $region35: #{cnn_forward.1} parent=11 // pred_region
          _
        $region36: #{cnn_forward.1} parent=11 // pred_fallthru
          _
        // Predicated region
        $region37: #{cnn_forward.1} parent=11 // pred_check
          %p425 = pneg %p198
        $region38: #{cnn_forward.1} parent=11 // pred_check_branch
          %427 = sbr.rel (%p425) target = $region40
        $region39: #{cnn_forward.1} parent=11 // pred_region
          _
        $region40: #{cnn_forward.1} parent=11 // pred_fallthru
          _
        // Predicated region
        $region41: #{cnn_forward.1} parent=11 // pred_check
          %p428 = pneg %p219
        $region42: #{cnn_forward.1} parent=11 // pred_check_branch
          %430 = sbr.rel (%p428) target = $region44
        $region43: #{cnn_forward.1} parent=11 // pred_region
          _
        $region44: #{cnn_forward.1} parent=11 // pred_fallthru
          _
        // Predicated region
        $region45: #{cnn_forward.1} parent=11 // pred_check
          %p431 = pneg %p240
        $region46: #{cnn_forward.1} parent=11 // pred_check_branch
          %433 = sbr.rel (%p431) target = $region48
        $region47: #{cnn_forward.1} parent=11 // pred_region
          _
        $region48: #{cnn_forward.1} parent=11 // pred_fallthru
          _
        // Predicated region
        $region49: #{cnn_forward.1} parent=11 // pred_check
          %p434 = pneg %p261
        $region50: #{cnn_forward.1} parent=11 // pred_check_branch
          %436 = sbr.rel (%p434) target = $region52
        $region51: #{cnn_forward.1} parent=11 // pred_region
          _
        $region52: #{cnn_forward.1} parent=11 // pred_fallthru
          _
        // Predicated region
        $region53: #{cnn_forward.1} parent=11 // pred_check
          %p437 = pneg %p282
        $region54: #{cnn_forward.1} parent=11 // pred_check_branch
          %439 = sbr.rel (%p437) target = $region56
        $region55: #{cnn_forward.1} parent=11 // pred_region
          _
        $region56: #{cnn_forward.1} parent=11 // pred_fallthru
          _
        // Predicated region
        $region57: #{cnn_forward.1} parent=11 // pred_check
          %p440 = pneg %p303
        $region58: #{cnn_forward.1} parent=11 // pred_check_branch
          %442 = sbr.rel (%p440) target = $region60
        $region59: #{cnn_forward.1} parent=11 // pred_region
          _
        $region60: #{cnn_forward.1} parent=11 // pred_fallthru
          _
        // Predicated region
        $region61: #{cnn_forward.1} parent=11 // pred_check
          %p443 = pneg %p324
        $region62: #{cnn_forward.1} parent=11 // pred_check_branch
          %445 = sbr.rel (%p443) target = $region64
        $region63: #{cnn_forward.1} parent=11 // pred_region
          _
        $region64: #{cnn_forward.1} parent=11 // pred_fallthru
          _
        // Predicated region
        $region65: #{cnn_forward.1} parent=11 // pred_check
          %p446 = pneg %p345
        $region66: #{cnn_forward.1} parent=11 // pred_check_branch
          %448 = sbr.rel (%p446) target = $region68
        $region67: #{cnn_forward.1} parent=11 // pred_region
          _
        $region68: #{cnn_forward.1} parent=11 // pred_fallthru
          _
        // Predicated region
        $region69: #{cnn_forward.1} parent=11 // pred_check
          %p449 = pneg %p366
        $region70: #{cnn_forward.1} parent=11 // pred_check_branch
          %451 = sbr.rel (%p449) target = $region72
        $region71: #{cnn_forward.1} parent=11 // pred_region
          _
        $region72: #{cnn_forward.1} parent=11 // pred_fallthru
          _
      $region12: #{cnn_forward.1} parent=5 // pred_fallthru
        _
      %p452 = scmp.lt.s32.totalorder %s25, 2
      // Predicated region
      $region73: #{cnn_forward.1} parent=5 // pred_check
        %p453 = pneg %p452
      $region74: #{cnn_forward.1} parent=5 // pred_check_branch
        %455 = sbr.rel (%p453) target = $region76
      $region75: #{cnn_forward.1} parent=5 // pred_region
        // Predicated region
        $region77: #{cnn_forward.1} parent=75 // pred_check
          %p456 = pneg %p45
        $region78: #{cnn_forward.1} parent=75 // pred_check_branch
          %458 = sbr.rel (%p456) target = $region80
        $region79: #{cnn_forward.1} parent=75 // pred_region
          %p459 = scmp.lt.s32.totalorder %s25, 1
          %s460 = scalar_select %p459, %s25, 1
          %s461 = smul.addr %s460, 33
          %s462 = smul.addr %s461, 8
          %s463 = scalar_lea.vmem %s0, %s462
        $region80: #{cnn_forward.1} parent=75 // pred_fallthru
          _
      $region76: #{cnn_forward.1} parent=5 // pred_fallthru
        _
      %p464 = scmp.le.s32.totalorder 1, %s25
      %p465 = scmp.lt.s32.totalorder %s25, 3
      %p466 = pnand %p464, %p465
      %p467 = pneg %p466
      // Predicated region
      $region81: #{cnn_forward.1} parent=5 // pred_check
        _
      $region82: #{cnn_forward.1} parent=5 // pred_check_branch
        %469 = sbr.rel (%p466) target = $region84
      $region83: #{cnn_forward.1} parent=5 // pred_region
        %s470 = ssub.s32 %s25, 1
        %p471 = scmp.lt.s32.totalorder %s30, 1
        %s472 = scalar_select %p471, %s30, 1
        %s473 = smul.addr %s472, 33
        %s474 = smul.addr %s473, 8
        %s475 = scalar_lea.vmem %s0, %s474
        %p476 = pneg %p51
        %p477 = pneg %p48
        %p478 = pneg %p72
        %p479 = pneg %p69
        %p480 = pneg %p93
        %p481 = pneg %p90
        %p482 = pneg %p114
        %p483 = pneg %p111
        %p484 = pneg %p135
        %p485 = pneg %p132
        %p486 = pneg %p156
        %p487 = pneg %p153
        %p488 = pneg %p177
        %p489 = pneg %p174
        %p490 = pneg %p198
        %p491 = pneg %p195
        %p492 = pneg %p219
        %p493 = pneg %p216
        %p494 = pneg %p240
        %p495 = pneg %p237
        %p496 = pneg %p261
        %p497 = pneg %p258
        %p498 = pneg %p282
        %p499 = pneg %p279
        %p500 = pneg %p303
        %p501 = pneg %p300
        %p502 = pneg %p324
        %p503 = pneg %p321
        %p504 = pneg %p345
        %p505 = pneg %p342
        %p506 = pneg %p366
        %p507 = pneg %p363
        %p508 = pneg %p392
        %p509 = pneg %p389
        %s510 = sand.u32 %s379, 1
        %s511 = scalar_lea.sflag [#allocation4], %s510
        %s512 = sand.u32 %s379, 1
        %s513 = smul.addr %s512, 8
        %s514 = scalar_lea.vmem [#allocation3], %s513
        %p515 = scmp.lt.s32.totalorder %s30, 1
        %s516 = scalar_select %p515, %s30, 1
        %s517 = smul.addr %s516, 33
        %s518 = smul.addr %s517, 8
        %s519 = scalar_lea.vmem %s0, %s518
        %v521 = vld [vmem:[%s519] sm:$0xff]
        %v522 = vld [vmem:[%s519 + $0x8] sm:$0xff]
        %v523 = vld [vmem:[%s519 + $0x10] sm:$0xff]
        %v524 = vld [vmem:[%s519 + $0x18] sm:$0xff]
        %v525 = vld [vmem:[%s519 + $0x20] sm:$0xff]
        %v526 = vld [vmem:[%s519 + $0x28] sm:$0xff]
        %v527 = vld [vmem:[%s519 + $0x30] sm:$0xff]
        %v528 = vld [vmem:[%s519 + $0x38] sm:$0xff]
        %v529 = vld [vmem:[%s519 + $0x40] sm:$0xff]
        %v530 = vld [vmem:[%s519 + $0x48] sm:$0xff]
        %v531 = vld [vmem:[%s519 + $0x50] sm:$0xff]
        %v532 = vld [vmem:[%s519 + $0x58] sm:$0xff]
        %v533 = vld [vmem:[%s519 + $0x60] sm:$0xff]
        %v534 = vld [vmem:[%s519 + $0x68] sm:$0xff]
        %v535 = vld [vmem:[%s519 + $0x70] sm:$0xff]
        %v536 = vld [vmem:[%s519 + $0x78] sm:$0xff]
        %v537 = vld [vmem:[%s519 + $0x80] sm:$0xff]
        %v538 = vld [vmem:[%s519 + $0x88] sm:$0xff]
        %v539 = vld [vmem:[%s519 + $0x90] sm:$0xff]
        %v540 = vld [vmem:[%s519 + $0x98] sm:$0xff]
        %v541 = vld [vmem:[%s519 + $0xa0] sm:$0xff]
        %v542 = vld [vmem:[%s519 + $0xa8] sm:$0xff]
        %v543 = vld [vmem:[%s519 + $0xb0] sm:$0xff]
        %v544 = vld [vmem:[%s519 + $0xb8] sm:$0xff]
        %v545 = vld [vmem:[%s519 + $0xc0] sm:$0xff]
        %v546 = vld [vmem:[%s519 + $0xc8] sm:$0xff]
        %v547 = vld [vmem:[%s519 + $0xd0] sm:$0xff]
        %v548 = vld [vmem:[%s519 + $0xd8] sm:$0xff]
        %v549 = vld [vmem:[%s519 + $0xe0] sm:$0xff]
        %v550 = vld [vmem:[%s519 + $0xe8] sm:$0xff]
        %v551 = vld [vmem:[%s519 + $0xf0] sm:$0xff]
        %v552 = vld [vmem:[%s519 + $0xf8] sm:$0xff]
        %v553 = vpack.c.bf16 %v522, %v521
        %v554 = vpack.c.bf16 %v524, %v523
        %v555 = vpack.c.bf16 %v526, %v525
        %v556 = vpack.c.bf16 %v528, %v527
        %v557 = vpack.c.bf16 %v530, %v529
        %v558 = vpack.c.bf16 %v532, %v531
        %v559 = vpack.c.bf16 %v534, %v533
        %v560 = vpack.c.bf16 %v536, %v535
        %v561 = vpack.c.bf16 %v538, %v537
        %v562 = vpack.c.bf16 %v540, %v539
        %v563 = vpack.c.bf16 %v542, %v541
        %v564 = vpack.c.bf16 %v544, %v543
        %v565 = vpack.c.bf16 %v546, %v545
        %v566 = vpack.c.bf16 %v548, %v547
        %v567 = vpack.c.bf16 %v550, %v549
        %v568 = vpack.c.bf16 %v552, %v551
        %v569 = vld [vmem:[%s1] sm:$0xff]
        %v570 = vld [vmem:[%s1 + $0x8] sm:$0xff]
        %v571 = vld [vmem:[%s1 + $0x10] sm:$0xff]
        %v572 = vld [vmem:[%s1 + $0x18] sm:$0xff]
        %v573 = vld [vmem:[%s1 + $0x20] sm:$0xff]
        %v574 = vld [vmem:[%s1 + $0x28] sm:$0xff]
        %v575 = vld [vmem:[%s1 + $0x30] sm:$0xff]
        %v576 = vld [vmem:[%s1 + $0x38] sm:$0xff]
        %v577 = vld [vmem:[%s1 + $0x40] sm:$0xff]
        %v578 = vld [vmem:[%s1 + $0x48] sm:$0xff]
        %v579 = vld [vmem:[%s1 + $0x50] sm:$0xff]
        %v580 = vld [vmem:[%s1 + $0x58] sm:$0xff]
        %v581 = vld [vmem:[%s1 + $0x60] sm:$0xff]
        %v582 = vld [vmem:[%s1 + $0x68] sm:$0xff]
        %v583 = vld [vmem:[%s1 + $0x70] sm:$0xff]
        %v584 = vld [vmem:[%s1 + $0x78] sm:$0xff]
        %v585 = vld [vmem:[%s519 + $0x1] sm:$0xff]
        %v586 = vld [vmem:[%s519 + $0x9] sm:$0xff]
        %v587 = vld [vmem:[%s519 + $0x11] sm:$0xff]
        %v588 = vld [vmem:[%s519 + $0x19] sm:$0xff]
        %v589 = vld [vmem:[%s519 + $0x21] sm:$0xff]
        %v590 = vld [vmem:[%s519 + $0x29] sm:$0xff]
        %v591 = vld [vmem:[%s519 + $0x31] sm:$0xff]
        %v592 = vld [vmem:[%s519 + $0x39] sm:$0xff]
        %v593 = vld [vmem:[%s519 + $0x41] sm:$0xff]
        %v594 = vld [vmem:[%s519 + $0x49] sm:$0xff]
        %v595 = vld [vmem:[%s519 + $0x51] sm:$0xff]
        %v596 = vld [vmem:[%s519 + $0x59] sm:$0xff]
        %v597 = vld [vmem:[%s519 + $0x61] sm:$0xff]
        %v598 = vld [vmem:[%s519 + $0x69] sm:$0xff]
        %v599 = vld [vmem:[%s519 + $0x71] sm:$0xff]
        %v600 = vld [vmem:[%s519 + $0x79] sm:$0xff]
        %v601 = vld [vmem:[%s519 + $0x81] sm:$0xff]
        %v602 = vld [vmem:[%s519 + $0x89] sm:$0xff]
        %v603 = vld [vmem:[%s519 + $0x91] sm:$0xff]
        %v604 = vld [vmem:[%s519 + $0x99] sm:$0xff]
        %v605 = vld [vmem:[%s519 + $0xa1] sm:$0xff]
        %v606 = vld [vmem:[%s519 + $0xa9] sm:$0xff]
        %v607 = vld [vmem:[%s519 + $0xb1] sm:$0xff]
        %v608 = vld [vmem:[%s519 + $0xb9] sm:$0xff]
        %v609 = vld [vmem:[%s519 + $0xc1] sm:$0xff]
        %v610 = vld [vmem:[%s519 + $0xc9] sm:$0xff]
        %v611 = vld [vmem:[%s519 + $0xd1] sm:$0xff]
        %v612 = vld [vmem:[%s519 + $0xd9] sm:$0xff]
        %v613 = vld [vmem:[%s519 + $0xe1] sm:$0xff]
        %v614 = vld [vmem:[%s519 + $0xe9] sm:$0xff]
        %v615 = vld [vmem:[%s519 + $0xf1] sm:$0xff]
        %v616 = vld [vmem:[%s519 + $0xf9] sm:$0xff]
        %v617 = vpack.c.bf16 %v586, %v585
        %v618 = vpack.c.bf16 %v588, %v587
        %v619 = vpack.c.bf16 %v590, %v589
        %v620 = vpack.c.bf16 %v592, %v591
        %v621 = vpack.c.bf16 %v594, %v593
        %v622 = vpack.c.bf16 %v596, %v595
        %v623 = vpack.c.bf16 %v598, %v597
        %v624 = vpack.c.bf16 %v600, %v599
        %v625 = vpack.c.bf16 %v602, %v601
        %v626 = vpack.c.bf16 %v604, %v603
        %v627 = vpack.c.bf16 %v606, %v605
        %v628 = vpack.c.bf16 %v608, %v607
        %v629 = vpack.c.bf16 %v610, %v609
        %v630 = vpack.c.bf16 %v612, %v611
        %v631 = vpack.c.bf16 %v614, %v613
        %v632 = vpack.c.bf16 %v616, %v615
        %s633 = scalar_lea.vmem %s1, 128
        %v634 = vld [vmem:[%s633] sm:$0xff]
        %v635 = vld [vmem:[%s633 + $0x8] sm:$0xff]
        %v636 = vld [vmem:[%s633 + $0x10] sm:$0xff]
        %v637 = vld [vmem:[%s633 + $0x18] sm:$0xff]
        %v638 = vld [vmem:[%s633 + $0x20] sm:$0xff]
        %v639 = vld [vmem:[%s633 + $0x28] sm:$0xff]
        %v640 = vld [vmem:[%s633 + $0x30] sm:$0xff]
        %v641 = vld [vmem:[%s633 + $0x38] sm:$0xff]
        %v642 = vld [vmem:[%s633 + $0x40] sm:$0xff]
        %v643 = vld [vmem:[%s633 + $0x48] sm:$0xff]
        %v644 = vld [vmem:[%s633 + $0x50] sm:$0xff]
        %v645 = vld [vmem:[%s633 + $0x58] sm:$0xff]
        %v646 = vld [vmem:[%s633 + $0x60] sm:$0xff]
        %v647 = vld [vmem:[%s633 + $0x68] sm:$0xff]
        %v648 = vld [vmem:[%s633 + $0x70] sm:$0xff]
        %v649 = vld [vmem:[%s633 + $0x78] sm:$0xff]
        %v666 = vunpack.c.l.b16 %v634
        %v667 = vunpack.c.h.b16 %v634
        %v668 = vunpack.c.l.b16 %v635
        %v669 = vunpack.c.h.b16 %v635
        %v670 = vunpack.c.l.b16 %v636
        %v671 = vunpack.c.h.b16 %v636
        %v672 = vunpack.c.l.b16 %v637
        %v673 = vunpack.c.h.b16 %v637
        %v674 = vunpack.c.l.b16 %v638
        %v675 = vunpack.c.h.b16 %v638
        %v676 = vunpack.c.l.b16 %v639
        %v677 = vunpack.c.h.b16 %v639
        %v678 = vunpack.c.l.b16 %v640
        %v679 = vunpack.c.h.b16 %v640
        %v680 = vunpack.c.l.b16 %v641
        %v681 = vunpack.c.h.b16 %v641
        %v682 = vunpack.c.l.b16 %v642
        %v683 = vunpack.c.h.b16 %v642
        %v684 = vunpack.c.l.b16 %v643
        %v685 = vunpack.c.h.b16 %v643
        %v686 = vunpack.c.l.b16 %v644
        %v687 = vunpack.c.h.b16 %v644
        %v688 = vunpack.c.l.b16 %v645
        %v689 = vunpack.c.h.b16 %v645
        %v690 = vunpack.c.l.b16 %v646
        %v691 = vunpack.c.h.b16 %v646
        %v692 = vunpack.c.l.b16 %v647
        %v693 = vunpack.c.h.b16 %v647
        %v694 = vunpack.c.l.b16 %v648
        %v695 = vunpack.c.h.b16 %v648
        %v696 = vunpack.c.l.b16 %v649
        %v697 = vunpack.c.h.b16 %v649
        %v698 = vpack.c.b16 %v668, %v666
        %v699 = vpack.c.b16 %v669, %v667
        %v700 = vpack.c.b16 %v672, %v670
        %v701 = vpack.c.b16 %v673, %v671
        %v702 = vpack.c.b16 %v676, %v674
        %v703 = vpack.c.b16 %v677, %v675
        %v704 = vpack.c.b16 %v680, %v678
        %v705 = vpack.c.b16 %v681, %v679
        %v706 = vpack.c.b16 %v684, %v682
        %v707 = vpack.c.b16 %v685, %v683
        %v708 = vpack.c.b16 %v688, %v686
        %v709 = vpack.c.b16 %v689, %v687
        %v710 = vpack.c.b16 %v692, %v690
        %v711 = vpack.c.b16 %v693, %v691
        %v712 = vpack.c.b16 %v696, %v694
        %v713 = vpack.c.b16 %v697, %v695
        %730 = vmatprep.subr.bf16.mxu0 %v699
        %731 = vmatpush1.bf16.msra.mxu0 %v698
        %732 = vmatprep.subr.bf16.mxu0 %v701
        %733 = vmatpush1.bf16.msra.mxu0 %v700
        %734 = vmatprep.subr.bf16.mxu0 %v703
        %735 = vmatpush1.bf16.msra.mxu0 %v702
        %736 = vmatprep.subr.bf16.mxu0 %v705
        %737 = vmatpush1.bf16.msra.mxu0 %v704
        %738 = vmatprep.subr.bf16.mxu0 %v707
        %739 = vmatpush1.bf16.msra.mxu0 %v706
        %740 = vmatprep.subr.bf16.mxu0 %v709
        %741 = vmatpush1.bf16.msra.mxu0 %v708
        %742 = vmatprep.subr.bf16.mxu0 %v711
        %743 = vmatpush1.bf16.msra.mxu0 %v710
        %744 = vmatprep.subr.bf16.mxu0 %v713
        %745 = vmatpush1.bf16.msra.mxu0 %v712
        %746 = vmatprep.subr.bf16.mxu0 0
        %747 = vmatpush1.bf16.msra.mxu0 0
        %748 = vmatprep.subr.bf16.mxu0 0
        %749 = vmatpush1.bf16.msra.mxu0 0
        %750 = vmatprep.subr.bf16.mxu0 0
        %751 = vmatpush1.bf16.msra.mxu0 0
        %752 = vmatprep.subr.bf16.mxu0 0
        %753 = vmatpush1.bf16.msra.mxu0 0
        %754 = vmatprep.subr.bf16.mxu0 0
        %755 = vmatpush1.bf16.msra.mxu0 0
        %756 = vmatprep.subr.bf16.mxu0 0
        %757 = vmatpush1.bf16.msra.mxu0 0
        %758 = vmatprep.subr.bf16.mxu0 0
        %759 = vmatpush1.bf16.msra.mxu0 0
        %760 = vmatprep.subr.bf16.mxu0 0
        %761 = vmatpush1.bf16.msra.mxu0 0
        %762 = vmatprep.mubr.bf16.mxu0 0
        %763 = vmatmul.mubr.bf16.gmra.mrb[0].mxu0 %v617
        %v764 = vpop.f32.mrb[0].mxu0
        %v765 = vadd.f32 0.0, %v764
        %v766 = vpop.f32.mrb[0].mxu0
        %v767 = vadd.f32 0.0, %v766
        %v768 = vpop.f32.mrb[0].mxu0
        %v769 = vadd.f32 0.0, %v768
        %v770 = vpop.f32.mrb[0].mxu0
        %v771 = vadd.f32 0.0, %v770
        %772 = vmatprep.mubr.bf16.mxu0 0
        %773 = vmatmul.mubr.bf16.gmra.mrb[0].mxu0 %v618
        %v774 = vpop.f32.mrb[0].mxu0
        %v775 = vadd.f32 0.0, %v774
        %v776 = vpop.f32.mrb[0].mxu0
        %v777 = vadd.f32 0.0, %v776
        %v778 = vpop.f32.mrb[0].mxu0
        %v779 = vadd.f32 0.0, %v778
        %v780 = vpop.f32.mrb[0].mxu0
        %v781 = vadd.f32 0.0, %v780
        %782 = vmatprep.mubr.bf16.mxu0 0
        %783 = vmatmul.mubr.bf16.gmra.mrb[0].mxu0 %v619
        %v784 = vpop.f32.mrb[0].mxu0
        %v785 = vadd.f32 0.0, %v784
        %v786 = vpop.f32.mrb[0].mxu0
        %v787 = vadd.f32 0.0, %v786
        %v788 = vpop.f32.mrb[0].mxu0
        %v789 = vadd.f32 0.0, %v788
        %v790 = vpop.f32.mrb[0].mxu0
        %v791 = vadd.f32 0.0, %v790
        %792 = vmatprep.mubr.bf16.mxu0 0
        %793 = vmatmul.mubr.bf16.gmra.mrb[0].mxu0 %v620
        %v794 = vpop.f32.mrb[0].mxu0
        %v795 = vadd.f32 0.0, %v794
        %v796 = vpop.f32.mrb[0].mxu0
        %v797 = vadd.f32 0.0, %v796
        %v798 = vpop.f32.mrb[0].mxu0
        %v799 = vadd.f32 0.0, %v798
        %v800 = vpop.f32.mrb[0].mxu0
        %v801 = vadd.f32 0.0, %v800
        %802 = vmatprep.mubr.bf16.mxu0 0
        %803 = vmatmul.mubr.bf16.gmra.mrb[0].mxu0 %v621
        %v804 = vpop.f32.mrb[0].mxu0
        %v805 = vadd.f32 0.0, %v804
        %v806 = vpop.f32.mrb[0].mxu0
        %v807 = vadd.f32 0.0, %v806
        %v808 = vpop.f32.mrb[0].mxu0
        %v809 = vadd.f32 0.0, %v808
        %v810 = vpop.f32.mrb[0].mxu0
        %v811 = vadd.f32 0.0, %v810
        %812 = vmatprep.mubr.bf16.mxu0 0
        %813 = vmatmul.mubr.bf16.gmra.mrb[0].mxu0 %v622
        %v814 = vpop.f32.mrb[0].mxu0
        %v815 = vadd.f32 0.0, %v814
        %v816 = vpop.f32.mrb[0].mxu0
        %v817 = vadd.f32 0.0, %v816
        %v818 = vpop.f32.mrb[0].mxu0
        %v819 = vadd.f32 0.0, %v818
        %v820 = vpop.f32.mrb[0].mxu0
        %v821 = vadd.f32 0.0, %v820
        %822 = vmatprep.mubr.bf16.mxu0 0
        %823 = vmatmul.mubr.bf16.gmra.mrb[0].mxu0 %v623
        %v824 = vpop.f32.mrb[0].mxu0
        %v825 = vadd.f32 0.0, %v824
        %v826 = vpop.f32.mrb[0].mxu0
        %v827 = vadd.f32 0.0, %v826
        %v828 = vpop.f32.mrb[0].mxu0
        %v829 = vadd.f32 0.0, %v828
        %v830 = vpop.f32.mrb[0].mxu0
        %v831 = vadd.f32 0.0, %v830
        %832 = vmatprep.mubr.bf16.mxu0 0
        %833 = vmatmul.mubr.bf16.gmra.mrb[0].mxu0 %v624
        %v834 = vpop.f32.mrb[0].mxu0
        %v835 = vadd.f32 0.0, %v834
        %v836 = vpop.f32.mrb[0].mxu0
        %v837 = vadd.f32 0.0, %v836
        %v838 = vpop.f32.mrb[0].mxu0
        %v839 = vadd.f32 0.0, %v838
        %v840 = vpop.f32.mrb[0].mxu0
        %v841 = vadd.f32 0.0, %v840
        %842 = vmatprep.mubr.bf16.mxu0 0
        %843 = vmatmul.mubr.bf16.gmra.mrb[0].mxu0 %v625
        %v844 = vpop.f32.mrb[0].mxu0
        %v845 = vadd.f32 0.0, %v844
        %v846 = vpop.f32.mrb[0].mxu0
        %v847 = vadd.f32 0.0, %v846
        %v848 = vpop.f32.mrb[0].mxu0
        %v849 = vadd.f32 0.0, %v848
        %v850 = vpop.f32.mrb[0].mxu0
        %v851 = vadd.f32 0.0, %v850
        %852 = vmatprep.mubr.bf16.mxu0 0
        %853 = vmatmul.mubr.bf16.gmra.mrb[0].mxu0 %v626
        %v854 = vpop.f32.mrb[0].mxu0
        %v855 = vadd.f32 0.0, %v854
        %v856 = vpop.f32.mrb[0].mxu0
        %v857 = vadd.f32 0.0, %v856
        %v858 = vpop.f32.mrb[0].mxu0
        %v859 = vadd.f32 0.0, %v858
        %v860 = vpop.f32.mrb[0].mxu0
        %v861 = vadd.f32 0.0, %v860
        %862 = vmatprep.mubr.bf16.mxu0 0
        %863 = vmatmul.mubr.bf16.gmra.mrb[0].mxu0 %v627
        %v864 = vpop.f32.mrb[0].mxu0
        %v865 = vadd.f32 0.0, %v864
        %v866 = vpop.f32.mrb[0].mxu0
        %v867 = vadd.f32 0.0, %v866
        %v868 = vpop.f32.mrb[0].mxu0
        %v869 = vadd.f32 0.0, %v868
        %v870 = vpop.f32.mrb[0].mxu0
        %v871 = vadd.f32 0.0, %v870
        %872 = vmatprep.mubr.bf16.mxu0 0
        %873 = vmatmul.mubr.bf16.gmra.mrb[0].mxu0 %v628
        %v874 = vpop.f32.mrb[0].mxu0
        %v875 = vadd.f32 0.0, %v874
        %v876 = vpop.f32.mrb[0].mxu0
        %v877 = vadd.f32 0.0, %v876
        %v878 = vpop.f32.mrb[0].mxu0
        %v879 = vadd.f32 0.0, %v878
        %v880 = vpop.f32.mrb[0].mxu0
        %v881 = vadd.f32 0.0, %v880
        %882 = vmatprep.mubr.bf16.mxu0 0
        %883 = vmatmul.mubr.bf16.gmra.mrb[0].mxu0 %v629
        %v884 = vpop.f32.mrb[0].mxu0
        %v885 = vadd.f32 0.0, %v884
        %v886 = vpop.f32.mrb[0].mxu0
        %v887 = vadd.f32 0.0, %v886
        %v888 = vpop.f32.mrb[0].mxu0
        %v889 = vadd.f32 0.0, %v888
        %v890 = vpop.f32.mrb[0].mxu0
        %v891 = vadd.f32 0.0, %v890
        %892 = vmatprep.mubr.bf16.mxu0 0
        %893 = vmatmul.mubr.bf16.gmra.mrb[0].mxu0 %v630
        %v894 = vpop.f32.mrb[0].mxu0
        %v895 = vadd.f32 0.0, %v894
        %v896 = vpop.f32.mrb[0].mxu0
        %v897 = vadd.f32 0.0, %v896
        %v898 = vpop.f32.mrb[0].mxu0
        %v899 = vadd.f32 0.0, %v898
        %v900 = vpop.f32.mrb[0].mxu0
        %v901 = vadd.f32 0.0, %v900
        %902 = vmatprep.mubr.bf16.mxu0 0
        %903 = vmatmul.mubr.bf16.gmra.mrb[0].mxu0 %v631
        %v904 = vpop.f32.mrb[0].mxu0
        %v905 = vadd.f32 0.0, %v904
        %v906 = vpop.f32.mrb[0].mxu0
        %v907 = vadd.f32 0.0, %v906
        %v908 = vpop.f32.mrb[0].mxu0
        %v909 = vadd.f32 0.0, %v908
        %v910 = vpop.f32.mrb[0].mxu0
        %v911 = vadd.f32 0.0, %v910
        %912 = vmatprep.mubr.bf16.mxu0 0
        %913 = vmatmul.mubr.bf16.gmra.mrb[0].mxu0 %v632
        %v914 = vpop.f32.mrb[0].mxu0
        %v915 = vadd.f32 0.0, %v914
        %v916 = vpop.f32.mrb[0].mxu0
        %v917 = vadd.f32 0.0, %v916
        %v918 = vpop.f32.mrb[0].mxu0
        %v919 = vadd.f32 0.0, %v918
        %v920 = vpop.f32.mrb[0].mxu0
        %v921 = vadd.f32 0.0, %v920
        %922 = vdwg.mxu0
        %v939 = vunpack.c.l.b16 %v569
        %v940 = vunpack.c.h.b16 %v569
        %v941 = vunpack.c.l.b16 %v570
        %v942 = vunpack.c.h.b16 %v570
        %v943 = vunpack.c.l.b16 %v571
        %v944 = vunpack.c.h.b16 %v571
        %v945 = vunpack.c.l.b16 %v572
        %v946 = vunpack.c.h.b16 %v572
        %v947 = vunpack.c.l.b16 %v573
        %v948 = vunpack.c.h.b16 %v573
        %v949 = vunpack.c.l.b16 %v574
        %v950 = vunpack.c.h.b16 %v574
        %v951 = vunpack.c.l.b16 %v575
        %v952 = vunpack.c.h.b16 %v575
        %v953 = vunpack.c.l.b16 %v576
        %v954 = vunpack.c.h.b16 %v576
        %v955 = vunpack.c.l.b16 %v577
        %v956 = vunpack.c.h.b16 %v577
        %v957 = vunpack.c.l.b16 %v578
        %v958 = vunpack.c.h.b16 %v578
        %v959 = vunpack.c.l.b16 %v579
        %v960 = vunpack.c.h.b16 %v579
        %v961 = vunpack.c.l.b16 %v580
        %v962 = vunpack.c.h.b16 %v580
        %v963 = vunpack.c.l.b16 %v581
        %v964 = vunpack.c.h.b16 %v581
        %v965 = vunpack.c.l.b16 %v582
        %v966 = vunpack.c.h.b16 %v582
        %v967 = vunpack.c.l.b16 %v583
        %v968 = vunpack.c.h.b16 %v583
        %v969 = vunpack.c.l.b16 %v584
        %v970 = vunpack.c.h.b16 %v584
        %v971 = vpack.c.b16 %v941, %v939
        %v972 = vpack.c.b16 %v942, %v940
        %v973 = vpack.c.b16 %v945, %v943
        %v974 = vpack.c.b16 %v946, %v944
        %v975 = vpack.c.b16 %v949, %v947
        %v976 = vpack.c.b16 %v950, %v948
        %v977 = vpack.c.b16 %v953, %v951
        %v978 = vpack.c.b16 %v954, %v952
        %v979 = vpack.c.b16 %v957, %v955
        %v980 = vpack.c.b16 %v958, %v956
        %v981 = vpack.c.b16 %v961, %v959
        %v982 = vpack.c.b16 %v962, %v960
        %v983 = vpack.c.b16 %v965, %v963
        %v984 = vpack.c.b16 %v966, %v964
        %v985 = vpack.c.b16 %v969, %v967
        %v986 = vpack.c.b16 %v970, %v968
        %1003 = vmatprep.subr.bf16.mxu0 %v972
        %1004 = vmatpush1.bf16.msra.mxu0 %v971
        %1005 = vmatprep.subr.bf16.mxu0 %v974
        %1006 = vmatpush1.bf16.msra.mxu0 %v973
        %1007 = vmatprep.subr.bf16.mxu0 %v976
        %1008 = vmatpush1.bf16.msra.mxu0 %v975
        %1009 = vmatprep.subr.bf16.mxu0 %v978
        %1010 = vmatpush1.bf16.msra.mxu0 %v977
        %1011 = vmatprep.subr.bf16.mxu0 %v980
        %1012 = vmatpush1.bf16.msra.mxu0 %v979
        %1013 = vmatprep.subr.bf16.mxu0 %v982
        %1014 = vmatpush1.bf16.msra.mxu0 %v981
        %1015 = vmatprep.subr.bf16.mxu0 %v984
        %1016 = vmatpush1.bf16.msra.mxu0 %v983
        %1017 = vmatprep.subr.bf16.mxu0 %v986
        %1018 = vmatpush1.bf16.msra.mxu0 %v985
        %1019 = vmatprep.subr.bf16.mxu0 0
        %1020 = vmatpush1.bf16.msra.mxu0 0
        %1021 = vmatprep.subr.bf16.mxu0 0
        %1022 = vmatpush1.bf16.msra.mxu0 0
        %1023 = vmatprep.subr.bf16.mxu0 0
        %1024 = vmatpush1.bf16.msra.mxu0 0
        %1025 = vmatprep.subr.bf16.mxu0 0
        %1026 = vmatpush1.bf16.msra.mxu0 0
        %1027 = vmatprep.subr.bf16.mxu0 0
        %1028 = vmatpush1.bf16.msra.mxu0 0
        %1029 = vmatprep.subr.bf16.mxu0 0
        %1030 = vmatpush1.bf16.msra.mxu0 0
        %1031 = vmatprep.subr.bf16.mxu0 0
        %1032 = vmatpush1.bf16.msra.mxu0 0
        %1033 = vmatprep.subr.bf16.mxu0 0
        %1034 = vmatpush1.bf16.msra.mxu0 0
        %1035 = vmatprep.mubr.bf16.mxu0 0
        %1036 = vmatmul.mubr.bf16.gmra.mrb[0].mxu0 %v553
        %v1037 = vpop.f32.mrb[0].mxu0
        %v1038 = vadd.f32 %v765, %v1037
        %v1039 = vpop.f32.mrb[0].mxu0
        %v1040 = vadd.f32 %v767, %v1039
        %v1041 = vpop.f32.mrb[0].mxu0
        %v1042 = vadd.f32 %v769, %v1041
        %v1043 = vpop.f32.mrb[0].mxu0
        %v1044 = vadd.f32 %v771, %v1043
        %1045 = vmatprep.mubr.bf16.mxu0 0
        %1046 = vmatmul.mubr.bf16.gmra.mrb[0].mxu0 %v554
        %v1047 = vpop.f32.mrb[0].mxu0
        %v1048 = vadd.f32 %v775, %v1047
        %v1049 = vpop.f32.mrb[0].mxu0
        %v1050 = vadd.f32 %v777, %v1049
        %v1051 = vpop.f32.mrb[0].mxu0
        %v1052 = vadd.f32 %v779, %v1051
        %v1053 = vpop.f32.mrb[0].mxu0
        %v1054 = vadd.f32 %v781, %v1053
        %1055 = vmatprep.mubr.bf16.mxu0 0
        %1056 = vmatmul.mubr.bf16.gmra.mrb[0].mxu0 %v555
        %v1057 = vpop.f32.mrb[0].mxu0
        %v1058 = vadd.f32 %v785, %v1057
        %v1059 = vpop.f32.mrb[0].mxu0
        %v1060 = vadd.f32 %v787, %v1059
        %v1061 = vpop.f32.mrb[0].mxu0
        %v1062 = vadd.f32 %v789, %v1061
        %v1063 = vpop.f32.mrb[0].mxu0
        %v1064 = vadd.f32 %v791, %v1063
        %1065 = vmatprep.mubr.bf16.mxu0 0
        %1066 = vmatmul.mubr.bf16.gmra.mrb[0].mxu0 %v556
        %v1067 = vpop.f32.mrb[0].mxu0
        %v1068 = vadd.f32 %v795, %v1067
        %v1069 = vpop.f32.mrb[0].mxu0
        %v1070 = vadd.f32 %v797, %v1069
        %v1071 = vpop.f32.mrb[0].mxu0
        %v1072 = vadd.f32 %v799, %v1071
        %v1073 = vpop.f32.mrb[0].mxu0
        %v1074 = vadd.f32 %v801, %v1073
        %1075 = vmatprep.mubr.bf16.mxu0 0
        %1076 = vmatmul.mubr.bf16.gmra.mrb[0].mxu0 %v557
        %v1077 = vpop.f32.mrb[0].mxu0
        %v1078 = vadd.f32 %v805, %v1077
        %v1079 = vpop.f32.mrb[0].mxu0
        %v1080 = vadd.f32 %v807, %v1079
        %v1081 = vpop.f32.mrb[0].mxu0
        %v1082 = vadd.f32 %v809, %v1081
        %v1083 = vpop.f32.mrb[0].mxu0
        %v1084 = vadd.f32 %v811, %v1083
        %1085 = vmatprep.mubr.bf16.mxu0 0
        %1086 = vmatmul.mubr.bf16.gmra.mrb[0].mxu0 %v558
        %v1087 = vpop.f32.mrb[0].mxu0
        %v1088 = vadd.f32 %v815, %v1087
        %v1089 = vpop.f32.mrb[0].mxu0
        %v1090 = vadd.f32 %v817, %v1089
        %v1091 = vpop.f32.mrb[0].mxu0
        %v1092 = vadd.f32 %v819, %v1091
        %v1093 = vpop.f32.mrb[0].mxu0
        %v1094 = vadd.f32 %v821, %v1093
        %1095 = vmatprep.mubr.bf16.mxu0 0
        %1096 = vmatmul.mubr.bf16.gmra.mrb[0].mxu0 %v559
        %v1097 = vpop.f32.mrb[0].mxu0
        %v1098 = vadd.f32 %v825, %v1097
        %v1099 = vpop.f32.mrb[0].mxu0
        %v1100 = vadd.f32 %v827, %v1099
        %v1101 = vpop.f32.mrb[0].mxu0
        %v1102 = vadd.f32 %v829, %v1101
        %v1103 = vpop.f32.mrb[0].mxu0
        %v1104 = vadd.f32 %v831, %v1103
        %1105 = vmatprep.mubr.bf16.mxu0 0
        %1106 = vmatmul.mubr.bf16.gmra.mrb[0].mxu0 %v560
        %v1107 = vpop.f32.mrb[0].mxu0
        %v1108 = vadd.f32 %v835, %v1107
        %v1109 = vpop.f32.mrb[0].mxu0
        %v1110 = vadd.f32 %v837, %v1109
        %v1111 = vpop.f32.mrb[0].mxu0
        %v1112 = vadd.f32 %v839, %v1111
        %v1113 = vpop.f32.mrb[0].mxu0
        %v1114 = vadd.f32 %v841, %v1113
        %1115 = vmatprep.mubr.bf16.mxu0 0
        %1116 = vmatmul.mubr.bf16.gmra.mrb[0].mxu0 %v561
        %v1117 = vpop.f32.mrb[0].mxu0
        %v1118 = vadd.f32 %v845, %v1117
        %v1119 = vpop.f32.mrb[0].mxu0
        %v1120 = vadd.f32 %v847, %v1119
        %v1121 = vpop.f32.mrb[0].mxu0
        %v1122 = vadd.f32 %v849, %v1121
        %v1123 = vpop.f32.mrb[0].mxu0
        %v1124 = vadd.f32 %v851, %v1123
        %1125 = vmatprep.mubr.bf16.mxu0 0
        %1126 = vmatmul.mubr.bf16.gmra.mrb[0].mxu0 %v562
        %v1127 = vpop.f32.mrb[0].mxu0
        %v1128 = vadd.f32 %v855, %v1127
        %v1129 = vpop.f32.mrb[0].mxu0
        %v1130 = vadd.f32 %v857, %v1129
        %v1131 = vpop.f32.mrb[0].mxu0
        %v1132 = vadd.f32 %v859, %v1131
        %v1133 = vpop.f32.mrb[0].mxu0
        %v1134 = vadd.f32 %v861, %v1133
        %1135 = vmatprep.mubr.bf16.mxu0 0
        %1136 = vmatmul.mubr.bf16.gmra.mrb[0].mxu0 %v563
        %v1137 = vpop.f32.mrb[0].mxu0
        %v1138 = vadd.f32 %v865, %v1137
        %v1139 = vpop.f32.mrb[0].mxu0
        %v1140 = vadd.f32 %v867, %v1139
        %v1141 = vpop.f32.mrb[0].mxu0
        %v1142 = vadd.f32 %v869, %v1141
        %v1143 = vpop.f32.mrb[0].mxu0
        %v1144 = vadd.f32 %v871, %v1143
        %1145 = vmatprep.mubr.bf16.mxu0 0
        %1146 = vmatmul.mubr.bf16.gmra.mrb[0].mxu0 %v564
        %v1147 = vpop.f32.mrb[0].mxu0
        %v1148 = vadd.f32 %v875, %v1147
        %v1149 = vpop.f32.mrb[0].mxu0
        %v1150 = vadd.f32 %v877, %v1149
        %v1151 = vpop.f32.mrb[0].mxu0
        %v1152 = vadd.f32 %v879, %v1151
        %v1153 = vpop.f32.mrb[0].mxu0
        %v1154 = vadd.f32 %v881, %v1153
        %1155 = vmatprep.mubr.bf16.mxu0 0
        %1156 = vmatmul.mubr.bf16.gmra.mrb[0].mxu0 %v565
        %v1157 = vpop.f32.mrb[0].mxu0
        %v1158 = vadd.f32 %v885, %v1157
        %v1159 = vpop.f32.mrb[0].mxu0
        %v1160 = vadd.f32 %v887, %v1159
        %v1161 = vpop.f32.mrb[0].mxu0
        %v1162 = vadd.f32 %v889, %v1161
        %v1163 = vpop.f32.mrb[0].mxu0
        %v1164 = vadd.f32 %v891, %v1163
        %1165 = vmatprep.mubr.bf16.mxu0 0
        %1166 = vmatmul.mubr.bf16.gmra.mrb[0].mxu0 %v566
        %v1167 = vpop.f32.mrb[0].mxu0
        %v1168 = vadd.f32 %v895, %v1167
        %v1169 = vpop.f32.mrb[0].mxu0
        %v1170 = vadd.f32 %v897, %v1169
        %v1171 = vpop.f32.mrb[0].mxu0
        %v1172 = vadd.f32 %v899, %v1171
        %v1173 = vpop.f32.mrb[0].mxu0
        %v1174 = vadd.f32 %v901, %v1173
        %1175 = vmatprep.mubr.bf16.mxu0 0
        %1176 = vmatmul.mubr.bf16.gmra.mrb[0].mxu0 %v567
        %v1177 = vpop.f32.mrb[0].mxu0
        %v1178 = vadd.f32 %v905, %v1177
        %v1179 = vpop.f32.mrb[0].mxu0
        %v1180 = vadd.f32 %v907, %v1179
        %v1181 = vpop.f32.mrb[0].mxu0
        %v1182 = vadd.f32 %v909, %v1181
        %v1183 = vpop.f32.mrb[0].mxu0
        %v1184 = vadd.f32 %v911, %v1183
        %1185 = vmatprep.mubr.bf16.mxu0 0
        %1186 = vmatmul.mubr.bf16.gmra.mrb[0].mxu0 %v568
        %v1187 = vpop.f32.mrb[0].mxu0
        %v1188 = vadd.f32 %v915, %v1187
        %v1189 = vpop.f32.mrb[0].mxu0
        %v1190 = vadd.f32 %v917, %v1189
        %v1191 = vpop.f32.mrb[0].mxu0
        %v1192 = vadd.f32 %v919, %v1191
        %v1193 = vpop.f32.mrb[0].mxu0
        %v1194 = vadd.f32 %v921, %v1193
        %1195 = vdwg.mxu0
        %v1196 = vld [vmem:[%s519 + $0x2] sm:$0xff]
        %v1197 = vld [vmem:[%s519 + $0xa] sm:$0xff]
        %v1198 = vld [vmem:[%s519 + $0x12] sm:$0xff]
        %v1199 = vld [vmem:[%s519 + $0x1a] sm:$0xff]
        %v1200 = vld [vmem:[%s519 + $0x22] sm:$0xff]
        %v1201 = vld [vmem:[%s519 + $0x2a] sm:$0xff]
        %v1202 = vld [vmem:[%s519 + $0x32] sm:$0xff]
        %v1203 = vld [vmem:[%s519 + $0x3a] sm:$0xff]
        %v1204 = vld [vmem:[%s519 + $0x42] sm:$0xff]
        %v1205 = vld [vmem:[%s519 + $0x4a] sm:$0xff]
        %v1206 = vld [vmem:[%s519 + $0x52] sm:$0xff]
        %v1207 = vld [vmem:[%s519 + $0x5a] sm:$0xff]
        %v1208 = vld [vmem:[%s519 + $0x62] sm:$0xff]
        %v1209 = vld [vmem:[%s519 + $0x6a] sm:$0xff]
        %v1210 = vld [vmem:[%s519 + $0x72] sm:$0xff]
        %v1211 = vld [vmem:[%s519 + $0x7a] sm:$0xff]
        %v1212 = vld [vmem:[%s519 + $0x82] sm:$0xff]
        %v1213 = vld [vmem:[%s519 + $0x8a] sm:$0xff]
        %v1214 = vld [vmem:[%s519 + $0x92] sm:$0xff]
        %v1215 = vld [vmem:[%s519 + $0x9a] sm:$0xff]
        %v1216 = vld [vmem:[%s519 + $0xa2] sm:$0xff]
        %v1217 = vld [vmem:[%s519 + $0xaa] sm:$0xff]
        %v1218 = vld [vmem:[%s519 + $0xb2] sm:$0xff]
        %v1219 = vld [vmem:[%s519 + $0xba] sm:$0xff]
        %v1220 = vld [vmem:[%s519 + $0xc2] sm:$0xff]
        %v1221 = vld [vmem:[%s519 + $0xca] sm:$0xff]
        %v1222 = vld [vmem:[%s519 + $0xd2] sm:$0xff]
        %v1223 = vld [vmem:[%s519 + $0xda] sm:$0xff]
        %v1224 = vld [vmem:[%s519 + $0xe2] sm:$0xff]
        %v1225 = vld [vmem:[%s519 + $0xea] sm:$0xff]
        %v1226 = vld [vmem:[%s519 + $0xf2] sm:$0xff]
        %v1227 = vld [vmem:[%s519 + $0xfa] sm:$0xff]
        %v1228 = vpack.c.bf16 %v1197, %v1196
        %v1229 = vpack.c.bf16 %v1199, %v1198
        %v1230 = vpack.c.bf16 %v1201, %v1200
        %v1231 = vpack.c.bf16 %v1203, %v1202
        %v1232 = vpack.c.bf16 %v1205, %v1204
        %v1233 = vpack.c.bf16 %v1207, %v1206
        %v1234 = vpack.c.bf16 %v1209, %v1208
        %v1235 = vpack.c.bf16 %v1211, %v1210
        %v1236 = vpack.c.bf16 %v1213, %v1212
        %v1237 = vpack.c.bf16 %v1215, %v1214
        %v1238 = vpack.c.bf16 %v1217, %v1216
        %v1239 = vpack.c.bf16 %v1219, %v1218
        %v1240 = vpack.c.bf16 %v1221, %v1220
        %v1241 = vpack.c.bf16 %v1223, %v1222
        %v1242 = vpack.c.bf16 %v1225, %v1224
        %v1243 = vpack.c.bf16 %v1227, %v1226
        %s1244 = scalar_lea.vmem %s1, 256
        %v1245 = vld [vmem:[%s1244] sm:$0xff]
        %v1246 = vld [vmem:[%s1244 + $0x8] sm:$0xff]
        %v1247 = vld [vmem:[%s1244 + $0x10] sm:$0xff]
        %v1248 = vld [vmem:[%s1244 + $0x18] sm:$0xff]
        %v1249 = vld [vmem:[%s1244 + $0x20] sm:$0xff]
        %v1250 = vld [vmem:[%s1244 + $0x28] sm:$0xff]
        %v1251 = vld [vmem:[%s1244 + $0x30] sm:$0xff]
        %v1252 = vld [vmem:[%s1244 + $0x38] sm:$0xff]
        %v1253 = vld [vmem:[%s1244 + $0x40] sm:$0xff]
        %v1254 = vld [vmem:[%s1244 + $0x48] sm:$0xff]
        %v1255 = vld [vmem:[%s1244 + $0x50] sm:$0xff]
        %v1256 = vld [vmem:[%s1244 + $0x58] sm:$0xff]
        %v1257 = vld [vmem:[%s1244 + $0x60] sm:$0xff]
        %v1258 = vld [vmem:[%s1244 + $0x68] sm:$0xff]
        %v1259 = vld [vmem:[%s1244 + $0x70] sm:$0xff]
        %v1260 = vld [vmem:[%s1244 + $0x78] sm:$0xff]
        %v1277 = vunpack.c.l.b16 %v1245
        %v1278 = vunpack.c.h.b16 %v1245
        %v1279 = vunpack.c.l.b16 %v1246
        %v1280 = vunpack.c.h.b16 %v1246
        %v1281 = vunpack.c.l.b16 %v1247
        %v1282 = vunpack.c.h.b16 %v1247
        %v1283 = vunpack.c.l.b16 %v1248
        %v1284 = vunpack.c.h.b16 %v1248
        %v1285 = vunpack.c.l.b16 %v1249
        %v1286 = vunpack.c.h.b16 %v1249
        %v1287 = vunpack.c.l.b16 %v1250
        %v1288 = vunpack.c.h.b16 %v1250
        %v1289 = vunpack.c.l.b16 %v1251
        %v1290 = vunpack.c.h.b16 %v1251
        %v1291 = vunpack.c.l.b16 %v1252
        %v1292 = vunpack.c.h.b16 %v1252
        %v1293 = vunpack.c.l.b16 %v1253
        %v1294 = vunpack.c.h.b16 %v1253
        %v1295 = vunpack.c.l.b16 %v1254
        %v1296 = vunpack.c.h.b16 %v1254
        %v1297 = vunpack.c.l.b16 %v1255
        %v1298 = vunpack.c.h.b16 %v1255
        %v1299 = vunpack.c.l.b16 %v1256
        %v1300 = vunpack.c.h.b16 %v1256
        %v1301 = vunpack.c.l.b16 %v1257
        %v1302 = vunpack.c.h.b16 %v1257
        %v1303 = vunpack.c.l.b16 %v1258
        %v1304 = vunpack.c.h.b16 %v1258
        %v1305 = vunpack.c.l.b16 %v1259
        %v1306 = vunpack.c.h.b16 %v1259
        %v1307 = vunpack.c.l.b16 %v1260
        %v1308 = vunpack.c.h.b16 %v1260
        %v1309 = vpack.c.b16 %v1279, %v1277
        %v1310 = vpack.c.b16 %v1280, %v1278
        %v1311 = vpack.c.b16 %v1283, %v1281
        %v1312 = vpack.c.b16 %v1284, %v1282
        %v1313 = vpack.c.b16 %v1287, %v1285
        %v1314 = vpack.c.b16 %v1288, %v1286
        %v1315 = vpack.c.b16 %v1291, %v1289
        %v1316 = vpack.c.b16 %v1292, %v1290
        %v1317 = vpack.c.b16 %v1295, %v1293
        %v1318 = vpack.c.b16 %v1296, %v1294
        %v1319 = vpack.c.b16 %v1299, %v1297
        %v1320 = vpack.c.b16 %v1300, %v1298
        %v1321 = vpack.c.b16 %v1303, %v1301
        %v1322 = vpack.c.b16 %v1304, %v1302
        %v1323 = vpack.c.b16 %v1307, %v1305
        %v1324 = vpack.c.b16 %v1308, %v1306
        %1341 = vmatprep.subr.bf16.mxu0 %v1310
        %1342 = vmatpush1.bf16.msra.mxu0 %v1309
        %1343 = vmatprep.subr.bf16.mxu0 %v1312
        %1344 = vmatpush1.bf16.msra.mxu0 %v1311
        %1345 = vmatprep.subr.bf16.mxu0 %v1314
        %1346 = vmatpush1.bf16.msra.mxu0 %v1313
        %1347 = vmatprep.subr.bf16.mxu0 %v1316
        %1348 = vmatpush1.bf16.msra.mxu0 %v1315
        %1349 = vmatprep.subr.bf16.mxu0 %v1318
        %1350 = vmatpush1.bf16.msra.mxu0 %v1317
        %1351 = vmatprep.subr.bf16.mxu0 %v1320
        %1352 = vmatpush1.bf16.msra.mxu0 %v1319
        %1353 = vmatprep.subr.bf16.mxu0 %v1322
        %1354 = vmatpush1.bf16.msra.mxu0 %v1321
        %1355 = vmatprep.subr.bf16.mxu0 %v1324
        %1356 = vmatpush1.bf16.msra.mxu0 %v1323
        %1357 = vmatprep.subr.bf16.mxu0 0
        %1358 = vmatpush1.bf16.msra.mxu0 0
        %1359 = vmatprep.subr.bf16.mxu0 0
        %1360 = vmatpush1.bf16.msra.mxu0 0
        %1361 = vmatprep.subr.bf16.mxu0 0
        %1362 = vmatpush1.bf16.msra.mxu0 0
        %1363 = vmatprep.subr.bf16.mxu0 0
        %1364 = vmatpush1.bf16.msra.mxu0 0
        %1365 = vmatprep.subr.bf16.mxu0 0
        %1366 = vmatpush1.bf16.msra.mxu0 0
        %1367 = vmatprep.subr.bf16.mxu0 0
        %1368 = vmatpush1.bf16.msra.mxu0 0
        %1369 = vmatprep.subr.bf16.mxu0 0
        %1370 = vmatpush1.bf16.msra.mxu0 0
        %1371 = vmatprep.subr.bf16.mxu0 0
        %1372 = vmatpush1.bf16.msra.mxu0 0
        %1373 = vmatprep.mubr.bf16.mxu0 0
        %1374 = vmatmul.mubr.bf16.gmra.mrb[0].mxu0 %v1228
        %v1375 = vpop.f32.mrb[0].mxu0
        %v1376 = vadd.f32 0.0, %v1375
        %v1377 = vpop.f32.mrb[0].mxu0
        %v1378 = vadd.f32 0.0, %v1377
        %v1379 = vpop.f32.mrb[0].mxu0
        %v1380 = vadd.f32 0.0, %v1379
        %v1381 = vpop.f32.mrb[0].mxu0
        %v1382 = vadd.f32 0.0, %v1381
        %1383 = vmatprep.mubr.bf16.mxu0 0
        %1384 = vmatmul.mubr.bf16.gmra.mrb[0].mxu0 %v1229
        %v1385 = vpop.f32.mrb[0].mxu0
        %v1386 = vadd.f32 0.0, %v1385
        %v1387 = vpop.f32.mrb[0].mxu0
        %v1388 = vadd.f32 0.0, %v1387
        %v1389 = vpop.f32.mrb[0].mxu0
        %v1390 = vadd.f32 0.0, %v1389
        %v1391 = vpop.f32.mrb[0].mxu0
        %v1392 = vadd.f32 0.0, %v1391
        %1393 = vmatprep.mubr.bf16.mxu0 0
        %1394 = vmatmul.mubr.bf16.gmra.mrb[0].mxu0 %v1230
        %v1395 = vpop.f32.mrb[0].mxu0
        %v1396 = vadd.f32 0.0, %v1395
        %v1397 = vpop.f32.mrb[0].mxu0
        %v1398 = vadd.f32 0.0, %v1397
        %v1399 = vpop.f32.mrb[0].mxu0
        %v1400 = vadd.f32 0.0, %v1399
        %v1401 = vpop.f32.mrb[0].mxu0
        %v1402 = vadd.f32 0.0, %v1401
        %1403 = vmatprep.mubr.bf16.mxu0 0
        %1404 = vmatmul.mubr.bf16.gmra.mrb[0].mxu0 %v1231
        %v1405 = vpop.f32.mrb[0].mxu0
        %v1406 = vadd.f32 0.0, %v1405
        %v1407 = vpop.f32.mrb[0].mxu0
        %v1408 = vadd.f32 0.0, %v1407
        %v1409 = vpop.f32.mrb[0].mxu0
        %v1410 = vadd.f32 0.0, %v1409
        %v1411 = vpop.f32.mrb[0].mxu0
        %v1412 = vadd.f32 0.0, %v1411
        %1413 = vmatprep.mubr.bf16.mxu0 0
        %1414 = vmatmul.mubr.bf16.gmra.mrb[0].mxu0 %v1232
        %v1415 = vpop.f32.mrb[0].mxu0
        %v1416 = vadd.f32 0.0, %v1415
        %v1417 = vpop.f32.mrb[0].mxu0
        %v1418 = vadd.f32 0.0, %v1417
        %v1419 = vpop.f32.mrb[0].mxu0
        %v1420 = vadd.f32 0.0, %v1419
        %v1421 = vpop.f32.mrb[0].mxu0
        %v1422 = vadd.f32 0.0, %v1421
        %1423 = vmatprep.mubr.bf16.mxu0 0
        %1424 = vmatmul.mubr.bf16.gmra.mrb[0].mxu0 %v1233
        %v1425 = vpop.f32.mrb[0].mxu0
        %v1426 = vadd.f32 0.0, %v1425
        %v1427 = vpop.f32.mrb[0].mxu0
        %v1428 = vadd.f32 0.0, %v1427
        %v1429 = vpop.f32.mrb[0].mxu0
        %v1430 = vadd.f32 0.0, %v1429
        %v1431 = vpop.f32.mrb[0].mxu0
        %v1432 = vadd.f32 0.0, %v1431
        %1433 = vmatprep.mubr.bf16.mxu0 0
        %1434 = vmatmul.mubr.bf16.gmra.mrb[0].mxu0 %v1234
        %v1435 = vpop.f32.mrb[0].mxu0
        %v1436 = vadd.f32 0.0, %v1435
        %v1437 = vpop.f32.mrb[0].mxu0
        %v1438 = vadd.f32 0.0, %v1437
        %v1439 = vpop.f32.mrb[0].mxu0
        %v1440 = vadd.f32 0.0, %v1439
        %v1441 = vpop.f32.mrb[0].mxu0
        %v1442 = vadd.f32 0.0, %v1441
        %1443 = vmatprep.mubr.bf16.mxu0 0
        %1444 = vmatmul.mubr.bf16.gmra.mrb[0].mxu0 %v1235
        %v1445 = vpop.f32.mrb[0].mxu0
        %v1446 = vadd.f32 0.0, %v1445
        %v1447 = vpop.f32.mrb[0].mxu0
        %v1448 = vadd.f32 0.0, %v1447
        %v1449 = vpop.f32.mrb[0].mxu0
        %v1450 = vadd.f32 0.0, %v1449
        %v1451 = vpop.f32.mrb[0].mxu0
        %v1452 = vadd.f32 0.0, %v1451
        %1453 = vmatprep.mubr.bf16.mxu0 0
        %1454 = vmatmul.mubr.bf16.gmra.mrb[0].mxu0 %v1236
        %v1455 = vpop.f32.mrb[0].mxu0
        %v1456 = vadd.f32 0.0, %v1455
        %v1457 = vpop.f32.mrb[0].mxu0
        %v1458 = vadd.f32 0.0, %v1457
        %v1459 = vpop.f32.mrb[0].mxu0
        %v1460 = vadd.f32 0.0, %v1459
        %v1461 = vpop.f32.mrb[0].mxu0
        %v1462 = vadd.f32 0.0, %v1461
        %1463 = vmatprep.mubr.bf16.mxu0 0
        %1464 = vmatmul.mubr.bf16.gmra.mrb[0].mxu0 %v1237
        %v1465 = vpop.f32.mrb[0].mxu0
        %v1466 = vadd.f32 0.0, %v1465
        %v1467 = vpop.f32.mrb[0].mxu0
        %v1468 = vadd.f32 0.0, %v1467
        %v1469 = vpop.f32.mrb[0].mxu0
        %v1470 = vadd.f32 0.0, %v1469
        %v1471 = vpop.f32.mrb[0].mxu0
        %v1472 = vadd.f32 0.0, %v1471
        %1473 = vmatprep.mubr.bf16.mxu0 0
        %1474 = vmatmul.mubr.bf16.gmra.mrb[0].mxu0 %v1238
        %v1475 = vpop.f32.mrb[0].mxu0
        %v1476 = vadd.f32 0.0, %v1475
        %v1477 = vpop.f32.mrb[0].mxu0
        %v1478 = vadd.f32 0.0, %v1477
        %v1479 = vpop.f32.mrb[0].mxu0
        %v1480 = vadd.f32 0.0, %v1479
        %v1481 = vpop.f32.mrb[0].mxu0
        %v1482 = vadd.f32 0.0, %v1481
        %1483 = vmatprep.mubr.bf16.mxu0 0
        %1484 = vmatmul.mubr.bf16.gmra.mrb[0].mxu0 %v1239
        %v1485 = vpop.f32.mrb[0].mxu0
        %v1486 = vadd.f32 0.0, %v1485
        %v1487 = vpop.f32.mrb[0].mxu0
        %v1488 = vadd.f32 0.0, %v1487
        %v1489 = vpop.f32.mrb[0].mxu0
        %v1490 = vadd.f32 0.0, %v1489
        %v1491 = vpop.f32.mrb[0].mxu0
        %v1492 = vadd.f32 0.0, %v1491
        %1493 = vmatprep.mubr.bf16.mxu0 0
        %1494 = vmatmul.mubr.bf16.gmra.mrb[0].mxu0 %v1240
        %v1495 = vpop.f32.mrb[0].mxu0
        %v1496 = vadd.f32 0.0, %v1495
        %v1497 = vpop.f32.mrb[0].mxu0
        %v1498 = vadd.f32 0.0, %v1497
        %v1499 = vpop.f32.mrb[0].mxu0
        %v1500 = vadd.f32 0.0, %v1499
        %v1501 = vpop.f32.mrb[0].mxu0
        %v1502 = vadd.f32 0.0, %v1501
        %1503 = vmatprep.mubr.bf16.mxu0 0
        %1504 = vmatmul.mubr.bf16.gmra.mrb[0].mxu0 %v1241
        %v1505 = vpop.f32.mrb[0].mxu0
        %v1506 = vadd.f32 0.0, %v1505
        %v1507 = vpop.f32.mrb[0].mxu0
        %v1508 = vadd.f32 0.0, %v1507
        %v1509 = vpop.f32.mrb[0].mxu0
        %v1510 = vadd.f32 0.0, %v1509
        %v1511 = vpop.f32.mrb[0].mxu0
        %v1512 = vadd.f32 0.0, %v1511
        %1513 = vmatprep.mubr.bf16.mxu0 0
        %1514 = vmatmul.mubr.bf16.gmra.mrb[0].mxu0 %v1242
        %v1515 = vpop.f32.mrb[0].mxu0
        %v1516 = vadd.f32 0.0, %v1515
        %v1517 = vpop.f32.mrb[0].mxu0
        %v1518 = vadd.f32 0.0, %v1517
        %v1519 = vpop.f32.mrb[0].mxu0
        %v1520 = vadd.f32 0.0, %v1519
        %v1521 = vpop.f32.mrb[0].mxu0
        %v1522 = vadd.f32 0.0, %v1521
        %1523 = vmatprep.mubr.bf16.mxu0 0
        %1524 = vmatmul.mubr.bf16.gmra.mrb[0].mxu0 %v1243
        %v1525 = vpop.f32.mrb[0].mxu0
        %v1526 = vadd.f32 0.0, %v1525
        %v1527 = vpop.f32.mrb[0].mxu0
        %v1528 = vadd.f32 0.0, %v1527
        %v1529 = vpop.f32.mrb[0].mxu0
        %v1530 = vadd.f32 0.0, %v1529
        %v1531 = vpop.f32.mrb[0].mxu0
        %v1532 = vadd.f32 0.0, %v1531
        %1533 = vdwg.mxu0
        %v1534 = vadd.f32 %v1038, %v1376
        %v1535 = vadd.f32 %v1040, %v1378
        %v1536 = vadd.f32 %v1042, %v1380
        %v1537 = vadd.f32 %v1044, %v1382
        %v1538 = vadd.f32 %v1048, %v1386
        %v1539 = vadd.f32 %v1050, %v1388
        %v1540 = vadd.f32 %v1052, %v1390
        %v1541 = vadd.f32 %v1054, %v1392
        %v1542 = vadd.f32 %v1058, %v1396
        %v1543 = vadd.f32 %v1060, %v1398
        %v1544 = vadd.f32 %v1062, %v1400
        %v1545 = vadd.f32 %v1064, %v1402
        %v1546 = vadd.f32 %v1068, %v1406
        %v1547 = vadd.f32 %v1070, %v1408
        %v1548 = vadd.f32 %v1072, %v1410
        %v1549 = vadd.f32 %v1074, %v1412
        %v1550 = vadd.f32 %v1078, %v1416
        %v1551 = vadd.f32 %v1080, %v1418
        %v1552 = vadd.f32 %v1082, %v1420
        %v1553 = vadd.f32 %v1084, %v1422
        %v1554 = vadd.f32 %v1088, %v1426
        %v1555 = vadd.f32 %v1090, %v1428
        %v1556 = vadd.f32 %v1092, %v1430
        %v1557 = vadd.f32 %v1094, %v1432
        %v1558 = vadd.f32 %v1098, %v1436
        %v1559 = vadd.f32 %v1100, %v1438
        %v1560 = vadd.f32 %v1102, %v1440
        %v1561 = vadd.f32 %v1104, %v1442
        %v1562 = vadd.f32 %v1108, %v1446
        %v1563 = vadd.f32 %v1110, %v1448
        %v1564 = vadd.f32 %v1112, %v1450
        %v1565 = vadd.f32 %v1114, %v1452
        %v1566 = vadd.f32 %v1118, %v1456
        %v1567 = vadd.f32 %v1120, %v1458
        %v1568 = vadd.f32 %v1122, %v1460
        %v1569 = vadd.f32 %v1124, %v1462
        %v1570 = vadd.f32 %v1128, %v1466
        %v1571 = vadd.f32 %v1130, %v1468
        %v1572 = vadd.f32 %v1132, %v1470
        %v1573 = vadd.f32 %v1134, %v1472
        %v1574 = vadd.f32 %v1138, %v1476
        %v1575 = vadd.f32 %v1140, %v1478
        %v1576 = vadd.f32 %v1142, %v1480
        %v1577 = vadd.f32 %v1144, %v1482
        %v1578 = vadd.f32 %v1148, %v1486
        %v1579 = vadd.f32 %v1150, %v1488
        %v1580 = vadd.f32 %v1152, %v1490
        %v1581 = vadd.f32 %v1154, %v1492
        %v1582 = vadd.f32 %v1158, %v1496
        %v1583 = vadd.f32 %v1160, %v1498
        %v1584 = vadd.f32 %v1162, %v1500
        %v1585 = vadd.f32 %v1164, %v1502
        %v1586 = vadd.f32 %v1168, %v1506
        %v1587 = vadd.f32 %v1170, %v1508
        %v1588 = vadd.f32 %v1172, %v1510
        %v1589 = vadd.f32 %v1174, %v1512
        %v1590 = vadd.f32 %v1178, %v1516
        %v1591 = vadd.f32 %v1180, %v1518
        %v1592 = vadd.f32 %v1182, %v1520
        %v1593 = vadd.f32 %v1184, %v1522
        %v1594 = vadd.f32 %v1188, %v1526
        %v1595 = vadd.f32 %v1190, %v1528
        %v1596 = vadd.f32 %v1192, %v1530
        %v1597 = vadd.f32 %v1194, %v1532
        %v1598 = vld [vmem:[%s2] sm:$0x3]
        %v1600 = vlaneseq
        %v1601 = vshrl.u32 %v1600, 7
        %v1602 = vsub.s32 0, %v1601
        %v1603 = vrot.slane %v1598, %v1602
        %v1604 = vlaneseq
        %v1605 = vshrl.u32 %v1604, 7
        %v1606 = vsub.s32 1, %v1605
        %v1607 = vrot.slane %v1598, %v1606
        %v1610 = vadd.f32 %v1534, %v1603
        %v1611 = vadd.f32 %v1535, %v1607
        %v1612 = vadd.f32 %v1536, %v1603
        %v1613 = vadd.f32 %v1537, %v1607
        %v1614 = vadd.f32 %v1538, %v1603
        %v1615 = vadd.f32 %v1539, %v1607
        %v1616 = vadd.f32 %v1540, %v1603
        %v1617 = vadd.f32 %v1541, %v1607
        %v1618 = vadd.f32 %v1542, %v1603
        %v1619 = vadd.f32 %v1543, %v1607
        %v1620 = vadd.f32 %v1544, %v1603
        %v1621 = vadd.f32 %v1545, %v1607
        %v1622 = vadd.f32 %v1546, %v1603
        %v1623 = vadd.f32 %v1547, %v1607
        %v1624 = vadd.f32 %v1548, %v1603
        %v1625 = vadd.f32 %v1549, %v1607
        %v1626 = vadd.f32 %v1550, %v1603
        %v1627 = vadd.f32 %v1551, %v1607
        %v1628 = vadd.f32 %v1552, %v1603
        %v1629 = vadd.f32 %v1553, %v1607
        %v1630 = vadd.f32 %v1554, %v1603
        %v1631 = vadd.f32 %v1555, %v1607
        %v1632 = vadd.f32 %v1556, %v1603
        %v1633 = vadd.f32 %v1557, %v1607
        %v1634 = vadd.f32 %v1558, %v1603
        %v1635 = vadd.f32 %v1559, %v1607
        %v1636 = vadd.f32 %v1560, %v1603
        %v1637 = vadd.f32 %v1561, %v1607
        %v1638 = vadd.f32 %v1562, %v1603
        %v1639 = vadd.f32 %v1563, %v1607
        %v1640 = vadd.f32 %v1564, %v1603
        %v1641 = vadd.f32 %v1565, %v1607
        %v1642 = vadd.f32 %v1566, %v1603
        %v1643 = vadd.f32 %v1567, %v1607
        %v1644 = vadd.f32 %v1568, %v1603
        %v1645 = vadd.f32 %v1569, %v1607
        %v1646 = vadd.f32 %v1570, %v1603
        %v1647 = vadd.f32 %v1571, %v1607
        %v1648 = vadd.f32 %v1572, %v1603
        %v1649 = vadd.f32 %v1573, %v1607
        %v1650 = vadd.f32 %v1574, %v1603
        %v1651 = vadd.f32 %v1575, %v1607
        %v1652 = vadd.f32 %v1576, %v1603
        %v1653 = vadd.f32 %v1577, %v1607
        %v1654 = vadd.f32 %v1578, %v1603
        %v1655 = vadd.f32 %v1579, %v1607
        %v1656 = vadd.f32 %v1580, %v1603
        %v1657 = vadd.f32 %v1581, %v1607
        %v1658 = vadd.f32 %v1582, %v1603
        %v1659 = vadd.f32 %v1583, %v1607
        %v1660 = vadd.f32 %v1584, %v1603
        %v1661 = vadd.f32 %v1585, %v1607
        %v1662 = vadd.f32 %v1586, %v1603
        %v1663 = vadd.f32 %v1587, %v1607
        %v1664 = vadd.f32 %v1588, %v1603
        %v1665 = vadd.f32 %v1589, %v1607
        %v1666 = vadd.f32 %v1590, %v1603
        %v1667 = vadd.f32 %v1591, %v1607
        %v1668 = vadd.f32 %v1592, %v1603
        %v1669 = vadd.f32 %v1593, %v1607
        %v1670 = vadd.f32 %v1594, %v1603
        %v1671 = vadd.f32 %v1595, %v1607
        %v1672 = vadd.f32 %v1596, %v1603
        %v1673 = vadd.f32 %v1597, %v1607
        %v1674 = vmax.f32 %v1610, 0.0
        %v1675 = vmax.f32 %v1611, 0.0
        %v1676 = vmax.f32 %v1612, 0.0
        %v1677 = vmax.f32 %v1613, 0.0
        %v1678 = vmax.f32 %v1614, 0.0
        %v1679 = vmax.f32 %v1615, 0.0
        %v1680 = vmax.f32 %v1616, 0.0
        %v1681 = vmax.f32 %v1617, 0.0
        %v1682 = vmax.f32 %v1618, 0.0
        %v1683 = vmax.f32 %v1619, 0.0
        %v1684 = vmax.f32 %v1620, 0.0
        %v1685 = vmax.f32 %v1621, 0.0
        %v1686 = vmax.f32 %v1622, 0.0
        %v1687 = vmax.f32 %v1623, 0.0
        %v1688 = vmax.f32 %v1624, 0.0
        %v1689 = vmax.f32 %v1625, 0.0
        %v1690 = vmax.f32 %v1626, 0.0
        %v1691 = vmax.f32 %v1627, 0.0
        %v1692 = vmax.f32 %v1628, 0.0
        %v1693 = vmax.f32 %v1629, 0.0
        %v1694 = vmax.f32 %v1630, 0.0
        %v1695 = vmax.f32 %v1631, 0.0
        %v1696 = vmax.f32 %v1632, 0.0
        %v1697 = vmax.f32 %v1633, 0.0
        %v1698 = vmax.f32 %v1634, 0.0
        %v1699 = vmax.f32 %v1635, 0.0
        %v1700 = vmax.f32 %v1636, 0.0
        %v1701 = vmax.f32 %v1637, 0.0
        %v1702 = vmax.f32 %v1638, 0.0
        %v1703 = vmax.f32 %v1639, 0.0
        %v1704 = vmax.f32 %v1640, 0.0
        %v1705 = vmax.f32 %v1641, 0.0
        %v1706 = vmax.f32 %v1642, 0.0
        %v1707 = vmax.f32 %v1643, 0.0
        %v1708 = vmax.f32 %v1644, 0.0
        %v1709 = vmax.f32 %v1645, 0.0
        %v1710 = vmax.f32 %v1646, 0.0
        %v1711 = vmax.f32 %v1647, 0.0
        %v1712 = vmax.f32 %v1648, 0.0
        %v1713 = vmax.f32 %v1649, 0.0
        %v1714 = vmax.f32 %v1650, 0.0
        %v1715 = vmax.f32 %v1651, 0.0
        %v1716 = vmax.f32 %v1652, 0.0
        %v1717 = vmax.f32 %v1653, 0.0
        %v1718 = vmax.f32 %v1654, 0.0
        %v1719 = vmax.f32 %v1655, 0.0
        %v1720 = vmax.f32 %v1656, 0.0
        %v1721 = vmax.f32 %v1657, 0.0
        %v1722 = vmax.f32 %v1658, 0.0
        %v1723 = vmax.f32 %v1659, 0.0
        %v1724 = vmax.f32 %v1660, 0.0
        %v1725 = vmax.f32 %v1661, 0.0
        %v1726 = vmax.f32 %v1662, 0.0
        %v1727 = vmax.f32 %v1663, 0.0
        %v1728 = vmax.f32 %v1664, 0.0
        %v1729 = vmax.f32 %v1665, 0.0
        %v1730 = vmax.f32 %v1666, 0.0
        %v1731 = vmax.f32 %v1667, 0.0
        %v1732 = vmax.f32 %v1668, 0.0
        %v1733 = vmax.f32 %v1669, 0.0
        %v1734 = vmax.f32 %v1670, 0.0
        %v1735 = vmax.f32 %v1671, 0.0
        %v1736 = vmax.f32 %v1672, 0.0
        %v1737 = vmax.f32 %v1673, 0.0
        %v1738 = vpack.c.bf16 %v1676, %v1674
        %v1739 = vpack.c.bf16 %v1677, %v1675
        %v1740 = vpack.c.bf16 %v1680, %v1678
        %v1741 = vpack.c.bf16 %v1681, %v1679
        %v1742 = vpack.c.bf16 %v1684, %v1682
        %v1743 = vpack.c.bf16 %v1685, %v1683
        %v1744 = vpack.c.bf16 %v1688, %v1686
        %v1745 = vpack.c.bf16 %v1689, %v1687
        %v1746 = vpack.c.bf16 %v1692, %v1690
        %v1747 = vpack.c.bf16 %v1693, %v1691
        %v1748 = vpack.c.bf16 %v1696, %v1694
        %v1749 = vpack.c.bf16 %v1697, %v1695
        %v1750 = vpack.c.bf16 %v1700, %v1698
        %v1751 = vpack.c.bf16 %v1701, %v1699
        %v1752 = vpack.c.bf16 %v1704, %v1702
        %v1753 = vpack.c.bf16 %v1705, %v1703
        %v1754 = vpack.c.bf16 %v1708, %v1706
        %v1755 = vpack.c.bf16 %v1709, %v1707
        %v1756 = vpack.c.bf16 %v1712, %v1710
        %v1757 = vpack.c.bf16 %v1713, %v1711
        %v1758 = vpack.c.bf16 %v1716, %v1714
        %v1759 = vpack.c.bf16 %v1717, %v1715
        %v1760 = vpack.c.bf16 %v1720, %v1718
        %v1761 = vpack.c.bf16 %v1721, %v1719
        %v1762 = vpack.c.bf16 %v1724, %v1722
        %v1763 = vpack.c.bf16 %v1725, %v1723
        %v1764 = vpack.c.bf16 %v1728, %v1726
        %v1765 = vpack.c.bf16 %v1729, %v1727
        %v1766 = vpack.c.bf16 %v1732, %v1730
        %v1767 = vpack.c.bf16 %v1733, %v1731
        %v1768 = vpack.c.bf16 %v1736, %v1734
        %v1769 = vpack.c.bf16 %v1737, %v1735
        %v1770 = vld [vmem:[%s3] sm:$0xf]
        %v1771 = vld [vmem:[%s3 + $0x4] sm:$0xf]
        %v1772 = vld [vmem:[%s3 + $0x8] sm:$0xf]
        %v1773 = vld [vmem:[%s3 + $0xc] sm:$0xf]
        %v1774 = vld [vmem:[%s3 + $0x10] sm:$0xf]
        %v1775 = vld [vmem:[%s3 + $0x14] sm:$0xf]
        %v1776 = vld [vmem:[%s3 + $0x18] sm:$0xf]
        %v1777 = vld [vmem:[%s3 + $0x1c] sm:$0xf]
        %v1778 = vld [vmem:[%s3 + $0x20] sm:$0xf]
        %v1779 = vld [vmem:[%s3 + $0x24] sm:$0xf]
        %v1780 = vld [vmem:[%s3 + $0x28] sm:$0xf]
        %v1781 = vld [vmem:[%s3 + $0x2c] sm:$0xf]
        %v1782 = vld [vmem:[%s3 + $0x30] sm:$0xf]
        %v1783 = vld [vmem:[%s3 + $0x34] sm:$0xf]
        %v1784 = vld [vmem:[%s3 + $0x38] sm:$0xf]
        %v1785 = vld [vmem:[%s3 + $0x3c] sm:$0xf]
        %v1786 = vld [vmem:[%s3 + $0x40] sm:$0xf]
        %v1787 = vld [vmem:[%s3 + $0x44] sm:$0xf]
        %v1788 = vld [vmem:[%s3 + $0x48] sm:$0xf]
        %v1789 = vld [vmem:[%s3 + $0x4c] sm:$0xf]
        %v1790 = vld [vmem:[%s3 + $0x50] sm:$0xf]
        %v1791 = vld [vmem:[%s3 + $0x54] sm:$0xf]
        %v1792 = vld [vmem:[%s3 + $0x58] sm:$0xf]
        %v1793 = vld [vmem:[%s3 + $0x5c] sm:$0xf]
        %v1794 = vld [vmem:[%s3 + $0x60] sm:$0xf]
        %v1795 = vld [vmem:[%s3 + $0x64] sm:$0xf]
        %v1796 = vld [vmem:[%s3 + $0x68] sm:$0xf]
        %v1797 = vld [vmem:[%s3 + $0x6c] sm:$0xf]
        %v1826 = vunpack.c.l.b16 %v1770
        %v1827 = vunpack.c.l.b16 %v1771
        %v1828 = vunpack.c.l.b16 %v1772
        %v1829 = vunpack.c.l.b16 %v1773
        %v1830 = vunpack.c.l.b16 %v1774
        %v1831 = vunpack.c.l.b16 %v1775
        %v1832 = vunpack.c.l.b16 %v1776
        %v1833 = vunpack.c.l.b16 %v1777
        %v1834 = vunpack.c.l.b16 %v1778
        %v1835 = vunpack.c.l.b16 %v1779
        %v1836 = vunpack.c.l.b16 %v1780
        %v1837 = vunpack.c.l.b16 %v1781
        %v1838 = vunpack.c.l.b16 %v1782
        %v1839 = vunpack.c.l.b16 %v1783
        %v1840 = vunpack.c.l.b16 %v1784
        %v1841 = vunpack.c.l.b16 %v1785
        %v1842 = vunpack.c.l.b16 %v1786
        %v1843 = vunpack.c.l.b16 %v1787
        %v1844 = vunpack.c.l.b16 %v1788
        %v1845 = vunpack.c.l.b16 %v1789
        %v1846 = vunpack.c.l.b16 %v1790
        %v1847 = vunpack.c.l.b16 %v1791
        %v1848 = vunpack.c.l.b16 %v1792
        %v1849 = vunpack.c.l.b16 %v1793
        %v1850 = vunpack.c.l.b16 %v1794
        %v1851 = vunpack.c.l.b16 %v1795
        %v1852 = vunpack.c.l.b16 %v1796
        %v1853 = vunpack.c.l.b16 %v1797
        %v1854 = vpack.c.b16 %v1827, %v1826
        %v1855 = vpack.c.b16 %v1829, %v1828
        %v1856 = vpack.c.b16 %v1831, %v1830
        %v1857 = vpack.c.b16 %v1833, %v1832
        %v1858 = vpack.c.b16 %v1835, %v1834
        %v1859 = vpack.c.b16 %v1837, %v1836
        %v1860 = vpack.c.b16 %v1839, %v1838
        %v1861 = vpack.c.b16 %v1841, %v1840
        %v1862 = vpack.c.b16 %v1843, %v1842
        %v1863 = vpack.c.b16 %v1845, %v1844
        %v1864 = vpack.c.b16 %v1847, %v1846
        %v1865 = vpack.c.b16 %v1849, %v1848
        %v1866 = vpack.c.b16 %v1851, %v1850
        %v1867 = vpack.c.b16 %v1853, %v1852
        %vm1882 = vcmask 785408
        %v1884 = vsel %vm1882, %v1739, 0
        %v1887 = vsel %vm1882, %v1741, 0
        %v1890 = vsel %vm1882, %v1743, 0
        %v1893 = vsel %vm1882, %v1745, 0
        %v1896 = vsel %vm1882, %v1747, 0
        %v1899 = vsel %vm1882, %v1749, 0
        %v1902 = vsel %vm1882, %v1751, 0
        %v1905 = vsel %vm1882, %v1753, 0
        %v1908 = vsel %vm1882, %v1755, 0
        %v1911 = vsel %vm1882, %v1757, 0
        %v1914 = vsel %vm1882, %v1759, 0
        %v1917 = vsel %vm1882, %v1761, 0
        %v1920 = vsel %vm1882, %v1763, 0
        %v1923 = vsel %vm1882, %v1765, 0
        %v1926 = vsel %vm1882, %v1767, 0
        %v1929 = vsel %vm1882, %v1769, 0
        %1931 = vmatprep.subr.bf16.mxu0 0
        %1932 = vmatpush1.bf16.msra.mxu0 %v1854
        %1933 = vmatprep.subr.bf16.mxu0 0
        %1934 = vmatpush1.bf16.msra.mxu0 %v1855
        %1935 = vmatprep.subr.bf16.mxu0 0
        %1936 = vmatpush1.bf16.msra.mxu0 %v1856
        %1937 = vmatprep.subr.bf16.mxu0 0
        %1938 = vmatpush1.bf16.msra.mxu0 %v1857
        %1939 = vmatprep.subr.bf16.mxu0 0
        %1940 = vmatpush1.bf16.msra.mxu0 %v1858
        %1941 = vmatprep.subr.bf16.mxu0 0
        %1942 = vmatpush1.bf16.msra.mxu0 %v1859
        %1943 = vmatprep.subr.bf16.mxu0 0
        %1944 = vmatpush1.bf16.msra.mxu0 %v1860
        %1945 = vmatprep.subr.bf16.mxu0 0
        %1946 = vmatpush1.bf16.msra.mxu0 %v1861
        %1947 = vmatprep.subr.bf16.mxu0 0
        %1948 = vmatpush1.bf16.msra.mxu0 %v1862
        %1949 = vmatprep.subr.bf16.mxu0 0
        %1950 = vmatpush1.bf16.msra.mxu0 %v1863
        %1951 = vmatprep.subr.bf16.mxu0 0
        %1952 = vmatpush1.bf16.msra.mxu0 %v1864
        %1953 = vmatprep.subr.bf16.mxu0 0
        %1954 = vmatpush1.bf16.msra.mxu0 %v1865
        %1955 = vmatprep.subr.bf16.mxu0 0
        %1956 = vmatpush1.bf16.msra.mxu0 %v1866
        %1957 = vmatprep.subr.bf16.mxu0 0
        %1958 = vmatpush1.bf16.msra.mxu0 %v1867
        %1959 = vmatprep.subr.bf16.mxu0 0
        %1960 = vmatpush1.bf16.msra.mxu0 0
        %1961 = vmatprep.subr.bf16.mxu0 0
        %1962 = vmatpush1.bf16.msra.mxu0 0
        %1963 = vmatprep.mubr.bf16.mxu0 %v1884
        %1964 = vmatmul.mubr.bf16.gmra.mrb[0].mxu0 %v1738
        %v1965 = vpop.f32.mrb[0].mxu0
        %v1966 = vadd.f32 0.0, %v1965
        %v1967 = vpop.f32.mrb[0].mxu0
        %v1968 = vpop.f32.mrb[0].mxu0
        %v1969 = vadd.f32 0.0, %v1968
        %v1970 = vpop.f32.mrb[0].mxu0
        %1971 = vmatprep.mubr.bf16.mxu0 %v1887
        %1972 = vmatmul.mubr.bf16.gmra.mrb[0].mxu0 %v1740
        %v1973 = vpop.f32.mrb[0].mxu0
        %v1974 = vadd.f32 0.0, %v1973
        %v1975 = vpop.f32.mrb[0].mxu0
        %v1976 = vpop.f32.mrb[0].mxu0
        %v1977 = vadd.f32 0.0, %v1976
        %v1978 = vpop.f32.mrb[0].mxu0
        %1979 = vmatprep.mubr.bf16.mxu0 %v1890
        %1980 = vmatmul.mubr.bf16.gmra.mrb[0].mxu0 %v1742
        %v1981 = vpop.f32.mrb[0].mxu0
        %v1982 = vadd.f32 0.0, %v1981
        %v1983 = vpop.f32.mrb[0].mxu0
        %v1984 = vpop.f32.mrb[0].mxu0
        %v1985 = vadd.f32 0.0, %v1984
        %v1986 = vpop.f32.mrb[0].mxu0
        %1987 = vmatprep.mubr.bf16.mxu0 %v1893
        %1988 = vmatmul.mubr.bf16.gmra.mrb[0].mxu0 %v1744
        %v1989 = vpop.f32.mrb[0].mxu0
        %v1990 = vadd.f32 0.0, %v1989
        %v1991 = vpop.f32.mrb[0].mxu0
        %v1992 = vpop.f32.mrb[0].mxu0
        %v1993 = vadd.f32 0.0, %v1992
        %v1994 = vpop.f32.mrb[0].mxu0
        %1995 = vmatprep.mubr.bf16.mxu0 %v1896
        %1996 = vmatmul.mubr.bf16.gmra.mrb[0].mxu0 %v1746
        %v1997 = vpop.f32.mrb[0].mxu0
        %v1998 = vadd.f32 0.0, %v1997
        %v1999 = vpop.f32.mrb[0].mxu0
        %v2000 = vpop.f32.mrb[0].mxu0
        %v2001 = vadd.f32 0.0, %v2000
        %v2002 = vpop.f32.mrb[0].mxu0
        %2003 = vmatprep.mubr.bf16.mxu0 %v1899
        %2004 = vmatmul.mubr.bf16.gmra.mrb[0].mxu0 %v1748
        %v2005 = vpop.f32.mrb[0].mxu0
        %v2006 = vadd.f32 0.0, %v2005
        %v2007 = vpop.f32.mrb[0].mxu0
        %v2008 = vpop.f32.mrb[0].mxu0
        %v2009 = vadd.f32 0.0, %v2008
        %v2010 = vpop.f32.mrb[0].mxu0
        %2011 = vmatprep.mubr.bf16.mxu0 %v1902
        %2012 = vmatmul.mubr.bf16.gmra.mrb[0].mxu0 %v1750
        %v2013 = vpop.f32.mrb[0].mxu0
        %v2014 = vadd.f32 0.0, %v2013
        %v2015 = vpop.f32.mrb[0].mxu0
        %v2016 = vpop.f32.mrb[0].mxu0
        %v2017 = vadd.f32 0.0, %v2016
        %v2018 = vpop.f32.mrb[0].mxu0
        %2019 = vmatprep.mubr.bf16.mxu0 %v1905
        %2020 = vmatmul.mubr.bf16.gmra.mrb[0].mxu0 %v1752
        %v2021 = vpop.f32.mrb[0].mxu0
        %v2022 = vadd.f32 0.0, %v2021
        %v2023 = vpop.f32.mrb[0].mxu0
        %v2024 = vpop.f32.mrb[0].mxu0
        %v2025 = vadd.f32 0.0, %v2024
        %v2026 = vpop.f32.mrb[0].mxu0
        %2027 = vmatprep.mubr.bf16.mxu0 %v1908
        %2028 = vmatmul.mubr.bf16.gmra.mrb[0].mxu0 %v1754
        %v2029 = vpop.f32.mrb[0].mxu0
        %v2030 = vadd.f32 0.0, %v2029
        %v2031 = vpop.f32.mrb[0].mxu0
        %v2032 = vpop.f32.mrb[0].mxu0
        %v2033 = vadd.f32 0.0, %v2032
        %v2034 = vpop.f32.mrb[0].mxu0
        %2035 = vmatprep.mubr.bf16.mxu0 %v1911
        %2036 = vmatmul.mubr.bf16.gmra.mrb[0].mxu0 %v1756
        %v2037 = vpop.f32.mrb[0].mxu0
        %v2038 = vadd.f32 0.0, %v2037
        %v2039 = vpop.f32.mrb[0].mxu0
        %v2040 = vpop.f32.mrb[0].mxu0
        %v2041 = vadd.f32 0.0, %v2040
        %v2042 = vpop.f32.mrb[0].mxu0
        %2043 = vmatprep.mubr.bf16.mxu0 %v1914
        %2044 = vmatmul.mubr.bf16.gmra.mrb[0].mxu0 %v1758
        %v2045 = vpop.f32.mrb[0].mxu0
        %v2046 = vadd.f32 0.0, %v2045
        %v2047 = vpop.f32.mrb[0].mxu0
        %v2048 = vpop.f32.mrb[0].mxu0
        %v2049 = vadd.f32 0.0, %v2048
        %v2050 = vpop.f32.mrb[0].mxu0
        %2051 = vmatprep.mubr.bf16.mxu0 %v1917
        %2052 = vmatmul.mubr.bf16.gmra.mrb[0].mxu0 %v1760
        %v2053 = vpop.f32.mrb[0].mxu0
        %v2054 = vadd.f32 0.0, %v2053
        %v2055 = vpop.f32.mrb[0].mxu0
        %v2056 = vpop.f32.mrb[0].mxu0
        %v2057 = vadd.f32 0.0, %v2056
        %v2058 = vpop.f32.mrb[0].mxu0
        %2059 = vmatprep.mubr.bf16.mxu0 %v1920
        %2060 = vmatmul.mubr.bf16.gmra.mrb[0].mxu0 %v1762
        %v2061 = vpop.f32.mrb[0].mxu0
        %v2062 = vadd.f32 0.0, %v2061
        %v2063 = vpop.f32.mrb[0].mxu0
        %v2064 = vpop.f32.mrb[0].mxu0
        %v2065 = vadd.f32 0.0, %v2064
        %v2066 = vpop.f32.mrb[0].mxu0
        %2067 = vmatprep.mubr.bf16.mxu0 %v1923
        %2068 = vmatmul.mubr.bf16.gmra.mrb[0].mxu0 %v1764
        %v2069 = vpop.f32.mrb[0].mxu0
        %v2070 = vadd.f32 0.0, %v2069
        %v2071 = vpop.f32.mrb[0].mxu0
        %v2072 = vpop.f32.mrb[0].mxu0
        %v2073 = vadd.f32 0.0, %v2072
        %v2074 = vpop.f32.mrb[0].mxu0
        %2075 = vmatprep.mubr.bf16.mxu0 %v1926
        %2076 = vmatmul.mubr.bf16.gmra.mrb[0].mxu0 %v1766
        %v2077 = vpop.f32.mrb[0].mxu0
        %v2078 = vadd.f32 0.0, %v2077
        %v2079 = vpop.f32.mrb[0].mxu0
        %v2080 = vpop.f32.mrb[0].mxu0
        %v2081 = vadd.f32 0.0, %v2080
        %v2082 = vpop.f32.mrb[0].mxu0
        %2083 = vmatprep.mubr.bf16.mxu0 %v1929
        %2084 = vmatmul.mubr.bf16.gmra.mrb[0].mxu0 %v1768
        %v2085 = vpop.f32.mrb[0].mxu0
        %v2086 = vadd.f32 0.0, %v2085
        %v2087 = vpop.f32.mrb[0].mxu0
        %v2088 = vpop.f32.mrb[0].mxu0
        %v2089 = vadd.f32 0.0, %v2088
        %v2090 = vpop.f32.mrb[0].mxu0
        %2091 = vdwg.mxu0
        %v2092 = vld [vmem:[%s4] sm:$0xf]
        %v2093 = vld [vmem:[%s4 + $0x4] sm:$0xf]
        %v2094 = vld [vmem:[%s4 + $0x8] sm:$0xf]
        %v2095 = vld [vmem:[%s4 + $0xc] sm:$0xf]
        %v2096 = vld [vmem:[%s4 + $0x10] sm:$0xf]
        %v2097 = vld [vmem:[%s4 + $0x14] sm:$0xf]
        %v2098 = vld [vmem:[%s4 + $0x18] sm:$0xf]
        %v2099 = vld [vmem:[%s4 + $0x1c] sm:$0xf]
        %v2100 = vld [vmem:[%s4 + $0x20] sm:$0xf]
        %v2101 = vld [vmem:[%s4 + $0x24] sm:$0xf]
        %v2102 = vld [vmem:[%s4 + $0x28] sm:$0xf]
        %v2103 = vld [vmem:[%s4 + $0x2c] sm:$0xf]
        %v2104 = vld [vmem:[%s4 + $0x30] sm:$0xf]
        %v2105 = vld [vmem:[%s4 + $0x34] sm:$0xf]
        %v2106 = vld [vmem:[%s4 + $0x38] sm:$0xf]
        %v2107 = vld [vmem:[%s4 + $0x3c] sm:$0xf]
        %v2108 = vld [vmem:[%s4 + $0x40] sm:$0xf]
        %v2109 = vld [vmem:[%s4 + $0x44] sm:$0xf]
        %v2110 = vld [vmem:[%s4 + $0x48] sm:$0xf]
        %v2111 = vld [vmem:[%s4 + $0x4c] sm:$0xf]
        %v2112 = vld [vmem:[%s4 + $0x50] sm:$0xf]
        %v2113 = vld [vmem:[%s4 + $0x54] sm:$0xf]
        %v2114 = vld [vmem:[%s4 + $0x58] sm:$0xf]
        %v2115 = vld [vmem:[%s4 + $0x5c] sm:$0xf]
        %v2116 = vld [vmem:[%s4 + $0x60] sm:$0xf]
        %v2117 = vld [vmem:[%s4 + $0x64] sm:$0xf]
        %v2118 = vld [vmem:[%s4 + $0x68] sm:$0xf]
        %v2119 = vld [vmem:[%s4 + $0x6c] sm:$0xf]
        %v2148 = vunpack.c.l.b16 %v2092
        %v2149 = vunpack.c.l.b16 %v2093
        %v2150 = vunpack.c.l.b16 %v2094
        %v2151 = vunpack.c.l.b16 %v2095
        %v2152 = vunpack.c.l.b16 %v2096
        %v2153 = vunpack.c.l.b16 %v2097
        %v2154 = vunpack.c.l.b16 %v2098
        %v2155 = vunpack.c.l.b16 %v2099
        %v2156 = vunpack.c.l.b16 %v2100
        %v2157 = vunpack.c.l.b16 %v2101
        %v2158 = vunpack.c.l.b16 %v2102
        %v2159 = vunpack.c.l.b16 %v2103
        %v2160 = vunpack.c.l.b16 %v2104
        %v2161 = vunpack.c.l.b16 %v2105
        %v2162 = vunpack.c.l.b16 %v2106
        %v2163 = vunpack.c.l.b16 %v2107
        %v2164 = vunpack.c.l.b16 %v2108
        %v2165 = vunpack.c.l.b16 %v2109
        %v2166 = vunpack.c.l.b16 %v2110
        %v2167 = vunpack.c.l.b16 %v2111
        %v2168 = vunpack.c.l.b16 %v2112
        %v2169 = vunpack.c.l.b16 %v2113
        %v2170 = vunpack.c.l.b16 %v2114
        %v2171 = vunpack.c.l.b16 %v2115
        %v2172 = vunpack.c.l.b16 %v2116
        %v2173 = vunpack.c.l.b16 %v2117
        %v2174 = vunpack.c.l.b16 %v2118
        %v2175 = vunpack.c.l.b16 %v2119
        %v2176 = vpack.c.b16 %v2149, %v2148
        %v2177 = vpack.c.b16 %v2151, %v2150
        %v2178 = vpack.c.b16 %v2153, %v2152
        %v2179 = vpack.c.b16 %v2155, %v2154
        %v2180 = vpack.c.b16 %v2157, %v2156
        %v2181 = vpack.c.b16 %v2159, %v2158
        %v2182 = vpack.c.b16 %v2161, %v2160
        %v2183 = vpack.c.b16 %v2163, %v2162
        %v2184 = vpack.c.b16 %v2165, %v2164
        %v2185 = vpack.c.b16 %v2167, %v2166
        %v2186 = vpack.c.b16 %v2169, %v2168
        %v2187 = vpack.c.b16 %v2171, %v2170
        %v2188 = vpack.c.b16 %v2173, %v2172
        %v2189 = vpack.c.b16 %v2175, %v2174
        %2204 = vmatprep.subr.bf16.mxu0 0
        %2205 = vmatpush1.bf16.msra.mxu0 %v2176
        %2206 = vmatprep.subr.bf16.mxu0 0
        %2207 = vmatpush1.bf16.msra.mxu0 %v2177
        %2208 = vmatprep.subr.bf16.mxu0 0
        %2209 = vmatpush1.bf16.msra.mxu0 %v2178
        %2210 = vmatprep.subr.bf16.mxu0 0
        %2211 = vmatpush1.bf16.msra.mxu0 %v2179
        %2212 = vmatprep.subr.bf16.mxu0 0
        %2213 = vmatpush1.bf16.msra.mxu0 %v2180
        %2214 = vmatprep.subr.bf16.mxu0 0
        %2215 = vmatpush1.bf16.msra.mxu0 %v2181
        %2216 = vmatprep.subr.bf16.mxu0 0
        %2217 = vmatpush1.bf16.msra.mxu0 %v2182
        %2218 = vmatprep.subr.bf16.mxu0 0
        %2219 = vmatpush1.bf16.msra.mxu0 %v2183
        %2220 = vmatprep.subr.bf16.mxu0 0
        %2221 = vmatpush1.bf16.msra.mxu0 %v2184
        %2222 = vmatprep.subr.bf16.mxu0 0
        %2223 = vmatpush1.bf16.msra.mxu0 %v2185
        %2224 = vmatprep.subr.bf16.mxu0 0
        %2225 = vmatpush1.bf16.msra.mxu0 %v2186
        %2226 = vmatprep.subr.bf16.mxu0 0
        %2227 = vmatpush1.bf16.msra.mxu0 %v2187
        %2228 = vmatprep.subr.bf16.mxu0 0
        %2229 = vmatpush1.bf16.msra.mxu0 %v2188
        %2230 = vmatprep.subr.bf16.mxu0 0
        %2231 = vmatpush1.bf16.msra.mxu0 %v2189
        %2232 = vmatprep.subr.bf16.mxu0 0
        %2233 = vmatpush1.bf16.msra.mxu0 0
        %2234 = vmatprep.subr.bf16.mxu0 0
        %2235 = vmatpush1.bf16.msra.mxu0 0
        %2236 = vmatprep.mubr.bf16.mxu0 %v1884
        %2237 = vmatmul.mubr.bf16.gmra.mrb[0].mxu0 %v1738
        %v2238 = vpop.f32.mrb[0].mxu0
        %v2239 = vadd.f32 0.0, %v2238
        %v2240 = vpop.f32.mrb[0].mxu0
        %v2241 = vpop.f32.mrb[0].mxu0
        %v2242 = vadd.f32 0.0, %v2241
        %v2243 = vpop.f32.mrb[0].mxu0
        %2244 = vmatprep.mubr.bf16.mxu0 %v1887
        %2245 = vmatmul.mubr.bf16.gmra.mrb[0].mxu0 %v1740
        %v2246 = vpop.f32.mrb[0].mxu0
        %v2247 = vadd.f32 0.0, %v2246
        %v2248 = vpop.f32.mrb[0].mxu0
        %v2249 = vpop.f32.mrb[0].mxu0
        %v2250 = vadd.f32 0.0, %v2249
        %v2251 = vpop.f32.mrb[0].mxu0
        %2252 = vmatprep.mubr.bf16.mxu0 %v1890
        %2253 = vmatmul.mubr.bf16.gmra.mrb[0].mxu0 %v1742
        %v2254 = vpop.f32.mrb[0].mxu0
        %v2255 = vadd.f32 0.0, %v2254
        %v2256 = vpop.f32.mrb[0].mxu0
        %v2257 = vpop.f32.mrb[0].mxu0
        %v2258 = vadd.f32 0.0, %v2257
        %v2259 = vpop.f32.mrb[0].mxu0
        %2260 = vmatprep.mubr.bf16.mxu0 %v1893
        %2261 = vmatmul.mubr.bf16.gmra.mrb[0].mxu0 %v1744
        %v2262 = vpop.f32.mrb[0].mxu0
        %v2263 = vadd.f32 0.0, %v2262
        %v2264 = vpop.f32.mrb[0].mxu0
        %v2265 = vpop.f32.mrb[0].mxu0
        %v2266 = vadd.f32 0.0, %v2265
        %v2267 = vpop.f32.mrb[0].mxu0
        %2268 = vmatprep.mubr.bf16.mxu0 %v1896
        %2269 = vmatmul.mubr.bf16.gmra.mrb[0].mxu0 %v1746
        %v2270 = vpop.f32.mrb[0].mxu0
        %v2271 = vadd.f32 0.0, %v2270
        %v2272 = vpop.f32.mrb[0].mxu0
        %v2273 = vpop.f32.mrb[0].mxu0
        %v2274 = vadd.f32 0.0, %v2273
        %v2275 = vpop.f32.mrb[0].mxu0
        %2276 = vmatprep.mubr.bf16.mxu0 %v1899
        %2277 = vmatmul.mubr.bf16.gmra.mrb[0].mxu0 %v1748
        %v2278 = vpop.f32.mrb[0].mxu0
        %v2279 = vadd.f32 0.0, %v2278
        %v2280 = vpop.f32.mrb[0].mxu0
        %v2281 = vpop.f32.mrb[0].mxu0
        %v2282 = vadd.f32 0.0, %v2281
        %v2283 = vpop.f32.mrb[0].mxu0
        %2284 = vmatprep.mubr.bf16.mxu0 %v1902
        %2285 = vmatmul.mubr.bf16.gmra.mrb[0].mxu0 %v1750
        %v2286 = vpop.f32.mrb[0].mxu0
        %v2287 = vadd.f32 0.0, %v2286
        %v2288 = vpop.f32.mrb[0].mxu0
        %v2289 = vpop.f32.mrb[0].mxu0
        %v2290 = vadd.f32 0.0, %v2289
        %v2291 = vpop.f32.mrb[0].mxu0
        %2292 = vmatprep.mubr.bf16.mxu0 %v1905
        %2293 = vmatmul.mubr.bf16.gmra.mrb[0].mxu0 %v1752
        %v2294 = vpop.f32.mrb[0].mxu0
        %v2295 = vadd.f32 0.0, %v2294
        %v2296 = vpop.f32.mrb[0].mxu0
        %v2297 = vpop.f32.mrb[0].mxu0
        %v2298 = vadd.f32 0.0, %v2297
        %v2299 = vpop.f32.mrb[0].mxu0
        %2300 = vmatprep.mubr.bf16.mxu0 %v1908
        %2301 = vmatmul.mubr.bf16.gmra.mrb[0].mxu0 %v1754
        %v2302 = vpop.f32.mrb[0].mxu0
        %v2303 = vadd.f32 0.0, %v2302
        %v2304 = vpop.f32.mrb[0].mxu0
        %v2305 = vpop.f32.mrb[0].mxu0
        %v2306 = vadd.f32 0.0, %v2305
        %v2307 = vpop.f32.mrb[0].mxu0
        %2308 = vmatprep.mubr.bf16.mxu0 %v1911
        %2309 = vmatmul.mubr.bf16.gmra.mrb[0].mxu0 %v1756
        %v2310 = vpop.f32.mrb[0].mxu0
        %v2311 = vadd.f32 0.0, %v2310
        %v2312 = vpop.f32.mrb[0].mxu0
        %v2313 = vpop.f32.mrb[0].mxu0
        %v2314 = vadd.f32 0.0, %v2313
        %v2315 = vpop.f32.mrb[0].mxu0
        %2316 = vmatprep.mubr.bf16.mxu0 %v1914
        %2317 = vmatmul.mubr.bf16.gmra.mrb[0].mxu0 %v1758
        %v2318 = vpop.f32.mrb[0].mxu0
        %v2319 = vadd.f32 0.0, %v2318
        %v2320 = vpop.f32.mrb[0].mxu0
        %v2321 = vpop.f32.mrb[0].mxu0
        %v2322 = vadd.f32 0.0, %v2321
        %v2323 = vpop.f32.mrb[0].mxu0
        %2324 = vmatprep.mubr.bf16.mxu0 %v1917
        %2325 = vmatmul.mubr.bf16.gmra.mrb[0].mxu0 %v1760
        %v2326 = vpop.f32.mrb[0].mxu0
        %v2327 = vadd.f32 0.0, %v2326
        %v2328 = vpop.f32.mrb[0].mxu0
        %v2329 = vpop.f32.mrb[0].mxu0
        %v2330 = vadd.f32 0.0, %v2329
        %v2331 = vpop.f32.mrb[0].mxu0
        %2332 = vmatprep.mubr.bf16.mxu0 %v1920
        %2333 = vmatmul.mubr.bf16.gmra.mrb[0].mxu0 %v1762
        %v2334 = vpop.f32.mrb[0].mxu0
        %v2335 = vadd.f32 0.0, %v2334
        %v2336 = vpop.f32.mrb[0].mxu0
        %v2337 = vpop.f32.mrb[0].mxu0
        %v2338 = vadd.f32 0.0, %v2337
        %v2339 = vpop.f32.mrb[0].mxu0
        %2340 = vmatprep.mubr.bf16.mxu0 %v1923
        %2341 = vmatmul.mubr.bf16.gmra.mrb[0].mxu0 %v1764
        %v2342 = vpop.f32.mrb[0].mxu0
        %v2343 = vadd.f32 0.0, %v2342
        %v2344 = vpop.f32.mrb[0].mxu0
        %v2345 = vpop.f32.mrb[0].mxu0
        %v2346 = vadd.f32 0.0, %v2345
        %v2347 = vpop.f32.mrb[0].mxu0
        %2348 = vmatprep.mubr.bf16.mxu0 %v1926
        %2349 = vmatmul.mubr.bf16.gmra.mrb[0].mxu0 %v1766
        %v2350 = vpop.f32.mrb[0].mxu0
        %v2351 = vadd.f32 0.0, %v2350
        %v2352 = vpop.f32.mrb[0].mxu0
        %v2353 = vpop.f32.mrb[0].mxu0
        %v2354 = vadd.f32 0.0, %v2353
        %v2355 = vpop.f32.mrb[0].mxu0
        %2356 = vmatprep.mubr.bf16.mxu0 %v1929
        %2357 = vmatmul.mubr.bf16.gmra.mrb[0].mxu0 %v1768
        %v2358 = vpop.f32.mrb[0].mxu0
        %v2359 = vadd.f32 0.0, %v2358
        %v2360 = vpop.f32.mrb[0].mxu0
        %v2361 = vpop.f32.mrb[0].mxu0
        %v2362 = vadd.f32 0.0, %v2361
        %v2363 = vpop.f32.mrb[0].mxu0
        %2364 = vdwg.mxu0
        %v2365 = vmax.f32 %v1966, %v2239
        %v2366 = vmax.f32 %v1969, %v2242
        %v2367 = vmax.f32 %v1974, %v2247
        %v2368 = vmax.f32 %v1977, %v2250
        %v2369 = vmax.f32 %v1982, %v2255
        %v2370 = vmax.f32 %v1985, %v2258
        %v2371 = vmax.f32 %v1990, %v2263
        %v2372 = vmax.f32 %v1993, %v2266
        %v2373 = vmax.f32 %v1998, %v2271
        %v2374 = vmax.f32 %v2001, %v2274
        %v2375 = vmax.f32 %v2006, %v2279
        %v2376 = vmax.f32 %v2009, %v2282
        %v2377 = vmax.f32 %v2014, %v2287
        %v2378 = vmax.f32 %v2017, %v2290
        %v2379 = vmax.f32 %v2022, %v2295
        %v2380 = vmax.f32 %v2025, %v2298
        %v2381 = vmax.f32 %v2030, %v2303
        %v2382 = vmax.f32 %v2033, %v2306
        %v2383 = vmax.f32 %v2038, %v2311
        %v2384 = vmax.f32 %v2041, %v2314
        %v2385 = vmax.f32 %v2046, %v2319
        %v2386 = vmax.f32 %v2049, %v2322
        %v2387 = vmax.f32 %v2054, %v2327
        %v2388 = vmax.f32 %v2057, %v2330
        %v2389 = vmax.f32 %v2062, %v2335
        %v2390 = vmax.f32 %v2065, %v2338
        %v2391 = vmax.f32 %v2070, %v2343
        %v2392 = vmax.f32 %v2073, %v2346
        %v2393 = vmax.f32 %v2078, %v2351
        %v2394 = vmax.f32 %v2081, %v2354
        %v2395 = vmax.f32 %v2086, %v2359
        %v2396 = vmax.f32 %v2089, %v2362
        %v2397 = vpack.c.bf16 %v2366, %v2365
        %v2398 = vpack.c.bf16 %v2368, %v2367
        %v2399 = vpack.c.bf16 %v2370, %v2369
        %v2400 = vpack.c.bf16 %v2372, %v2371
        %v2401 = vpack.c.bf16 %v2374, %v2373
        %v2402 = vpack.c.bf16 %v2376, %v2375
        %v2403 = vpack.c.bf16 %v2378, %v2377
        %v2404 = vpack.c.bf16 %v2380, %v2379
        %v2405 = vpack.c.bf16 %v2382, %v2381
        %v2406 = vpack.c.bf16 %v2384, %v2383
        %v2407 = vpack.c.bf16 %v2386, %v2385
        %v2408 = vpack.c.bf16 %v2388, %v2387
        %v2409 = vpack.c.bf16 %v2390, %v2389
        %v2410 = vpack.c.bf16 %v2392, %v2391
        %v2411 = vpack.c.bf16 %v2394, %v2393
        %v2412 = vpack.c.bf16 %v2396, %v2395
        %v2413 = vld [vmem:[%s5] sm:$0xff]
        %v2414 = vld [vmem:[%s5 + $0x8] sm:$0xff]
        %v2415 = vld [vmem:[%s5 + $0x10] sm:$0xff]
        %v2416 = vld [vmem:[%s5 + $0x18] sm:$0xff]
        %v2417 = vld [vmem:[%s5 + $0x20] sm:$0xff]
        %v2418 = vld [vmem:[%s5 + $0x28] sm:$0xff]
        %v2419 = vld [vmem:[%s5 + $0x30] sm:$0xff]
        %v2420 = vld [vmem:[%s5 + $0x38] sm:$0xff]
        %v2421 = vld [vmem:[%s5 + $0x40] sm:$0xff]
        %v2422 = vld [vmem:[%s5 + $0x48] sm:$0xff]
        %v2423 = vld [vmem:[%s5 + $0x50] sm:$0xff]
        %v2424 = vld [vmem:[%s5 + $0x58] sm:$0xff]
        %v2425 = vld [vmem:[%s5 + $0x60] sm:$0xff]
        %v2426 = vld [vmem:[%s5 + $0x68] sm:$0xff]
        %v2427 = vld [vmem:[%s5 + $0x70] sm:$0xff]
        %v2428 = vld [vmem:[%s5 + $0x78] sm:$0xff]
        %v2445 = vunpack.c.l.b16 %v2413
        %v2446 = vunpack.c.h.b16 %v2413
        %v2447 = vunpack.c.l.b16 %v2414
        %v2448 = vunpack.c.h.b16 %v2414
        %v2449 = vunpack.c.l.b16 %v2415
        %v2450 = vunpack.c.h.b16 %v2415
        %v2451 = vunpack.c.l.b16 %v2416
        %v2452 = vunpack.c.h.b16 %v2416
        %v2453 = vunpack.c.l.b16 %v2417
        %v2454 = vunpack.c.h.b16 %v2417
        %v2455 = vunpack.c.l.b16 %v2418
        %v2456 = vunpack.c.h.b16 %v2418
        %v2457 = vunpack.c.l.b16 %v2419
        %v2458 = vunpack.c.h.b16 %v2419
        %v2459 = vunpack.c.l.b16 %v2420
        %v2460 = vunpack.c.h.b16 %v2420
        %v2461 = vunpack.c.l.b16 %v2421
        %v2462 = vunpack.c.h.b16 %v2421
        %v2463 = vunpack.c.l.b16 %v2422
        %v2464 = vunpack.c.h.b16 %v2422
        %v2465 = vunpack.c.l.b16 %v2423
        %v2466 = vunpack.c.h.b16 %v2423
        %v2467 = vunpack.c.l.b16 %v2424
        %v2468 = vunpack.c.h.b16 %v2424
        %v2469 = vunpack.c.l.b16 %v2425
        %v2470 = vunpack.c.h.b16 %v2425
        %v2471 = vunpack.c.l.b16 %v2426
        %v2472 = vunpack.c.h.b16 %v2426
        %v2473 = vunpack.c.l.b16 %v2427
        %v2474 = vunpack.c.h.b16 %v2427
        %v2475 = vunpack.c.l.b16 %v2428
        %v2476 = vunpack.c.h.b16 %v2428
        %v2477 = vpack.c.b16 %v2447, %v2445
        %v2478 = vpack.c.b16 %v2448, %v2446
        %v2479 = vpack.c.b16 %v2451, %v2449
        %v2480 = vpack.c.b16 %v2452, %v2450
        %v2481 = vpack.c.b16 %v2455, %v2453
        %v2482 = vpack.c.b16 %v2456, %v2454
        %v2483 = vpack.c.b16 %v2459, %v2457
        %v2484 = vpack.c.b16 %v2460, %v2458
        %v2485 = vpack.c.b16 %v2463, %v2461
        %v2486 = vpack.c.b16 %v2464, %v2462
        %v2487 = vpack.c.b16 %v2467, %v2465
        %v2488 = vpack.c.b16 %v2468, %v2466
        %v2489 = vpack.c.b16 %v2471, %v2469
        %v2490 = vpack.c.b16 %v2472, %v2470
        %v2491 = vpack.c.b16 %v2475, %v2473
        %v2492 = vpack.c.b16 %v2476, %v2474
        %2509 = vmatprep.subr.bf16.mxu0 0
        %2510 = vmatpush1.bf16.msra.mxu0 %v2397
        %2511 = vmatprep.subr.bf16.mxu0 0
        %2512 = vmatpush1.bf16.msra.mxu0 %v2398
        %2513 = vmatprep.subr.bf16.mxu0 0
        %2514 = vmatpush1.bf16.msra.mxu0 %v2399
        %2515 = vmatprep.subr.bf16.mxu0 0
        %2516 = vmatpush1.bf16.msra.mxu0 %v2400
        %2517 = vmatprep.subr.bf16.mxu0 0
        %2518 = vmatpush1.bf16.msra.mxu0 %v2401
        %2519 = vmatprep.subr.bf16.mxu0 0
        %2520 = vmatpush1.bf16.msra.mxu0 %v2402
        %2521 = vmatprep.subr.bf16.mxu0 0
        %2522 = vmatpush1.bf16.msra.mxu0 %v2403
        %2523 = vmatprep.subr.bf16.mxu0 0
        %2524 = vmatpush1.bf16.msra.mxu0 %v2404
        %2525 = vmatprep.subr.bf16.mxu0 0
        %2526 = vmatpush1.bf16.msra.mxu0 %v2405
        %2527 = vmatprep.subr.bf16.mxu0 0
        %2528 = vmatpush1.bf16.msra.mxu0 %v2406
        %2529 = vmatprep.subr.bf16.mxu0 0
        %2530 = vmatpush1.bf16.msra.mxu0 %v2407
        %2531 = vmatprep.subr.bf16.mxu0 0
        %2532 = vmatpush1.bf16.msra.mxu0 %v2408
        %2533 = vmatprep.subr.bf16.mxu0 0
        %2534 = vmatpush1.bf16.msra.mxu0 %v2409
        %2535 = vmatprep.subr.bf16.mxu0 0
        %2536 = vmatpush1.bf16.msra.mxu0 %v2410
        %2537 = vmatprep.subr.bf16.mxu0 0
        %2538 = vmatpush1.bf16.msra.mxu0 %v2411
        %2539 = vmatprep.subr.bf16.mxu0 0
        %2540 = vmatpush1.bf16.msra.mxu0 %v2412
        %2541 = vmatprep.mubr.bf16.mxu0 %v2478
        %2542 = vmatmul.mubr.bf16.gmra.mrb[0].mxu0 %v2477
        %v2543 = vpop.f32.mrb[0].mxu0
        %v2544 = vadd.f32 0.0, %v2543
        %v2545 = vpop.f32.mrb[0].mxu0
        %v2546 = vpop.f32.mrb[0].mxu0
        %v2547 = vadd.f32 0.0, %v2546
        %v2548 = vpop.f32.mrb[0].mxu0
        %2549 = vmatprep.mubr.bf16.mxu0 %v2480
        %2550 = vmatmul.mubr.bf16.gmra.mrb[0].mxu0 %v2479
        %v2551 = vpop.f32.mrb[0].mxu0
        %v2552 = vadd.f32 0.0, %v2551
        %v2553 = vpop.f32.mrb[0].mxu0
        %v2554 = vpop.f32.mrb[0].mxu0
        %v2555 = vadd.f32 0.0, %v2554
        %v2556 = vpop.f32.mrb[0].mxu0
        %2557 = vmatprep.mubr.bf16.mxu0 %v2482
        %2558 = vmatmul.mubr.bf16.gmra.mrb[0].mxu0 %v2481
        %v2559 = vpop.f32.mrb[0].mxu0
        %v2560 = vadd.f32 0.0, %v2559
        %v2561 = vpop.f32.mrb[0].mxu0
        %v2562 = vpop.f32.mrb[0].mxu0
        %v2563 = vadd.f32 0.0, %v2562
        %v2564 = vpop.f32.mrb[0].mxu0
        %2565 = vmatprep.mubr.bf16.mxu0 %v2484
        %2566 = vmatmul.mubr.bf16.gmra.mrb[0].mxu0 %v2483
        %v2567 = vpop.f32.mrb[0].mxu0
        %v2568 = vadd.f32 0.0, %v2567
        %v2569 = vpop.f32.mrb[0].mxu0
        %v2570 = vpop.f32.mrb[0].mxu0
        %v2571 = vadd.f32 0.0, %v2570
        %v2572 = vpop.f32.mrb[0].mxu0
        %2573 = vmatprep.mubr.bf16.mxu0 %v2486
        %2574 = vmatmul.mubr.bf16.gmra.mrb[0].mxu0 %v2485
        %v2575 = vpop.f32.mrb[0].mxu0
        %v2576 = vadd.f32 0.0, %v2575
        %v2577 = vpop.f32.mrb[0].mxu0
        %v2578 = vpop.f32.mrb[0].mxu0
        %v2579 = vadd.f32 0.0, %v2578
        %v2580 = vpop.f32.mrb[0].mxu0
        %2581 = vmatprep.mubr.bf16.mxu0 %v2488
        %2582 = vmatmul.mubr.bf16.gmra.mrb[0].mxu0 %v2487
        %v2583 = vpop.f32.mrb[0].mxu0
        %v2584 = vadd.f32 0.0, %v2583
        %v2585 = vpop.f32.mrb[0].mxu0
        %v2586 = vpop.f32.mrb[0].mxu0
        %v2587 = vadd.f32 0.0, %v2586
        %v2588 = vpop.f32.mrb[0].mxu0
        %2589 = vmatprep.mubr.bf16.mxu0 %v2490
        %2590 = vmatmul.mubr.bf16.gmra.mrb[0].mxu0 %v2489
        %v2591 = vpop.f32.mrb[0].mxu0
        %v2592 = vadd.f32 0.0, %v2591
        %v2593 = vpop.f32.mrb[0].mxu0
        %v2594 = vpop.f32.mrb[0].mxu0
        %v2595 = vadd.f32 0.0, %v2594
        %v2596 = vpop.f32.mrb[0].mxu0
        %2597 = vmatprep.mubr.bf16.mxu0 %v2492
        %2598 = vmatmul.mubr.bf16.gmra.mrb[0].mxu0 %v2491
        %v2599 = vpop.f32.mrb[0].mxu0
        %v2600 = vadd.f32 0.0, %v2599
        %v2601 = vpop.f32.mrb[0].mxu0
        %v2602 = vpop.f32.mrb[0].mxu0
        %v2603 = vadd.f32 0.0, %v2602
        %v2604 = vpop.f32.mrb[0].mxu0
        %2605 = vdwg.mxu0
        %v2606 = vld [vmem:[%s6] sm:$0xff]
        %v2607 = vld [vmem:[%s6 + $0x8] sm:$0xff]
        %v2608 = vld [vmem:[%s6 + $0x10] sm:$0xff]
        %v2609 = vld [vmem:[%s6 + $0x18] sm:$0xff]
        %v2610 = vld [vmem:[%s6 + $0x20] sm:$0xff]
        %v2611 = vld [vmem:[%s6 + $0x28] sm:$0xff]
        %v2612 = vld [vmem:[%s6 + $0x30] sm:$0xff]
        %v2613 = vld [vmem:[%s6 + $0x38] sm:$0xff]
        %v2614 = vld [vmem:[%s6 + $0x40] sm:$0xff]
        %v2615 = vld [vmem:[%s6 + $0x48] sm:$0xff]
        %v2616 = vld [vmem:[%s6 + $0x50] sm:$0xff]
        %v2617 = vld [vmem:[%s6 + $0x58] sm:$0xff]
        %v2618 = vld [vmem:[%s6 + $0x60] sm:$0xff]
        %v2619 = vld [vmem:[%s6 + $0x68] sm:$0xff]
        %v2620 = vld [vmem:[%s6 + $0x70] sm:$0xff]
        %v2621 = vld [vmem:[%s6 + $0x78] sm:$0xff]
        %v2638 = vunpack.c.l.b16 %v2606
        %v2639 = vunpack.c.h.b16 %v2606
        %v2640 = vunpack.c.l.b16 %v2607
        %v2641 = vunpack.c.h.b16 %v2607
        %v2642 = vunpack.c.l.b16 %v2608
        %v2643 = vunpack.c.h.b16 %v2608
        %v2644 = vunpack.c.l.b16 %v2609
        %v2645 = vunpack.c.h.b16 %v2609
        %v2646 = vunpack.c.l.b16 %v2610
        %v2647 = vunpack.c.h.b16 %v2610
        %v2648 = vunpack.c.l.b16 %v2611
        %v2649 = vunpack.c.h.b16 %v2611
        %v2650 = vunpack.c.l.b16 %v2612
        %v2651 = vunpack.c.h.b16 %v2612
        %v2652 = vunpack.c.l.b16 %v2613
        %v2653 = vunpack.c.h.b16 %v2613
        %v2654 = vunpack.c.l.b16 %v2614
        %v2655 = vunpack.c.h.b16 %v2614
        %v2656 = vunpack.c.l.b16 %v2615
        %v2657 = vunpack.c.h.b16 %v2615
        %v2658 = vunpack.c.l.b16 %v2616
        %v2659 = vunpack.c.h.b16 %v2616
        %v2660 = vunpack.c.l.b16 %v2617
        %v2661 = vunpack.c.h.b16 %v2617
        %v2662 = vunpack.c.l.b16 %v2618
        %v2663 = vunpack.c.h.b16 %v2618
        %v2664 = vunpack.c.l.b16 %v2619
        %v2665 = vunpack.c.h.b16 %v2619
        %v2666 = vunpack.c.l.b16 %v2620
        %v2667 = vunpack.c.h.b16 %v2620
        %v2668 = vunpack.c.l.b16 %v2621
        %v2669 = vunpack.c.h.b16 %v2621
        %v2670 = vpack.c.b16 %v2640, %v2638
        %v2671 = vpack.c.b16 %v2641, %v2639
        %v2672 = vpack.c.b16 %v2644, %v2642
        %v2673 = vpack.c.b16 %v2645, %v2643
        %v2674 = vpack.c.b16 %v2648, %v2646
        %v2675 = vpack.c.b16 %v2649, %v2647
        %v2676 = vpack.c.b16 %v2652, %v2650
        %v2677 = vpack.c.b16 %v2653, %v2651
        %v2678 = vpack.c.b16 %v2656, %v2654
        %v2679 = vpack.c.b16 %v2657, %v2655
        %v2680 = vpack.c.b16 %v2660, %v2658
        %v2681 = vpack.c.b16 %v2661, %v2659
        %v2682 = vpack.c.b16 %v2664, %v2662
        %v2683 = vpack.c.b16 %v2665, %v2663
        %v2684 = vpack.c.b16 %v2668, %v2666
        %v2685 = vpack.c.b16 %v2669, %v2667
        %2702 = vmatprep.subr.bf16.mxu0 0
        %2703 = vmatpush1.bf16.msra.mxu0 %v2397
        %2704 = vmatprep.subr.bf16.mxu0 0
        %2705 = vmatpush1.bf16.msra.mxu0 %v2398
        %2706 = vmatprep.subr.bf16.mxu0 0
        %2707 = vmatpush1.bf16.msra.mxu0 %v2399
        %2708 = vmatprep.subr.bf16.mxu0 0
        %2709 = vmatpush1.bf16.msra.mxu0 %v2400
        %2710 = vmatprep.subr.bf16.mxu0 0
        %2711 = vmatpush1.bf16.msra.mxu0 %v2401
        %2712 = vmatprep.subr.bf16.mxu0 0
        %2713 = vmatpush1.bf16.msra.mxu0 %v2402
        %2714 = vmatprep.subr.bf16.mxu0 0
        %2715 = vmatpush1.bf16.msra.mxu0 %v2403
        %2716 = vmatprep.subr.bf16.mxu0 0
        %2717 = vmatpush1.bf16.msra.mxu0 %v2404
        %2718 = vmatprep.subr.bf16.mxu0 0
        %2719 = vmatpush1.bf16.msra.mxu0 %v2405
        %2720 = vmatprep.subr.bf16.mxu0 0
        %2721 = vmatpush1.bf16.msra.mxu0 %v2406
        %2722 = vmatprep.subr.bf16.mxu0 0
        %2723 = vmatpush1.bf16.msra.mxu0 %v2407
        %2724 = vmatprep.subr.bf16.mxu0 0
        %2725 = vmatpush1.bf16.msra.mxu0 %v2408
        %2726 = vmatprep.subr.bf16.mxu0 0
        %2727 = vmatpush1.bf16.msra.mxu0 %v2409
        %2728 = vmatprep.subr.bf16.mxu0 0
        %2729 = vmatpush1.bf16.msra.mxu0 %v2410
        %2730 = vmatprep.subr.bf16.mxu0 0
        %2731 = vmatpush1.bf16.msra.mxu0 %v2411
        %2732 = vmatprep.subr.bf16.mxu0 0
        %2733 = vmatpush1.bf16.msra.mxu0 %v2412
        %2734 = vmatprep.mubr.bf16.mxu0 %v2671
        %2735 = vmatmul.mubr.bf16.gmra.mrb[0].mxu0 %v2670
        %v2736 = vpop.f32.mrb[0].mxu0
        %v2737 = vadd.f32 0.0, %v2736
        %v2738 = vpop.f32.mrb[0].mxu0
        %v2739 = vpop.f32.mrb[0].mxu0
        %v2740 = vadd.f32 0.0, %v2739
        %v2741 = vpop.f32.mrb[0].mxu0
        %2742 = vmatprep.mubr.bf16.mxu0 %v2673
        %2743 = vmatmul.mubr.bf16.gmra.mrb[0].mxu0 %v2672
        %v2744 = vpop.f32.mrb[0].mxu0
        %v2745 = vadd.f32 0.0, %v2744
        %v2746 = vpop.f32.mrb[0].mxu0
        %v2747 = vpop.f32.mrb[0].mxu0
        %v2748 = vadd.f32 0.0, %v2747
        %v2749 = vpop.f32.mrb[0].mxu0
        %2750 = vmatprep.mubr.bf16.mxu0 %v2675
        %2751 = vmatmul.mubr.bf16.gmra.mrb[0].mxu0 %v2674
        %v2752 = vpop.f32.mrb[0].mxu0
        %v2753 = vadd.f32 0.0, %v2752
        %v2754 = vpop.f32.mrb[0].mxu0
        %v2755 = vpop.f32.mrb[0].mxu0
        %v2756 = vadd.f32 0.0, %v2755
        %v2757 = vpop.f32.mrb[0].mxu0
        %2758 = vmatprep.mubr.bf16.mxu0 %v2677
        %2759 = vmatmul.mubr.bf16.gmra.mrb[0].mxu0 %v2676
        %v2760 = vpop.f32.mrb[0].mxu0
        %v2761 = vadd.f32 0.0, %v2760
        %v2762 = vpop.f32.mrb[0].mxu0
        %v2763 = vpop.f32.mrb[0].mxu0
        %v2764 = vadd.f32 0.0, %v2763
        %v2765 = vpop.f32.mrb[0].mxu0
        %2766 = vmatprep.mubr.bf16.mxu0 %v2679
        %2767 = vmatmul.mubr.bf16.gmra.mrb[0].mxu0 %v2678
        %v2768 = vpop.f32.mrb[0].mxu0
        %v2769 = vadd.f32 0.0, %v2768
        %v2770 = vpop.f32.mrb[0].mxu0
        %v2771 = vpop.f32.mrb[0].mxu0
        %v2772 = vadd.f32 0.0, %v2771
        %v2773 = vpop.f32.mrb[0].mxu0
        %2774 = vmatprep.mubr.bf16.mxu0 %v2681
        %2775 = vmatmul.mubr.bf16.gmra.mrb[0].mxu0 %v2680
        %v2776 = vpop.f32.mrb[0].mxu0
        %v2777 = vadd.f32 0.0, %v2776
        %v2778 = vpop.f32.mrb[0].mxu0
        %v2779 = vpop.f32.mrb[0].mxu0
        %v2780 = vadd.f32 0.0, %v2779
        %v2781 = vpop.f32.mrb[0].mxu0
        %2782 = vmatprep.mubr.bf16.mxu0 %v2683
        %2783 = vmatmul.mubr.bf16.gmra.mrb[0].mxu0 %v2682
        %v2784 = vpop.f32.mrb[0].mxu0
        %v2785 = vadd.f32 0.0, %v2784
        %v2786 = vpop.f32.mrb[0].mxu0
        %v2787 = vpop.f32.mrb[0].mxu0
        %v2788 = vadd.f32 0.0, %v2787
        %v2789 = vpop.f32.mrb[0].mxu0
        %2790 = vmatprep.mubr.bf16.mxu0 %v2685
        %2791 = vmatmul.mubr.bf16.gmra.mrb[0].mxu0 %v2684
        %v2792 = vpop.f32.mrb[0].mxu0
        %v2793 = vadd.f32 0.0, %v2792
        %v2794 = vpop.f32.mrb[0].mxu0
        %v2795 = vpop.f32.mrb[0].mxu0
        %v2796 = vadd.f32 0.0, %v2795
        %v2797 = vpop.f32.mrb[0].mxu0
        %2798 = vdwg.mxu0
        %v2799 = vmax.f32 %v2544, %v2737
        %v2800 = vmax.f32 %v2547, %v2740
        %v2801 = vmax.f32 %v2552, %v2745
        %v2802 = vmax.f32 %v2555, %v2748
        %v2803 = vmax.f32 %v2560, %v2753
        %v2804 = vmax.f32 %v2563, %v2756
        %v2805 = vmax.f32 %v2568, %v2761
        %v2806 = vmax.f32 %v2571, %v2764
        %v2807 = vmax.f32 %v2576, %v2769
        %v2808 = vmax.f32 %v2579, %v2772
        %v2809 = vmax.f32 %v2584, %v2777
        %v2810 = vmax.f32 %v2587, %v2780
        %v2811 = vmax.f32 %v2592, %v2785
        %v2812 = vmax.f32 %v2595, %v2788
        %v2813 = vmax.f32 %v2600, %v2793
        %v2814 = vmax.f32 %v2603, %v2796
        %2815 = vst [vmem:[#allocation2] sm:$0xff] %v2799
        %2816 = vst [vmem:[#allocation2 + $0x8] sm:$0xff] %v2800
        %2817 = vst [vmem:[#allocation2 + $0x10] sm:$0xff] %v2801
        %2818 = vst [vmem:[#allocation2 + $0x18] sm:$0xff] %v2802
        %2819 = vst [vmem:[#allocation2 + $0x20] sm:$0xff] %v2803
        %2820 = vst [vmem:[#allocation2 + $0x28] sm:$0xff] %v2804
        %2821 = vst [vmem:[#allocation2 + $0x30] sm:$0xff] %v2805
        %2822 = vst [vmem:[#allocation2 + $0x38] sm:$0xff] %v2806
        %2823 = vst [vmem:[#allocation2 + $0x40] sm:$0xff] %v2807
        %2824 = vst [vmem:[#allocation2 + $0x48] sm:$0xff] %v2808
        %2825 = vst [vmem:[#allocation2 + $0x50] sm:$0xff] %v2809
        %2826 = vst [vmem:[#allocation2 + $0x58] sm:$0xff] %v2810
        %2827 = vst [vmem:[#allocation2 + $0x60] sm:$0xff] %v2811
        %2828 = vst [vmem:[#allocation2 + $0x68] sm:$0xff] %v2812
        %2829 = vst [vmem:[#allocation2 + $0x70] sm:$0xff] %v2813
        %2830 = vst [vmem:[#allocation2 + $0x78] sm:$0xff] %v2814
        %2831 = vst [vmem:[#allocation2 + $0x80] sm:$0xff] 0.0
        %v2832 = vld [vmem:[#allocation2] sm:$0xff]
        %v2833 = vld [vmem:[#allocation2 + $0x8] sm:$0xff]
        %v2834 = vld [vmem:[#allocation2 + $0x10] sm:$0xff]
        %v2835 = vld [vmem:[#allocation2 + $0x18] sm:$0xff]
        %v2836 = vld [vmem:[#allocation2 + $0x20] sm:$0xff]
        %v2837 = vld [vmem:[#allocation2 + $0x28] sm:$0xff]
        %v2838 = vld [vmem:[#allocation2 + $0x30] sm:$0xff]
        %v2839 = vld [vmem:[#allocation2 + $0x38] sm:$0xff]
        %v2840 = vld [vmem:[#allocation2 + $0x40] sm:$0xff]
        %v2841 = vld [vmem:[#allocation2 + $0x48] sm:$0xff]
        %v2842 = vld [vmem:[#allocation2 + $0x50] sm:$0xff]
        %v2843 = vld [vmem:[#allocation2 + $0x58] sm:$0xff]
        %v2844 = vld [vmem:[#allocation2 + $0x60] sm:$0xff]
        %v2845 = vld [vmem:[#allocation2 + $0x68] sm:$0xff]
        %v2846 = vld [vmem:[#allocation2 + $0x70] sm:$0xff]
        %v2847 = vld [vmem:[#allocation2 + $0x78] sm:$0xff]
        %v2848 = vpack.c.bf16 %v2833, %v2832
        %v2849 = vpack.c.bf16 %v2835, %v2834
        %v2850 = vpack.c.bf16 %v2837, %v2836
        %v2851 = vpack.c.bf16 %v2839, %v2838
        %v2852 = vpack.c.bf16 %v2841, %v2840
        %v2853 = vpack.c.bf16 %v2843, %v2842
        %v2854 = vpack.c.bf16 %v2845, %v2844
        %v2855 = vpack.c.bf16 %v2847, %v2846
        %v2856 = vld [vmem:[%s7] sm:$0xff]
        %v2857 = vld [vmem:[%s7 + $0x8] sm:$0xff]
        %v2858 = vld [vmem:[%s7 + $0x10] sm:$0xff]
        %v2859 = vld [vmem:[%s7 + $0x18] sm:$0xff]
        %v2860 = vld [vmem:[%s7 + $0x20] sm:$0xff]
        %v2861 = vld [vmem:[%s7 + $0x28] sm:$0xff]
        %v2862 = vld [vmem:[%s7 + $0x30] sm:$0xff]
        %v2863 = vld [vmem:[%s7 + $0x38] sm:$0xff]
        %v2864 = vld [vmem:[%s7 + $0x40] sm:$0xff]
        %v2865 = vld [vmem:[%s7 + $0x48] sm:$0xff]
        %v2866 = vld [vmem:[%s7 + $0x50] sm:$0xff]
        %v2867 = vld [vmem:[%s7 + $0x58] sm:$0xff]
        %v2868 = vld [vmem:[%s7 + $0x60] sm:$0xff]
        %v2869 = vld [vmem:[%s7 + $0x68] sm:$0xff]
        %v2870 = vld [vmem:[%s7 + $0x70] sm:$0xff]
        %v2871 = vld [vmem:[%s7 + $0x78] sm:$0xff]
        %v2872 = vld [vmem:[#allocation2 + $0x1] sm:$0xff]
        %v2873 = vld [vmem:[#allocation2 + $0x9] sm:$0xff]
        %v2874 = vld [vmem:[#allocation2 + $0x11] sm:$0xff]
        %v2875 = vld [vmem:[#allocation2 + $0x19] sm:$0xff]
        %v2876 = vld [vmem:[#allocation2 + $0x21] sm:$0xff]
        %v2877 = vld [vmem:[#allocation2 + $0x29] sm:$0xff]
        %v2878 = vld [vmem:[#allocation2 + $0x31] sm:$0xff]
        %v2879 = vld [vmem:[#allocation2 + $0x39] sm:$0xff]
        %v2880 = vld [vmem:[#allocation2 + $0x41] sm:$0xff]
        %v2881 = vld [vmem:[#allocation2 + $0x49] sm:$0xff]
        %v2882 = vld [vmem:[#allocation2 + $0x51] sm:$0xff]
        %v2883 = vld [vmem:[#allocation2 + $0x59] sm:$0xff]
        %v2884 = vld [vmem:[#allocation2 + $0x61] sm:$0xff]
        %v2885 = vld [vmem:[#allocation2 + $0x69] sm:$0xff]
        %v2886 = vld [vmem:[#allocation2 + $0x71] sm:$0xff]
        %v2887 = vld [vmem:[#allocation2 + $0x79] sm:$0xff]
        %v2888 = vpack.c.bf16 %v2873, %v2872
        %v2889 = vpack.c.bf16 %v2875, %v2874
        %v2890 = vpack.c.bf16 %v2877, %v2876
        %v2891 = vpack.c.bf16 %v2879, %v2878
        %v2892 = vpack.c.bf16 %v2881, %v2880
        %v2893 = vpack.c.bf16 %v2883, %v2882
        %v2894 = vpack.c.bf16 %v2885, %v2884
        %v2895 = vpack.c.bf16 %v2887, %v2886
        %s2896 = scalar_lea.vmem %s7, 128
        %v2897 = vld [vmem:[%s2896] sm:$0xff]
        %v2898 = vld [vmem:[%s2896 + $0x8] sm:$0xff]
        %v2899 = vld [vmem:[%s2896 + $0x10] sm:$0xff]
        %v2900 = vld [vmem:[%s2896 + $0x18] sm:$0xff]
        %v2901 = vld [vmem:[%s2896 + $0x20] sm:$0xff]
        %v2902 = vld [vmem:[%s2896 + $0x28] sm:$0xff]
        %v2903 = vld [vmem:[%s2896 + $0x30] sm:$0xff]
        %v2904 = vld [vmem:[%s2896 + $0x38] sm:$0xff]
        %v2905 = vld [vmem:[%s2896 + $0x40] sm:$0xff]
        %v2906 = vld [vmem:[%s2896 + $0x48] sm:$0xff]
        %v2907 = vld [vmem:[%s2896 + $0x50] sm:$0xff]
        %v2908 = vld [vmem:[%s2896 + $0x58] sm:$0xff]
        %v2909 = vld [vmem:[%s2896 + $0x60] sm:$0xff]
        %v2910 = vld [vmem:[%s2896 + $0x68] sm:$0xff]
        %v2911 = vld [vmem:[%s2896 + $0x70] sm:$0xff]
        %v2912 = vld [vmem:[%s2896 + $0x78] sm:$0xff]
        %v2929 = vunpack.c.l.b16 %v2897
        %v2930 = vunpack.c.h.b16 %v2897
        %v2931 = vunpack.c.l.b16 %v2898
        %v2932 = vunpack.c.h.b16 %v2898
        %v2933 = vunpack.c.l.b16 %v2899
        %v2934 = vunpack.c.h.b16 %v2899
        %v2935 = vunpack.c.l.b16 %v2900
        %v2936 = vunpack.c.h.b16 %v2900
        %v2937 = vunpack.c.l.b16 %v2901
        %v2938 = vunpack.c.h.b16 %v2901
        %v2939 = vunpack.c.l.b16 %v2902
        %v2940 = vunpack.c.h.b16 %v2902
        %v2941 = vunpack.c.l.b16 %v2903
        %v2942 = vunpack.c.h.b16 %v2903
        %v2943 = vunpack.c.l.b16 %v2904
        %v2944 = vunpack.c.h.b16 %v2904
        %v2945 = vunpack.c.l.b16 %v2905
        %v2946 = vunpack.c.h.b16 %v2905
        %v2947 = vunpack.c.l.b16 %v2906
        %v2948 = vunpack.c.h.b16 %v2906
        %v2949 = vunpack.c.l.b16 %v2907
        %v2950 = vunpack.c.h.b16 %v2907
        %v2951 = vunpack.c.l.b16 %v2908
        %v2952 = vunpack.c.h.b16 %v2908
        %v2953 = vunpack.c.l.b16 %v2909
        %v2954 = vunpack.c.h.b16 %v2909
        %v2955 = vunpack.c.l.b16 %v2910
        %v2956 = vunpack.c.h.b16 %v2910
        %v2957 = vunpack.c.l.b16 %v2911
        %v2958 = vunpack.c.h.b16 %v2911
        %v2959 = vunpack.c.l.b16 %v2912
        %v2960 = vunpack.c.h.b16 %v2912
        %v2961 = vpack.c.b16 %v2931, %v2929
        %v2962 = vpack.c.b16 %v2932, %v2930
        %v2963 = vpack.c.b16 %v2935, %v2933
        %v2964 = vpack.c.b16 %v2936, %v2934
        %v2965 = vpack.c.b16 %v2939, %v2937
        %v2966 = vpack.c.b16 %v2940, %v2938
        %v2967 = vpack.c.b16 %v2943, %v2941
        %v2968 = vpack.c.b16 %v2944, %v2942
        %v2969 = vpack.c.b16 %v2947, %v2945
        %v2970 = vpack.c.b16 %v2948, %v2946
        %v2971 = vpack.c.b16 %v2951, %v2949
        %v2972 = vpack.c.b16 %v2952, %v2950
        %v2973 = vpack.c.b16 %v2955, %v2953
        %v2974 = vpack.c.b16 %v2956, %v2954
        %v2975 = vpack.c.b16 %v2959, %v2957
        %v2976 = vpack.c.b16 %v2960, %v2958
        %2993 = vmatprep.subr.bf16.mxu0 %v2962
        %2994 = vmatpush1.bf16.msra.mxu0 %v2961
        %2995 = vmatprep.subr.bf16.mxu0 %v2964
        %2996 = vmatpush1.bf16.msra.mxu0 %v2963
        %2997 = vmatprep.subr.bf16.mxu0 %v2966
        %2998 = vmatpush1.bf16.msra.mxu0 %v2965
        %2999 = vmatprep.subr.bf16.mxu0 %v2968
        %3000 = vmatpush1.bf16.msra.mxu0 %v2967
        %3001 = vmatprep.subr.bf16.mxu0 %v2970
        %3002 = vmatpush1.bf16.msra.mxu0 %v2969
        %3003 = vmatprep.subr.bf16.mxu0 %v2972
        %3004 = vmatpush1.bf16.msra.mxu0 %v2971
        %3005 = vmatprep.subr.bf16.mxu0 %v2974
        %3006 = vmatpush1.bf16.msra.mxu0 %v2973
        %3007 = vmatprep.subr.bf16.mxu0 %v2976
        %3008 = vmatpush1.bf16.msra.mxu0 %v2975
        %3009 = vmatprep.subr.bf16.mxu0 0
        %3010 = vmatpush1.bf16.msra.mxu0 0
        %3011 = vmatprep.subr.bf16.mxu0 0
        %3012 = vmatpush1.bf16.msra.mxu0 0
        %3013 = vmatprep.subr.bf16.mxu0 0
        %3014 = vmatpush1.bf16.msra.mxu0 0
        %3015 = vmatprep.subr.bf16.mxu0 0
        %3016 = vmatpush1.bf16.msra.mxu0 0
        %3017 = vmatprep.subr.bf16.mxu0 0
        %3018 = vmatpush1.bf16.msra.mxu0 0
        %3019 = vmatprep.subr.bf16.mxu0 0
        %3020 = vmatpush1.bf16.msra.mxu0 0
        %3021 = vmatprep.subr.bf16.mxu0 0
        %3022 = vmatpush1.bf16.msra.mxu0 0
        %3023 = vmatprep.subr.bf16.mxu0 0
        %3024 = vmatpush1.bf16.msra.mxu0 0
        %3025 = vmatprep.mubr.bf16.mxu0 0
        %3026 = vmatmul.mubr.bf16.gmra.mrb[0].mxu0 %v2888
        %v3027 = vpop.f32.mrb[0].mxu0
        %v3028 = vadd.f32 0.0, %v3027
        %v3029 = vpop.f32.mrb[0].mxu0
        %v3030 = vadd.f32 0.0, %v3029
        %v3031 = vpop.f32.mrb[0].mxu0
        %v3032 = vadd.f32 0.0, %v3031
        %v3033 = vpop.f32.mrb[0].mxu0
        %v3034 = vadd.f32 0.0, %v3033
        %3035 = vmatprep.mubr.bf16.mxu0 0
        %3036 = vmatmul.mubr.bf16.gmra.mrb[0].mxu0 %v2889
        %v3037 = vpop.f32.mrb[0].mxu0
        %v3038 = vadd.f32 0.0, %v3037
        %v3039 = vpop.f32.mrb[0].mxu0
        %v3040 = vadd.f32 0.0, %v3039
        %v3041 = vpop.f32.mrb[0].mxu0
        %v3042 = vadd.f32 0.0, %v3041
        %v3043 = vpop.f32.mrb[0].mxu0
        %v3044 = vadd.f32 0.0, %v3043
        %3045 = vmatprep.mubr.bf16.mxu0 0
        %3046 = vmatmul.mubr.bf16.gmra.mrb[0].mxu0 %v2890
        %v3047 = vpop.f32.mrb[0].mxu0
        %v3048 = vadd.f32 0.0, %v3047
        %v3049 = vpop.f32.mrb[0].mxu0
        %v3050 = vadd.f32 0.0, %v3049
        %v3051 = vpop.f32.mrb[0].mxu0
        %v3052 = vadd.f32 0.0, %v3051
        %v3053 = vpop.f32.mrb[0].mxu0
        %v3054 = vadd.f32 0.0, %v3053
        %3055 = vmatprep.mubr.bf16.mxu0 0
        %3056 = vmatmul.mubr.bf16.gmra.mrb[0].mxu0 %v2891
        %v3057 = vpop.f32.mrb[0].mxu0
        %v3058 = vadd.f32 0.0, %v3057
        %v3059 = vpop.f32.mrb[0].mxu0
        %v3060 = vadd.f32 0.0, %v3059
        %v3061 = vpop.f32.mrb[0].mxu0
        %v3062 = vadd.f32 0.0, %v3061
        %v3063 = vpop.f32.mrb[0].mxu0
        %v3064 = vadd.f32 0.0, %v3063
        %3065 = vmatprep.mubr.bf16.mxu0 0
        %3066 = vmatmul.mubr.bf16.gmra.mrb[0].mxu0 %v2892
        %v3067 = vpop.f32.mrb[0].mxu0
        %v3068 = vadd.f32 0.0, %v3067
        %v3069 = vpop.f32.mrb[0].mxu0
        %v3070 = vadd.f32 0.0, %v3069
        %v3071 = vpop.f32.mrb[0].mxu0
        %v3072 = vadd.f32 0.0, %v3071
        %v3073 = vpop.f32.mrb[0].mxu0
        %v3074 = vadd.f32 0.0, %v3073
        %3075 = vmatprep.mubr.bf16.mxu0 0
        %3076 = vmatmul.mubr.bf16.gmra.mrb[0].mxu0 %v2893
        %v3077 = vpop.f32.mrb[0].mxu0
        %v3078 = vadd.f32 0.0, %v3077
        %v3079 = vpop.f32.mrb[0].mxu0
        %v3080 = vadd.f32 0.0, %v3079
        %v3081 = vpop.f32.mrb[0].mxu0
        %v3082 = vadd.f32 0.0, %v3081
        %v3083 = vpop.f32.mrb[0].mxu0
        %v3084 = vadd.f32 0.0, %v3083
        %3085 = vmatprep.mubr.bf16.mxu0 0
        %3086 = vmatmul.mubr.bf16.gmra.mrb[0].mxu0 %v2894
        %v3087 = vpop.f32.mrb[0].mxu0
        %v3088 = vadd.f32 0.0, %v3087
        %v3089 = vpop.f32.mrb[0].mxu0
        %v3090 = vadd.f32 0.0, %v3089
        %v3091 = vpop.f32.mrb[0].mxu0
        %v3092 = vadd.f32 0.0, %v3091
        %v3093 = vpop.f32.mrb[0].mxu0
        %v3094 = vadd.f32 0.0, %v3093
        %3095 = vmatprep.mubr.bf16.mxu0 0
        %3096 = vmatmul.mubr.bf16.gmra.mrb[0].mxu0 %v2895
        %v3097 = vpop.f32.mrb[0].mxu0
        %v3098 = vadd.f32 0.0, %v3097
        %v3099 = vpop.f32.mrb[0].mxu0
        %v3100 = vadd.f32 0.0, %v3099
        %v3101 = vpop.f32.mrb[0].mxu0
        %v3102 = vadd.f32 0.0, %v3101
        %v3103 = vpop.f32.mrb[0].mxu0
        %v3104 = vadd.f32 0.0, %v3103
        %3105 = vdwg.mxu0
        %v3122 = vunpack.c.l.b16 %v2856
        %v3123 = vunpack.c.h.b16 %v2856
        %v3124 = vunpack.c.l.b16 %v2857
        %v3125 = vunpack.c.h.b16 %v2857
        %v3126 = vunpack.c.l.b16 %v2858
        %v3127 = vunpack.c.h.b16 %v2858
        %v3128 = vunpack.c.l.b16 %v2859
        %v3129 = vunpack.c.h.b16 %v2859
        %v3130 = vunpack.c.l.b16 %v2860
        %v3131 = vunpack.c.h.b16 %v2860
        %v3132 = vunpack.c.l.b16 %v2861
        %v3133 = vunpack.c.h.b16 %v2861
        %v3134 = vunpack.c.l.b16 %v2862
        %v3135 = vunpack.c.h.b16 %v2862
        %v3136 = vunpack.c.l.b16 %v2863
        %v3137 = vunpack.c.h.b16 %v2863
        %v3138 = vunpack.c.l.b16 %v2864
        %v3139 = vunpack.c.h.b16 %v2864
        %v3140 = vunpack.c.l.b16 %v2865
        %v3141 = vunpack.c.h.b16 %v2865
        %v3142 = vunpack.c.l.b16 %v2866
        %v3143 = vunpack.c.h.b16 %v2866
        %v3144 = vunpack.c.l.b16 %v2867
        %v3145 = vunpack.c.h.b16 %v2867
        %v3146 = vunpack.c.l.b16 %v2868
        %v3147 = vunpack.c.h.b16 %v2868
        %v3148 = vunpack.c.l.b16 %v2869
        %v3149 = vunpack.c.h.b16 %v2869
        %v3150 = vunpack.c.l.b16 %v2870
        %v3151 = vunpack.c.h.b16 %v2870
        %v3152 = vunpack.c.l.b16 %v2871
        %v3153 = vunpack.c.h.b16 %v2871
        %v3154 = vpack.c.b16 %v3124, %v3122
        %v3155 = vpack.c.b16 %v3125, %v3123
        %v3156 = vpack.c.b16 %v3128, %v3126
        %v3157 = vpack.c.b16 %v3129, %v3127
        %v3158 = vpack.c.b16 %v3132, %v3130
        %v3159 = vpack.c.b16 %v3133, %v3131
        %v3160 = vpack.c.b16 %v3136, %v3134
        %v3161 = vpack.c.b16 %v3137, %v3135
        %v3162 = vpack.c.b16 %v3140, %v3138
        %v3163 = vpack.c.b16 %v3141, %v3139
        %v3164 = vpack.c.b16 %v3144, %v3142
        %v3165 = vpack.c.b16 %v3145, %v3143
        %v3166 = vpack.c.b16 %v3148, %v3146
        %v3167 = vpack.c.b16 %v3149, %v3147
        %v3168 = vpack.c.b16 %v3152, %v3150
        %v3169 = vpack.c.b16 %v3153, %v3151
        %3186 = vmatprep.subr.bf16.mxu0 %v3155
        %3187 = vmatpush1.bf16.msra.mxu0 %v3154
        %3188 = vmatprep.subr.bf16.mxu0 %v3157
        %3189 = vmatpush1.bf16.msra.mxu0 %v3156
        %3190 = vmatprep.subr.bf16.mxu0 %v3159
        %3191 = vmatpush1.bf16.msra.mxu0 %v3158
        %3192 = vmatprep.subr.bf16.mxu0 %v3161
        %3193 = vmatpush1.bf16.msra.mxu0 %v3160
        %3194 = vmatprep.subr.bf16.mxu0 %v3163
        %3195 = vmatpush1.bf16.msra.mxu0 %v3162
        %3196 = vmatprep.subr.bf16.mxu0 %v3165
        %3197 = vmatpush1.bf16.msra.mxu0 %v3164
        %3198 = vmatprep.subr.bf16.mxu0 %v3167
        %3199 = vmatpush1.bf16.msra.mxu0 %v3166
        %3200 = vmatprep.subr.bf16.mxu0 %v3169
        %3201 = vmatpush1.bf16.msra.mxu0 %v3168
        %3202 = vmatprep.subr.bf16.mxu0 0
        %3203 = vmatpush1.bf16.msra.mxu0 0
        %3204 = vmatprep.subr.bf16.mxu0 0
        %3205 = vmatpush1.bf16.msra.mxu0 0
        %3206 = vmatprep.subr.bf16.mxu0 0
        %3207 = vmatpush1.bf16.msra.mxu0 0
        %3208 = vmatprep.subr.bf16.mxu0 0
        %3209 = vmatpush1.bf16.msra.mxu0 0
        %3210 = vmatprep.subr.bf16.mxu0 0
        %3211 = vmatpush1.bf16.msra.mxu0 0
        %3212 = vmatprep.subr.bf16.mxu0 0
        %3213 = vmatpush1.bf16.msra.mxu0 0
        %3214 = vmatprep.subr.bf16.mxu0 0
        %3215 = vmatpush1.bf16.msra.mxu0 0
        %3216 = vmatprep.subr.bf16.mxu0 0
        %3217 = vmatpush1.bf16.msra.mxu0 0
        %3218 = vmatprep.mubr.bf16.mxu0 0
        %3219 = vmatmul.mubr.bf16.gmra.mrb[0].mxu0 %v2848
        %v3220 = vpop.f32.mrb[0].mxu0
        %v3221 = vadd.f32 %v3028, %v3220
        %v3222 = vpop.f32.mrb[0].mxu0
        %v3223 = vadd.f32 %v3030, %v3222
        %v3224 = vpop.f32.mrb[0].mxu0
        %v3225 = vadd.f32 %v3032, %v3224
        %v3226 = vpop.f32.mrb[0].mxu0
        %v3227 = vadd.f32 %v3034, %v3226
        %3228 = vmatprep.mubr.bf16.mxu0 0
        %3229 = vmatmul.mubr.bf16.gmra.mrb[0].mxu0 %v2849
        %v3230 = vpop.f32.mrb[0].mxu0
        %v3231 = vadd.f32 %v3038, %v3230
        %v3232 = vpop.f32.mrb[0].mxu0
        %v3233 = vadd.f32 %v3040, %v3232
        %v3234 = vpop.f32.mrb[0].mxu0
        %v3235 = vadd.f32 %v3042, %v3234
        %v3236 = vpop.f32.mrb[0].mxu0
        %v3237 = vadd.f32 %v3044, %v3236
        %3238 = vmatprep.mubr.bf16.mxu0 0
        %3239 = vmatmul.mubr.bf16.gmra.mrb[0].mxu0 %v2850
        %v3240 = vpop.f32.mrb[0].mxu0
        %v3241 = vadd.f32 %v3048, %v3240
        %v3242 = vpop.f32.mrb[0].mxu0
        %v3243 = vadd.f32 %v3050, %v3242
        %v3244 = vpop.f32.mrb[0].mxu0
        %v3245 = vadd.f32 %v3052, %v3244
        %v3246 = vpop.f32.mrb[0].mxu0
        %v3247 = vadd.f32 %v3054, %v3246
        %3248 = vmatprep.mubr.bf16.mxu0 0
        %3249 = vmatmul.mubr.bf16.gmra.mrb[0].mxu0 %v2851
        %v3250 = vpop.f32.mrb[0].mxu0
        %v3251 = vadd.f32 %v3058, %v3250
        %v3252 = vpop.f32.mrb[0].mxu0
        %v3253 = vadd.f32 %v3060, %v3252
        %v3254 = vpop.f32.mrb[0].mxu0
        %v3255 = vadd.f32 %v3062, %v3254
        %v3256 = vpop.f32.mrb[0].mxu0
        %v3257 = vadd.f32 %v3064, %v3256
        %3258 = vmatprep.mubr.bf16.mxu0 0
        %3259 = vmatmul.mubr.bf16.gmra.mrb[0].mxu0 %v2852
        %v3260 = vpop.f32.mrb[0].mxu0
        %v3261 = vadd.f32 %v3068, %v3260
        %v3262 = vpop.f32.mrb[0].mxu0
        %v3263 = vadd.f32 %v3070, %v3262
        %v3264 = vpop.f32.mrb[0].mxu0
        %v3265 = vadd.f32 %v3072, %v3264
        %v3266 = vpop.f32.mrb[0].mxu0
        %v3267 = vadd.f32 %v3074, %v3266
        %3268 = vmatprep.mubr.bf16.mxu0 0
        %3269 = vmatmul.mubr.bf16.gmra.mrb[0].mxu0 %v2853
        %v3270 = vpop.f32.mrb[0].mxu0
        %v3271 = vadd.f32 %v3078, %v3270
        %v3272 = vpop.f32.mrb[0].mxu0
        %v3273 = vadd.f32 %v3080, %v3272
        %v3274 = vpop.f32.mrb[0].mxu0
        %v3275 = vadd.f32 %v3082, %v3274
        %v3276 = vpop.f32.mrb[0].mxu0
        %v3277 = vadd.f32 %v3084, %v3276
        %3278 = vmatprep.mubr.bf16.mxu0 0
        %3279 = vmatmul.mubr.bf16.gmra.mrb[0].mxu0 %v2854
        %v3280 = vpop.f32.mrb[0].mxu0
        %v3281 = vadd.f32 %v3088, %v3280
        %v3282 = vpop.f32.mrb[0].mxu0
        %v3283 = vadd.f32 %v3090, %v3282
        %v3284 = vpop.f32.mrb[0].mxu0
        %v3285 = vadd.f32 %v3092, %v3284
        %v3286 = vpop.f32.mrb[0].mxu0
        %v3287 = vadd.f32 %v3094, %v3286
        %3288 = vmatprep.mubr.bf16.mxu0 0
        %3289 = vmatmul.mubr.bf16.gmra.mrb[0].mxu0 %v2855
        %v3290 = vpop.f32.mrb[0].mxu0
        %v3291 = vadd.f32 %v3098, %v3290
        %v3292 = vpop.f32.mrb[0].mxu0
        %v3293 = vadd.f32 %v3100, %v3292
        %v3294 = vpop.f32.mrb[0].mxu0
        %v3295 = vadd.f32 %v3102, %v3294
        %v3296 = vpop.f32.mrb[0].mxu0
        %v3297 = vadd.f32 %v3104, %v3296
        %3298 = vdwg.mxu0
        %v3299 = vld [vmem:[#allocation2 + $0x2] sm:$0xff]
        %v3300 = vld [vmem:[#allocation2 + $0xa] sm:$0xff]
        %v3301 = vld [vmem:[#allocation2 + $0x12] sm:$0xff]
        %v3302 = vld [vmem:[#allocation2 + $0x1a] sm:$0xff]
        %v3303 = vld [vmem:[#allocation2 + $0x22] sm:$0xff]
        %v3304 = vld [vmem:[#allocation2 + $0x2a] sm:$0xff]
        %v3305 = vld [vmem:[#allocation2 + $0x32] sm:$0xff]
        %v3306 = vld [vmem:[#allocation2 + $0x3a] sm:$0xff]
        %v3307 = vld [vmem:[#allocation2 + $0x42] sm:$0xff]
        %v3308 = vld [vmem:[#allocation2 + $0x4a] sm:$0xff]
        %v3309 = vld [vmem:[#allocation2 + $0x52] sm:$0xff]
        %v3310 = vld [vmem:[#allocation2 + $0x5a] sm:$0xff]
        %v3311 = vld [vmem:[#allocation2 + $0x62] sm:$0xff]
        %v3312 = vld [vmem:[#allocation2 + $0x6a] sm:$0xff]
        %v3313 = vld [vmem:[#allocation2 + $0x72] sm:$0xff]
        %v3314 = vld [vmem:[#allocation2 + $0x7a] sm:$0xff]
        %v3315 = vpack.c.bf16 %v3300, %v3299
        %v3316 = vpack.c.bf16 %v3302, %v3301
        %v3317 = vpack.c.bf16 %v3304, %v3303
        %v3318 = vpack.c.bf16 %v3306, %v3305
        %v3319 = vpack.c.bf16 %v3308, %v3307
        %v3320 = vpack.c.bf16 %v3310, %v3309
        %v3321 = vpack.c.bf16 %v3312, %v3311
        %v3322 = vpack.c.bf16 %v3314, %v3313
        %s3323 = scalar_lea.vmem %s7, 256
        %v3324 = vld [vmem:[%s3323] sm:$0xff]
        %v3325 = vld [vmem:[%s3323 + $0x8] sm:$0xff]
        %v3326 = vld [vmem:[%s3323 + $0x10] sm:$0xff]
        %v3327 = vld [vmem:[%s3323 + $0x18] sm:$0xff]
        %v3328 = vld [vmem:[%s3323 + $0x20] sm:$0xff]
        %v3329 = vld [vmem:[%s3323 + $0x28] sm:$0xff]
        %v3330 = vld [vmem:[%s3323 + $0x30] sm:$0xff]
        %v3331 = vld [vmem:[%s3323 + $0x38] sm:$0xff]
        %v3332 = vld [vmem:[%s3323 + $0x40] sm:$0xff]
        %v3333 = vld [vmem:[%s3323 + $0x48] sm:$0xff]
        %v3334 = vld [vmem:[%s3323 + $0x50] sm:$0xff]
        %v3335 = vld [vmem:[%s3323 + $0x58] sm:$0xff]
        %v3336 = vld [vmem:[%s3323 + $0x60] sm:$0xff]
        %v3337 = vld [vmem:[%s3323 + $0x68] sm:$0xff]
        %v3338 = vld [vmem:[%s3323 + $0x70] sm:$0xff]
        %v3339 = vld [vmem:[%s3323 + $0x78] sm:$0xff]
        %v3356 = vunpack.c.l.b16 %v3324
        %v3357 = vunpack.c.h.b16 %v3324
        %v3358 = vunpack.c.l.b16 %v3325
        %v3359 = vunpack.c.h.b16 %v3325
        %v3360 = vunpack.c.l.b16 %v3326
        %v3361 = vunpack.c.h.b16 %v3326
        %v3362 = vunpack.c.l.b16 %v3327
        %v3363 = vunpack.c.h.b16 %v3327
        %v3364 = vunpack.c.l.b16 %v3328
        %v3365 = vunpack.c.h.b16 %v3328
        %v3366 = vunpack.c.l.b16 %v3329
        %v3367 = vunpack.c.h.b16 %v3329
        %v3368 = vunpack.c.l.b16 %v3330
        %v3369 = vunpack.c.h.b16 %v3330
        %v3370 = vunpack.c.l.b16 %v3331
        %v3371 = vunpack.c.h.b16 %v3331
        %v3372 = vunpack.c.l.b16 %v3332
        %v3373 = vunpack.c.h.b16 %v3332
        %v3374 = vunpack.c.l.b16 %v3333
        %v3375 = vunpack.c.h.b16 %v3333
        %v3376 = vunpack.c.l.b16 %v3334
        %v3377 = vunpack.c.h.b16 %v3334
        %v3378 = vunpack.c.l.b16 %v3335
        %v3379 = vunpack.c.h.b16 %v3335
        %v3380 = vunpack.c.l.b16 %v3336
        %v3381 = vunpack.c.h.b16 %v3336
        %v3382 = vunpack.c.l.b16 %v3337
        %v3383 = vunpack.c.h.b16 %v3337
        %v3384 = vunpack.c.l.b16 %v3338
        %v3385 = vunpack.c.h.b16 %v3338
        %v3386 = vunpack.c.l.b16 %v3339
        %v3387 = vunpack.c.h.b16 %v3339
        %v3388 = vpack.c.b16 %v3358, %v3356
        %v3389 = vpack.c.b16 %v3359, %v3357
        %v3390 = vpack.c.b16 %v3362, %v3360
        %v3391 = vpack.c.b16 %v3363, %v3361
        %v3392 = vpack.c.b16 %v3366, %v3364
        %v3393 = vpack.c.b16 %v3367, %v3365
        %v3394 = vpack.c.b16 %v3370, %v3368
        %v3395 = vpack.c.b16 %v3371, %v3369
        %v3396 = vpack.c.b16 %v3374, %v3372
        %v3397 = vpack.c.b16 %v3375, %v3373
        %v3398 = vpack.c.b16 %v3378, %v3376
        %v3399 = vpack.c.b16 %v3379, %v3377
        %v3400 = vpack.c.b16 %v3382, %v3380
        %v3401 = vpack.c.b16 %v3383, %v3381
        %v3402 = vpack.c.b16 %v3386, %v3384
        %v3403 = vpack.c.b16 %v3387, %v3385
        %3420 = vmatprep.subr.bf16.mxu0 %v3389
        %3421 = vmatpush1.bf16.msra.mxu0 %v3388
        %3422 = vmatprep.subr.bf16.mxu0 %v3391
        %3423 = vmatpush1.bf16.msra.mxu0 %v3390
        %3424 = vmatprep.subr.bf16.mxu0 %v3393
        %3425 = vmatpush1.bf16.msra.mxu0 %v3392
        %3426 = vmatprep.subr.bf16.mxu0 %v3395
        %3427 = vmatpush1.bf16.msra.mxu0 %v3394
        %3428 = vmatprep.subr.bf16.mxu0 %v3397
        %3429 = vmatpush1.bf16.msra.mxu0 %v3396
        %3430 = vmatprep.subr.bf16.mxu0 %v3399
        %3431 = vmatpush1.bf16.msra.mxu0 %v3398
        %3432 = vmatprep.subr.bf16.mxu0 %v3401
        %3433 = vmatpush1.bf16.msra.mxu0 %v3400
        %3434 = vmatprep.subr.bf16.mxu0 %v3403
        %3435 = vmatpush1.bf16.msra.mxu0 %v3402
        %3436 = vmatprep.subr.bf16.mxu0 0
        %3437 = vmatpush1.bf16.msra.mxu0 0
        %3438 = vmatprep.subr.bf16.mxu0 0
        %3439 = vmatpush1.bf16.msra.mxu0 0
        %3440 = vmatprep.subr.bf16.mxu0 0
        %3441 = vmatpush1.bf16.msra.mxu0 0
        %3442 = vmatprep.subr.bf16.mxu0 0
        %3443 = vmatpush1.bf16.msra.mxu0 0
        %3444 = vmatprep.subr.bf16.mxu0 0
        %3445 = vmatpush1.bf16.msra.mxu0 0
        %3446 = vmatprep.subr.bf16.mxu0 0
        %3447 = vmatpush1.bf16.msra.mxu0 0
        %3448 = vmatprep.subr.bf16.mxu0 0
        %3449 = vmatpush1.bf16.msra.mxu0 0
        %3450 = vmatprep.subr.bf16.mxu0 0
        %3451 = vmatpush1.bf16.msra.mxu0 0
        %3452 = vmatprep.mubr.bf16.mxu0 0
        %3453 = vmatmul.mubr.bf16.gmra.mrb[0].mxu0 %v3315
        %v3454 = vpop.f32.mrb[0].mxu0
        %v3455 = vadd.f32 0.0, %v3454
        %v3456 = vpop.f32.mrb[0].mxu0
        %v3457 = vadd.f32 0.0, %v3456
        %v3458 = vpop.f32.mrb[0].mxu0
        %v3459 = vadd.f32 0.0, %v3458
        %v3460 = vpop.f32.mrb[0].mxu0
        %v3461 = vadd.f32 0.0, %v3460
        %3462 = vmatprep.mubr.bf16.mxu0 0
        %3463 = vmatmul.mubr.bf16.gmra.mrb[0].mxu0 %v3316
        %v3464 = vpop.f32.mrb[0].mxu0
        %v3465 = vadd.f32 0.0, %v3464
        %v3466 = vpop.f32.mrb[0].mxu0
        %v3467 = vadd.f32 0.0, %v3466
        %v3468 = vpop.f32.mrb[0].mxu0
        %v3469 = vadd.f32 0.0, %v3468
        %v3470 = vpop.f32.mrb[0].mxu0
        %v3471 = vadd.f32 0.0, %v3470
        %3472 = vmatprep.mubr.bf16.mxu0 0
        %3473 = vmatmul.mubr.bf16.gmra.mrb[0].mxu0 %v3317
        %v3474 = vpop.f32.mrb[0].mxu0
        %v3475 = vadd.f32 0.0, %v3474
        %v3476 = vpop.f32.mrb[0].mxu0
        %v3477 = vadd.f32 0.0, %v3476
        %v3478 = vpop.f32.mrb[0].mxu0
        %v3479 = vadd.f32 0.0, %v3478
        %v3480 = vpop.f32.mrb[0].mxu0
        %v3481 = vadd.f32 0.0, %v3480
        %3482 = vmatprep.mubr.bf16.mxu0 0
        %3483 = vmatmul.mubr.bf16.gmra.mrb[0].mxu0 %v3318
        %v3484 = vpop.f32.mrb[0].mxu0
        %v3485 = vadd.f32 0.0, %v3484
        %v3486 = vpop.f32.mrb[0].mxu0
        %v3487 = vadd.f32 0.0, %v3486
        %v3488 = vpop.f32.mrb[0].mxu0
        %v3489 = vadd.f32 0.0, %v3488
        %v3490 = vpop.f32.mrb[0].mxu0
        %v3491 = vadd.f32 0.0, %v3490
        %3492 = vmatprep.mubr.bf16.mxu0 0
        %3493 = vmatmul.mubr.bf16.gmra.mrb[0].mxu0 %v3319
        %v3494 = vpop.f32.mrb[0].mxu0
        %v3495 = vadd.f32 0.0, %v3494
        %v3496 = vpop.f32.mrb[0].mxu0
        %v3497 = vadd.f32 0.0, %v3496
        %v3498 = vpop.f32.mrb[0].mxu0
        %v3499 = vadd.f32 0.0, %v3498
        %v3500 = vpop.f32.mrb[0].mxu0
        %v3501 = vadd.f32 0.0, %v3500
        %3502 = vmatprep.mubr.bf16.mxu0 0
        %3503 = vmatmul.mubr.bf16.gmra.mrb[0].mxu0 %v3320
        %v3504 = vpop.f32.mrb[0].mxu0
        %v3505 = vadd.f32 0.0, %v3504
        %v3506 = vpop.f32.mrb[0].mxu0
        %v3507 = vadd.f32 0.0, %v3506
        %v3508 = vpop.f32.mrb[0].mxu0
        %v3509 = vadd.f32 0.0, %v3508
        %v3510 = vpop.f32.mrb[0].mxu0
        %v3511 = vadd.f32 0.0, %v3510
        %3512 = vmatprep.mubr.bf16.mxu0 0
        %3513 = vmatmul.mubr.bf16.gmra.mrb[0].mxu0 %v3321
        %v3514 = vpop.f32.mrb[0].mxu0
        %v3515 = vadd.f32 0.0, %v3514
        %v3516 = vpop.f32.mrb[0].mxu0
        %v3517 = vadd.f32 0.0, %v3516
        %v3518 = vpop.f32.mrb[0].mxu0
        %v3519 = vadd.f32 0.0, %v3518
        %v3520 = vpop.f32.mrb[0].mxu0
        %v3521 = vadd.f32 0.0, %v3520
        %3522 = vmatprep.mubr.bf16.mxu0 0
        %3523 = vmatmul.mubr.bf16.gmra.mrb[0].mxu0 %v3322
        %v3524 = vpop.f32.mrb[0].mxu0
        %v3525 = vadd.f32 0.0, %v3524
        %v3526 = vpop.f32.mrb[0].mxu0
        %v3527 = vadd.f32 0.0, %v3526
        %v3528 = vpop.f32.mrb[0].mxu0
        %v3529 = vadd.f32 0.0, %v3528
        %v3530 = vpop.f32.mrb[0].mxu0
        %v3531 = vadd.f32 0.0, %v3530
        %3532 = vdwg.mxu0
        %v3533 = vadd.f32 %v3221, %v3455
        %v3534 = vadd.f32 %v3223, %v3457
        %v3535 = vadd.f32 %v3225, %v3459
        %v3536 = vadd.f32 %v3227, %v3461
        %v3537 = vadd.f32 %v3231, %v3465
        %v3538 = vadd.f32 %v3233, %v3467
        %v3539 = vadd.f32 %v3235, %v3469
        %v3540 = vadd.f32 %v3237, %v3471
        %v3541 = vadd.f32 %v3241, %v3475
        %v3542 = vadd.f32 %v3243, %v3477
        %v3543 = vadd.f32 %v3245, %v3479
        %v3544 = vadd.f32 %v3247, %v3481
        %v3545 = vadd.f32 %v3251, %v3485
        %v3546 = vadd.f32 %v3253, %v3487
        %v3547 = vadd.f32 %v3255, %v3489
        %v3548 = vadd.f32 %v3257, %v3491
        %v3549 = vadd.f32 %v3261, %v3495
        %v3550 = vadd.f32 %v3263, %v3497
        %v3551 = vadd.f32 %v3265, %v3499
        %v3552 = vadd.f32 %v3267, %v3501
        %v3553 = vadd.f32 %v3271, %v3505
        %v3554 = vadd.f32 %v3273, %v3507
        %v3555 = vadd.f32 %v3275, %v3509
        %v3556 = vadd.f32 %v3277, %v3511
        %v3557 = vadd.f32 %v3281, %v3515
        %v3558 = vadd.f32 %v3283, %v3517
        %v3559 = vadd.f32 %v3285, %v3519
        %v3560 = vadd.f32 %v3287, %v3521
        %v3561 = vadd.f32 %v3291, %v3525
        %v3562 = vadd.f32 %v3293, %v3527
        %v3563 = vadd.f32 %v3295, %v3529
        %v3564 = vadd.f32 %v3297, %v3531
        %v3565 = vld [vmem:[%s8] sm:$0x3]
        %v3567 = vlaneseq
        %v3568 = vshrl.u32 %v3567, 7
        %v3569 = vsub.s32 0, %v3568
        %v3570 = vrot.slane %v3565, %v3569
        %v3571 = vlaneseq
        %v3572 = vshrl.u32 %v3571, 7
        %v3573 = vsub.s32 1, %v3572
        %v3574 = vrot.slane %v3565, %v3573
        %v3577 = vadd.f32 %v3533, %v3570
        %v3578 = vadd.f32 %v3534, %v3574
        %v3579 = vadd.f32 %v3535, %v3570
        %v3580 = vadd.f32 %v3536, %v3574
        %v3581 = vadd.f32 %v3537, %v3570
        %v3582 = vadd.f32 %v3538, %v3574
        %v3583 = vadd.f32 %v3539, %v3570
        %v3584 = vadd.f32 %v3540, %v3574
        %v3585 = vadd.f32 %v3541, %v3570
        %v3586 = vadd.f32 %v3542, %v3574
        %v3587 = vadd.f32 %v3543, %v3570
        %v3588 = vadd.f32 %v3544, %v3574
        %v3589 = vadd.f32 %v3545, %v3570
        %v3590 = vadd.f32 %v3546, %v3574
        %v3591 = vadd.f32 %v3547, %v3570
        %v3592 = vadd.f32 %v3548, %v3574
        %v3593 = vadd.f32 %v3549, %v3570
        %v3594 = vadd.f32 %v3550, %v3574
        %v3595 = vadd.f32 %v3551, %v3570
        %v3596 = vadd.f32 %v3552, %v3574
        %v3597 = vadd.f32 %v3553, %v3570
        %v3598 = vadd.f32 %v3554, %v3574
        %v3599 = vadd.f32 %v3555, %v3570
        %v3600 = vadd.f32 %v3556, %v3574
        %v3601 = vadd.f32 %v3557, %v3570
        %v3602 = vadd.f32 %v3558, %v3574
        %v3603 = vadd.f32 %v3559, %v3570
        %v3604 = vadd.f32 %v3560, %v3574
        %v3605 = vadd.f32 %v3561, %v3570
        %v3606 = vadd.f32 %v3562, %v3574
        %v3607 = vadd.f32 %v3563, %v3570
        %v3608 = vadd.f32 %v3564, %v3574
        %v3609 = vmax.f32 %v3577, 0.0
        %v3610 = vmax.f32 %v3578, 0.0
        %v3611 = vmax.f32 %v3579, 0.0
        %v3612 = vmax.f32 %v3580, 0.0
        %v3613 = vmax.f32 %v3581, 0.0
        %v3614 = vmax.f32 %v3582, 0.0
        %v3615 = vmax.f32 %v3583, 0.0
        %v3616 = vmax.f32 %v3584, 0.0
        %v3617 = vmax.f32 %v3585, 0.0
        %v3618 = vmax.f32 %v3586, 0.0
        %v3619 = vmax.f32 %v3587, 0.0
        %v3620 = vmax.f32 %v3588, 0.0
        %v3621 = vmax.f32 %v3589, 0.0
        %v3622 = vmax.f32 %v3590, 0.0
        %v3623 = vmax.f32 %v3591, 0.0
        %v3624 = vmax.f32 %v3592, 0.0
        %v3625 = vmax.f32 %v3593, 0.0
        %v3626 = vmax.f32 %v3594, 0.0
        %v3627 = vmax.f32 %v3595, 0.0
        %v3628 = vmax.f32 %v3596, 0.0
        %v3629 = vmax.f32 %v3597, 0.0
        %v3630 = vmax.f32 %v3598, 0.0
        %v3631 = vmax.f32 %v3599, 0.0
        %v3632 = vmax.f32 %v3600, 0.0
        %v3633 = vmax.f32 %v3601, 0.0
        %v3634 = vmax.f32 %v3602, 0.0
        %v3635 = vmax.f32 %v3603, 0.0
        %v3636 = vmax.f32 %v3604, 0.0
        %v3637 = vmax.f32 %v3605, 0.0
        %v3638 = vmax.f32 %v3606, 0.0
        %v3639 = vmax.f32 %v3607, 0.0
        %v3640 = vmax.f32 %v3608, 0.0
        %v3641 = vpack.c.bf16 %v3611, %v3609
        %v3642 = vpack.c.bf16 %v3612, %v3610
        %v3643 = vpack.c.bf16 %v3615, %v3613
        %v3644 = vpack.c.bf16 %v3616, %v3614
        %v3645 = vpack.c.bf16 %v3619, %v3617
        %v3646 = vpack.c.bf16 %v3620, %v3618
        %v3647 = vpack.c.bf16 %v3623, %v3621
        %v3648 = vpack.c.bf16 %v3624, %v3622
        %v3649 = vpack.c.bf16 %v3627, %v3625
        %v3650 = vpack.c.bf16 %v3628, %v3626
        %v3651 = vpack.c.bf16 %v3631, %v3629
        %v3652 = vpack.c.bf16 %v3632, %v3630
        %v3653 = vpack.c.bf16 %v3635, %v3633
        %v3654 = vpack.c.bf16 %v3636, %v3634
        %v3655 = vpack.c.bf16 %v3639, %v3637
        %v3656 = vpack.c.bf16 %v3640, %v3638
        %v3657 = vld [vmem:[%s9] sm:$0xf]
        %v3658 = vld [vmem:[%s9 + $0x4] sm:$0xf]
        %v3659 = vld [vmem:[%s9 + $0x8] sm:$0xf]
        %v3660 = vld [vmem:[%s9 + $0xc] sm:$0xf]
        %v3661 = vld [vmem:[%s9 + $0x10] sm:$0xf]
        %v3662 = vld [vmem:[%s9 + $0x14] sm:$0xf]
        %v3663 = vld [vmem:[%s9 + $0x18] sm:$0xf]
        %v3664 = vld [vmem:[%s9 + $0x1c] sm:$0xf]
        %v3665 = vld [vmem:[%s9 + $0x20] sm:$0xf]
        %v3666 = vld [vmem:[%s9 + $0x24] sm:$0xf]
        %v3667 = vld [vmem:[%s9 + $0x28] sm:$0xf]
        %v3668 = vld [vmem:[%s9 + $0x2c] sm:$0xf]
        %v3669 = vld [vmem:[%s9 + $0x30] sm:$0xf]
        %v3670 = vld [vmem:[%s9 + $0x34] sm:$0xf]
        %v3671 = vld [vmem:[%s9 + $0x38] sm:$0xf]
        %v3672 = vld [vmem:[%s9 + $0x3c] sm:$0xf]
        %v3673 = vld [vmem:[%s9 + $0x40] sm:$0xf]
        %v3674 = vld [vmem:[%s9 + $0x44] sm:$0xf]
        %v3675 = vld [vmem:[%s9 + $0x48] sm:$0xf]
        %v3676 = vld [vmem:[%s9 + $0x4c] sm:$0xf]
        %v3677 = vld [vmem:[%s9 + $0x50] sm:$0xf]
        %v3678 = vld [vmem:[%s9 + $0x54] sm:$0xf]
        %v3679 = vld [vmem:[%s9 + $0x58] sm:$0xf]
        %v3680 = vld [vmem:[%s9 + $0x5c] sm:$0xf]
        %v3681 = vld [vmem:[%s9 + $0x60] sm:$0xf]
        %v3682 = vld [vmem:[%s9 + $0x64] sm:$0xf]
        %v3683 = vld [vmem:[%s9 + $0x68] sm:$0xf]
        %v3684 = vld [vmem:[%s9 + $0x6c] sm:$0xf]
        %v3713 = vunpack.c.l.b16 %v3657
        %v3714 = vunpack.c.l.b16 %v3658
        %v3715 = vunpack.c.l.b16 %v3659
        %v3716 = vunpack.c.l.b16 %v3660
        %v3717 = vunpack.c.l.b16 %v3661
        %v3718 = vunpack.c.l.b16 %v3662
        %v3719 = vunpack.c.l.b16 %v3663
        %v3720 = vunpack.c.l.b16 %v3664
        %v3721 = vunpack.c.l.b16 %v3665
        %v3722 = vunpack.c.l.b16 %v3666
        %v3723 = vunpack.c.l.b16 %v3667
        %v3724 = vunpack.c.l.b16 %v3668
        %v3725 = vunpack.c.l.b16 %v3669
        %v3726 = vunpack.c.l.b16 %v3670
        %v3727 = vunpack.c.l.b16 %v3671
        %v3728 = vunpack.c.l.b16 %v3672
        %v3729 = vunpack.c.l.b16 %v3673
        %v3730 = vunpack.c.l.b16 %v3674
        %v3731 = vunpack.c.l.b16 %v3675
        %v3732 = vunpack.c.l.b16 %v3676
        %v3733 = vunpack.c.l.b16 %v3677
        %v3734 = vunpack.c.l.b16 %v3678
        %v3735 = vunpack.c.l.b16 %v3679
        %v3736 = vunpack.c.l.b16 %v3680
        %v3737 = vunpack.c.l.b16 %v3681
        %v3738 = vunpack.c.l.b16 %v3682
        %v3739 = vunpack.c.l.b16 %v3683
        %v3740 = vunpack.c.l.b16 %v3684
        %v3741 = vpack.c.b16 %v3714, %v3713
        %v3742 = vpack.c.b16 %v3716, %v3715
        %v3743 = vpack.c.b16 %v3718, %v3717
        %v3744 = vpack.c.b16 %v3720, %v3719
        %v3745 = vpack.c.b16 %v3722, %v3721
        %v3746 = vpack.c.b16 %v3724, %v3723
        %v3747 = vpack.c.b16 %v3726, %v3725
        %v3748 = vpack.c.b16 %v3728, %v3727
        %v3749 = vpack.c.b16 %v3730, %v3729
        %v3750 = vpack.c.b16 %v3732, %v3731
        %v3751 = vpack.c.b16 %v3734, %v3733
        %v3752 = vpack.c.b16 %v3736, %v3735
        %v3753 = vpack.c.b16 %v3738, %v3737
        %v3754 = vpack.c.b16 %v3740, %v3739
        %v3770 = vsel %vm1882, %v3642, 0
        %v3773 = vsel %vm1882, %v3644, 0
        %v3776 = vsel %vm1882, %v3646, 0
        %v3779 = vsel %vm1882, %v3648, 0
        %v3782 = vsel %vm1882, %v3650, 0
        %v3785 = vsel %vm1882, %v3652, 0
        %v3788 = vsel %vm1882, %v3654, 0
        %v3791 = vsel %vm1882, %v3656, 0
        %3793 = vmatprep.subr.bf16.mxu0 0
        %3794 = vmatpush1.bf16.msra.mxu0 %v3741
        %3795 = vmatprep.subr.bf16.mxu0 0
        %3796 = vmatpush1.bf16.msra.mxu0 %v3742
        %3797 = vmatprep.subr.bf16.mxu0 0
        %3798 = vmatpush1.bf16.msra.mxu0 %v3743
        %3799 = vmatprep.subr.bf16.mxu0 0
        %3800 = vmatpush1.bf16.msra.mxu0 %v3744
        %3801 = vmatprep.subr.bf16.mxu0 0
        %3802 = vmatpush1.bf16.msra.mxu0 %v3745
        %3803 = vmatprep.subr.bf16.mxu0 0
        %3804 = vmatpush1.bf16.msra.mxu0 %v3746
        %3805 = vmatprep.subr.bf16.mxu0 0
        %3806 = vmatpush1.bf16.msra.mxu0 %v3747
        %3807 = vmatprep.subr.bf16.mxu0 0
        %3808 = vmatpush1.bf16.msra.mxu0 %v3748
        %3809 = vmatprep.subr.bf16.mxu0 0
        %3810 = vmatpush1.bf16.msra.mxu0 %v3749
        %3811 = vmatprep.subr.bf16.mxu0 0
        %3812 = vmatpush1.bf16.msra.mxu0 %v3750
        %3813 = vmatprep.subr.bf16.mxu0 0
        %3814 = vmatpush1.bf16.msra.mxu0 %v3751
        %3815 = vmatprep.subr.bf16.mxu0 0
        %3816 = vmatpush1.bf16.msra.mxu0 %v3752
        %3817 = vmatprep.subr.bf16.mxu0 0
        %3818 = vmatpush1.bf16.msra.mxu0 %v3753
        %3819 = vmatprep.subr.bf16.mxu0 0
        %3820 = vmatpush1.bf16.msra.mxu0 %v3754
        %3821 = vmatprep.subr.bf16.mxu0 0
        %3822 = vmatpush1.bf16.msra.mxu0 0
        %3823 = vmatprep.subr.bf16.mxu0 0
        %3824 = vmatpush1.bf16.msra.mxu0 0
        %3825 = vmatprep.mubr.bf16.mxu0 %v3770
        %3826 = vmatmul.mubr.bf16.gmra.mrb[0].mxu0 %v3641
        %v3827 = vpop.f32.mrb[0].mxu0
        %v3828 = vadd.f32 0.0, %v3827
        %v3829 = vpop.f32.mrb[0].mxu0
        %v3830 = vpop.f32.mrb[0].mxu0
        %v3831 = vadd.f32 0.0, %v3830
        %v3832 = vpop.f32.mrb[0].mxu0
        %3833 = vmatprep.mubr.bf16.mxu0 %v3773
        %3834 = vmatmul.mubr.bf16.gmra.mrb[0].mxu0 %v3643
        %v3835 = vpop.f32.mrb[0].mxu0
        %v3836 = vadd.f32 0.0, %v3835
        %v3837 = vpop.f32.mrb[0].mxu0
        %v3838 = vpop.f32.mrb[0].mxu0
        %v3839 = vadd.f32 0.0, %v3838
        %v3840 = vpop.f32.mrb[0].mxu0
        %3841 = vmatprep.mubr.bf16.mxu0 %v3776
        %3842 = vmatmul.mubr.bf16.gmra.mrb[0].mxu0 %v3645
        %v3843 = vpop.f32.mrb[0].mxu0
        %v3844 = vadd.f32 0.0, %v3843
        %v3845 = vpop.f32.mrb[0].mxu0
        %v3846 = vpop.f32.mrb[0].mxu0
        %v3847 = vadd.f32 0.0, %v3846
        %v3848 = vpop.f32.mrb[0].mxu0
        %3849 = vmatprep.mubr.bf16.mxu0 %v3779
        %3850 = vmatmul.mubr.bf16.gmra.mrb[0].mxu0 %v3647
        %v3851 = vpop.f32.mrb[0].mxu0
        %v3852 = vadd.f32 0.0, %v3851
        %v3853 = vpop.f32.mrb[0].mxu0
        %v3854 = vpop.f32.mrb[0].mxu0
        %v3855 = vadd.f32 0.0, %v3854
        %v3856 = vpop.f32.mrb[0].mxu0
        %3857 = vmatprep.mubr.bf16.mxu0 %v3782
        %3858 = vmatmul.mubr.bf16.gmra.mrb[0].mxu0 %v3649
        %v3859 = vpop.f32.mrb[0].mxu0
        %v3860 = vadd.f32 0.0, %v3859
        %v3861 = vpop.f32.mrb[0].mxu0
        %v3862 = vpop.f32.mrb[0].mxu0
        %v3863 = vadd.f32 0.0, %v3862
        %v3864 = vpop.f32.mrb[0].mxu0
        %3865 = vmatprep.mubr.bf16.mxu0 %v3785
        %3866 = vmatmul.mubr.bf16.gmra.mrb[0].mxu0 %v3651
        %v3867 = vpop.f32.mrb[0].mxu0
        %v3868 = vadd.f32 0.0, %v3867
        %v3869 = vpop.f32.mrb[0].mxu0
        %v3870 = vpop.f32.mrb[0].mxu0
        %v3871 = vadd.f32 0.0, %v3870
        %v3872 = vpop.f32.mrb[0].mxu0
        %3873 = vmatprep.mubr.bf16.mxu0 %v3788
        %3874 = vmatmul.mubr.bf16.gmra.mrb[0].mxu0 %v3653
        %v3875 = vpop.f32.mrb[0].mxu0
        %v3876 = vadd.f32 0.0, %v3875
        %v3877 = vpop.f32.mrb[0].mxu0
        %v3878 = vpop.f32.mrb[0].mxu0
        %v3879 = vadd.f32 0.0, %v3878
        %v3880 = vpop.f32.mrb[0].mxu0
        %3881 = vmatprep.mubr.bf16.mxu0 %v3791
        %3882 = vmatmul.mubr.bf16.gmra.mrb[0].mxu0 %v3655
        %v3883 = vpop.f32.mrb[0].mxu0
        %v3884 = vadd.f32 0.0, %v3883
        %v3885 = vpop.f32.mrb[0].mxu0
        %v3886 = vpop.f32.mrb[0].mxu0
        %v3887 = vadd.f32 0.0, %v3886
        %v3888 = vpop.f32.mrb[0].mxu0
        %3889 = vdwg.mxu0
        %v3890 = vld [vmem:[%s10] sm:$0xf]
        %v3891 = vld [vmem:[%s10 + $0x4] sm:$0xf]
        %v3892 = vld [vmem:[%s10 + $0x8] sm:$0xf]
        %v3893 = vld [vmem:[%s10 + $0xc] sm:$0xf]
        %v3894 = vld [vmem:[%s10 + $0x10] sm:$0xf]
        %v3895 = vld [vmem:[%s10 + $0x14] sm:$0xf]
        %v3896 = vld [vmem:[%s10 + $0x18] sm:$0xf]
        %v3897 = vld [vmem:[%s10 + $0x1c] sm:$0xf]
        %v3898 = vld [vmem:[%s10 + $0x20] sm:$0xf]
        %v3899 = vld [vmem:[%s10 + $0x24] sm:$0xf]
        %v3900 = vld [vmem:[%s10 + $0x28] sm:$0xf]
        %v3901 = vld [vmem:[%s10 + $0x2c] sm:$0xf]
        %v3902 = vld [vmem:[%s10 + $0x30] sm:$0xf]
        %v3903 = vld [vmem:[%s10 + $0x34] sm:$0xf]
        %v3904 = vld [vmem:[%s10 + $0x38] sm:$0xf]
        %v3905 = vld [vmem:[%s10 + $0x3c] sm:$0xf]
        %v3906 = vld [vmem:[%s10 + $0x40] sm:$0xf]
        %v3907 = vld [vmem:[%s10 + $0x44] sm:$0xf]
        %v3908 = vld [vmem:[%s10 + $0x48] sm:$0xf]
        %v3909 = vld [vmem:[%s10 + $0x4c] sm:$0xf]
        %v3910 = vld [vmem:[%s10 + $0x50] sm:$0xf]
        %v3911 = vld [vmem:[%s10 + $0x54] sm:$0xf]
        %v3912 = vld [vmem:[%s10 + $0x58] sm:$0xf]
        %v3913 = vld [vmem:[%s10 + $0x5c] sm:$0xf]
        %v3914 = vld [vmem:[%s10 + $0x60] sm:$0xf]
        %v3915 = vld [vmem:[%s10 + $0x64] sm:$0xf]
        %v3916 = vld [vmem:[%s10 + $0x68] sm:$0xf]
        %v3917 = vld [vmem:[%s10 + $0x6c] sm:$0xf]
        %v3946 = vunpack.c.l.b16 %v3890
        %v3947 = vunpack.c.l.b16 %v3891
        %v3948 = vunpack.c.l.b16 %v3892
        %v3949 = vunpack.c.l.b16 %v3893
        %v3950 = vunpack.c.l.b16 %v3894
        %v3951 = vunpack.c.l.b16 %v3895
        %v3952 = vunpack.c.l.b16 %v3896
        %v3953 = vunpack.c.l.b16 %v3897
        %v3954 = vunpack.c.l.b16 %v3898
        %v3955 = vunpack.c.l.b16 %v3899
        %v3956 = vunpack.c.l.b16 %v3900
        %v3957 = vunpack.c.l.b16 %v3901
        %v3958 = vunpack.c.l.b16 %v3902
        %v3959 = vunpack.c.l.b16 %v3903
        %v3960 = vunpack.c.l.b16 %v3904
        %v3961 = vunpack.c.l.b16 %v3905
        %v3962 = vunpack.c.l.b16 %v3906
        %v3963 = vunpack.c.l.b16 %v3907
        %v3964 = vunpack.c.l.b16 %v3908
        %v3965 = vunpack.c.l.b16 %v3909
        %v3966 = vunpack.c.l.b16 %v3910
        %v3967 = vunpack.c.l.b16 %v3911
        %v3968 = vunpack.c.l.b16 %v3912
        %v3969 = vunpack.c.l.b16 %v3913
        %v3970 = vunpack.c.l.b16 %v3914
        %v3971 = vunpack.c.l.b16 %v3915
        %v3972 = vunpack.c.l.b16 %v3916
        %v3973 = vunpack.c.l.b16 %v3917
        %v3974 = vpack.c.b16 %v3947, %v3946
        %v3975 = vpack.c.b16 %v3949, %v3948
        %v3976 = vpack.c.b16 %v3951, %v3950
        %v3977 = vpack.c.b16 %v3953, %v3952
        %v3978 = vpack.c.b16 %v3955, %v3954
        %v3979 = vpack.c.b16 %v3957, %v3956
        %v3980 = vpack.c.b16 %v3959, %v3958
        %v3981 = vpack.c.b16 %v3961, %v3960
        %v3982 = vpack.c.b16 %v3963, %v3962
        %v3983 = vpack.c.b16 %v3965, %v3964
        %v3984 = vpack.c.b16 %v3967, %v3966
        %v3985 = vpack.c.b16 %v3969, %v3968
        %v3986 = vpack.c.b16 %v3971, %v3970
        %v3987 = vpack.c.b16 %v3973, %v3972
        %4002 = vmatprep.subr.bf16.mxu0 0
        %4003 = vmatpush1.bf16.msra.mxu0 %v3974
        %4004 = vmatprep.subr.bf16.mxu0 0
        %4005 = vmatpush1.bf16.msra.mxu0 %v3975
        %4006 = vmatprep.subr.bf16.mxu0 0
        %4007 = vmatpush1.bf16.msra.mxu0 %v3976
        %4008 = vmatprep.subr.bf16.mxu0 0
        %4009 = vmatpush1.bf16.msra.mxu0 %v3977
        %4010 = vmatprep.subr.bf16.mxu0 0
        %4011 = vmatpush1.bf16.msra.mxu0 %v3978
        %4012 = vmatprep.subr.bf16.mxu0 0
        %4013 = vmatpush1.bf16.msra.mxu0 %v3979
        %4014 = vmatprep.subr.bf16.mxu0 0
        %4015 = vmatpush1.bf16.msra.mxu0 %v3980
        %4016 = vmatprep.subr.bf16.mxu0 0
        %4017 = vmatpush1.bf16.msra.mxu0 %v3981
        %4018 = vmatprep.subr.bf16.mxu0 0
        %4019 = vmatpush1.bf16.msra.mxu0 %v3982
        %4020 = vmatprep.subr.bf16.mxu0 0
        %4021 = vmatpush1.bf16.msra.mxu0 %v3983
        %4022 = vmatprep.subr.bf16.mxu0 0
        %4023 = vmatpush1.bf16.msra.mxu0 %v3984
        %4024 = vmatprep.subr.bf16.mxu0 0
        %4025 = vmatpush1.bf16.msra.mxu0 %v3985
        %4026 = vmatprep.subr.bf16.mxu0 0
        %4027 = vmatpush1.bf16.msra.mxu0 %v3986
        %4028 = vmatprep.subr.bf16.mxu0 0
        %4029 = vmatpush1.bf16.msra.mxu0 %v3987
        %4030 = vmatprep.subr.bf16.mxu0 0
        %4031 = vmatpush1.bf16.msra.mxu0 0
        %4032 = vmatprep.subr.bf16.mxu0 0
        %4033 = vmatpush1.bf16.msra.mxu0 0
        %4034 = vmatprep.mubr.bf16.mxu0 %v3770
        %4035 = vmatmul.mubr.bf16.gmra.mrb[0].mxu0 %v3641
        %v4036 = vpop.f32.mrb[0].mxu0
        %v4037 = vadd.f32 0.0, %v4036
        %v4038 = vpop.f32.mrb[0].mxu0
        %v4039 = vpop.f32.mrb[0].mxu0
        %v4040 = vadd.f32 0.0, %v4039
        %v4041 = vpop.f32.mrb[0].mxu0
        %4042 = vmatprep.mubr.bf16.mxu0 %v3773
        %4043 = vmatmul.mubr.bf16.gmra.mrb[0].mxu0 %v3643
        %v4044 = vpop.f32.mrb[0].mxu0
        %v4045 = vadd.f32 0.0, %v4044
        %v4046 = vpop.f32.mrb[0].mxu0
        %v4047 = vpop.f32.mrb[0].mxu0
        %v4048 = vadd.f32 0.0, %v4047
        %v4049 = vpop.f32.mrb[0].mxu0
        %4050 = vmatprep.mubr.bf16.mxu0 %v3776
        %4051 = vmatmul.mubr.bf16.gmra.mrb[0].mxu0 %v3645
        %v4052 = vpop.f32.mrb[0].mxu0
        %v4053 = vadd.f32 0.0, %v4052
        %v4054 = vpop.f32.mrb[0].mxu0
        %v4055 = vpop.f32.mrb[0].mxu0
        %v4056 = vadd.f32 0.0, %v4055
        %v4057 = vpop.f32.mrb[0].mxu0
        %4058 = vmatprep.mubr.bf16.mxu0 %v3779
        %4059 = vmatmul.mubr.bf16.gmra.mrb[0].mxu0 %v3647
        %v4060 = vpop.f32.mrb[0].mxu0
        %v4061 = vadd.f32 0.0, %v4060
        %v4062 = vpop.f32.mrb[0].mxu0
        %v4063 = vpop.f32.mrb[0].mxu0
        %v4064 = vadd.f32 0.0, %v4063
        %v4065 = vpop.f32.mrb[0].mxu0
        %4066 = vmatprep.mubr.bf16.mxu0 %v3782
        %4067 = vmatmul.mubr.bf16.gmra.mrb[0].mxu0 %v3649
        %v4068 = vpop.f32.mrb[0].mxu0
        %v4069 = vadd.f32 0.0, %v4068
        %v4070 = vpop.f32.mrb[0].mxu0
        %v4071 = vpop.f32.mrb[0].mxu0
        %v4072 = vadd.f32 0.0, %v4071
        %v4073 = vpop.f32.mrb[0].mxu0
        %4074 = vmatprep.mubr.bf16.mxu0 %v3785
        %4075 = vmatmul.mubr.bf16.gmra.mrb[0].mxu0 %v3651
        %v4076 = vpop.f32.mrb[0].mxu0
        %v4077 = vadd.f32 0.0, %v4076
        %v4078 = vpop.f32.mrb[0].mxu0
        %v4079 = vpop.f32.mrb[0].mxu0
        %v4080 = vadd.f32 0.0, %v4079
        %v4081 = vpop.f32.mrb[0].mxu0
        %4082 = vmatprep.mubr.bf16.mxu0 %v3788
        %4083 = vmatmul.mubr.bf16.gmra.mrb[0].mxu0 %v3653
        %v4084 = vpop.f32.mrb[0].mxu0
        %v4085 = vadd.f32 0.0, %v4084
        %v4086 = vpop.f32.mrb[0].mxu0
        %v4087 = vpop.f32.mrb[0].mxu0
        %v4088 = vadd.f32 0.0, %v4087
        %v4089 = vpop.f32.mrb[0].mxu0
        %4090 = vmatprep.mubr.bf16.mxu0 %v3791
        %4091 = vmatmul.mubr.bf16.gmra.mrb[0].mxu0 %v3655
        %v4092 = vpop.f32.mrb[0].mxu0
        %v4093 = vadd.f32 0.0, %v4092
        %v4094 = vpop.f32.mrb[0].mxu0
        %v4095 = vpop.f32.mrb[0].mxu0
        %v4096 = vadd.f32 0.0, %v4095
        %v4097 = vpop.f32.mrb[0].mxu0
        %4098 = vdwg.mxu0
        %v4099 = vmax.f32 %v3828, %v4037
        %v4100 = vmax.f32 %v3831, %v4040
        %v4101 = vmax.f32 %v3836, %v4045
        %v4102 = vmax.f32 %v3839, %v4048
        %v4103 = vmax.f32 %v3844, %v4053
        %v4104 = vmax.f32 %v3847, %v4056
        %v4105 = vmax.f32 %v3852, %v4061
        %v4106 = vmax.f32 %v3855, %v4064
        %v4107 = vmax.f32 %v3860, %v4069
        %v4108 = vmax.f32 %v3863, %v4072
        %v4109 = vmax.f32 %v3868, %v4077
        %v4110 = vmax.f32 %v3871, %v4080
        %v4111 = vmax.f32 %v3876, %v4085
        %v4112 = vmax.f32 %v3879, %v4088
        %v4113 = vmax.f32 %v3884, %v4093
        %v4114 = vmax.f32 %v3887, %v4096
        %v4115 = vpack.c.bf16 %v4100, %v4099
        %v4116 = vpack.c.bf16 %v4102, %v4101
        %v4117 = vpack.c.bf16 %v4104, %v4103
        %v4118 = vpack.c.bf16 %v4106, %v4105
        %v4119 = vpack.c.bf16 %v4108, %v4107
        %v4120 = vpack.c.bf16 %v4110, %v4109
        %v4121 = vpack.c.bf16 %v4112, %v4111
        %v4122 = vpack.c.bf16 %v4114, %v4113
        %v4123 = vld [vmem:[%s11] sm:$0xf]
        %v4124 = vld [vmem:[%s11 + $0x4] sm:$0xf]
        %v4125 = vld [vmem:[%s11 + $0x8] sm:$0xf]
        %v4126 = vld [vmem:[%s11 + $0xc] sm:$0xf]
        %v4127 = vld [vmem:[%s11 + $0x10] sm:$0xf]
        %v4128 = vld [vmem:[%s11 + $0x14] sm:$0xf]
        %v4129 = vld [vmem:[%s11 + $0x18] sm:$0xf]
        %v4130 = vld [vmem:[%s11 + $0x1c] sm:$0xf]
        %v4139 = vunpack.c.l.b16 %v4123
        %v4140 = vunpack.c.l.b16 %v4124
        %v4141 = vunpack.c.l.b16 %v4125
        %v4142 = vunpack.c.l.b16 %v4126
        %v4143 = vunpack.c.l.b16 %v4127
        %v4144 = vunpack.c.l.b16 %v4128
        %v4145 = vunpack.c.l.b16 %v4129
        %v4146 = vunpack.c.l.b16 %v4130
        %v4147 = vpack.c.b16 %v4140, %v4139
        %v4148 = vpack.c.b16 %v4142, %v4141
        %v4149 = vpack.c.b16 %v4144, %v4143
        %v4150 = vpack.c.b16 %v4146, %v4145
        %4155 = vmatprep.subr.bf16.mxu0 0
        %4156 = vmatpush1.bf16.msra.mxu0 %v4115
        %4157 = vmatprep.subr.bf16.mxu0 0
        %4158 = vmatpush1.bf16.msra.mxu0 %v4116
        %4159 = vmatprep.subr.bf16.mxu0 0
        %4160 = vmatpush1.bf16.msra.mxu0 %v4117
        %4161 = vmatprep.subr.bf16.mxu0 0
        %4162 = vmatpush1.bf16.msra.mxu0 %v4118
        %4163 = vmatprep.subr.bf16.mxu0 0
        %4164 = vmatpush1.bf16.msra.mxu0 %v4119
        %4165 = vmatprep.subr.bf16.mxu0 0
        %4166 = vmatpush1.bf16.msra.mxu0 %v4120
        %4167 = vmatprep.subr.bf16.mxu0 0
        %4168 = vmatpush1.bf16.msra.mxu0 %v4121
        %4169 = vmatprep.subr.bf16.mxu0 0
        %4170 = vmatpush1.bf16.msra.mxu0 %v4122
        %4171 = vmatprep.subr.bf16.mxu0 0
        %4172 = vmatpush1.bf16.msra.mxu0 0
        %4173 = vmatprep.subr.bf16.mxu0 0
        %4174 = vmatpush1.bf16.msra.mxu0 0
        %4175 = vmatprep.subr.bf16.mxu0 0
        %4176 = vmatpush1.bf16.msra.mxu0 0
        %4177 = vmatprep.subr.bf16.mxu0 0
        %4178 = vmatpush1.bf16.msra.mxu0 0
        %4179 = vmatprep.subr.bf16.mxu0 0
        %4180 = vmatpush1.bf16.msra.mxu0 0
        %4181 = vmatprep.subr.bf16.mxu0 0
        %4182 = vmatpush1.bf16.msra.mxu0 0
        %4183 = vmatprep.subr.bf16.mxu0 0
        %4184 = vmatpush1.bf16.msra.mxu0 0
        %4185 = vmatprep.subr.bf16.mxu0 0
        %4186 = vmatpush1.bf16.msra.mxu0 0
        %4187 = vmatprep.mubr.bf16.mxu0 0
        %4188 = vmatmul.mubr.bf16.gmra.mrb[0].mxu0 %v4147
        %v4189 = vpop.f32.mrb[0].mxu0
        %v4190 = vadd.f32 0.0, %v4189
        %v4191 = vpop.f32.mrb[0].mxu0
        %v4192 = vpop.f32.mrb[0].mxu0
        %v4193 = vadd.f32 0.0, %v4192
        %v4194 = vpop.f32.mrb[0].mxu0
        %4195 = vmatprep.mubr.bf16.mxu0 0
        %4196 = vmatmul.mubr.bf16.gmra.mrb[0].mxu0 %v4148
        %v4197 = vpop.f32.mrb[0].mxu0
        %v4198 = vadd.f32 0.0, %v4197
        %v4199 = vpop.f32.mrb[0].mxu0
        %v4200 = vpop.f32.mrb[0].mxu0
        %v4201 = vadd.f32 0.0, %v4200
        %v4202 = vpop.f32.mrb[0].mxu0
        %4203 = vmatprep.mubr.bf16.mxu0 0
        %4204 = vmatmul.mubr.bf16.gmra.mrb[0].mxu0 %v4149
        %v4205 = vpop.f32.mrb[0].mxu0
        %v4206 = vadd.f32 0.0, %v4205
        %v4207 = vpop.f32.mrb[0].mxu0
        %v4208 = vpop.f32.mrb[0].mxu0
        %v4209 = vadd.f32 0.0, %v4208
        %v4210 = vpop.f32.mrb[0].mxu0
        %4211 = vmatprep.mubr.bf16.mxu0 0
        %4212 = vmatmul.mubr.bf16.gmra.mrb[0].mxu0 %v4150
        %v4213 = vpop.f32.mrb[0].mxu0
        %v4214 = vadd.f32 0.0, %v4213
        %v4215 = vpop.f32.mrb[0].mxu0
        %v4216 = vpop.f32.mrb[0].mxu0
        %v4217 = vadd.f32 0.0, %v4216
        %v4218 = vpop.f32.mrb[0].mxu0
        %4219 = vdwg.mxu0
        %v4220 = vld [vmem:[%s12] sm:$0xf]
        %v4221 = vld [vmem:[%s12 + $0x4] sm:$0xf]
        %v4222 = vld [vmem:[%s12 + $0x8] sm:$0xf]
        %v4223 = vld [vmem:[%s12 + $0xc] sm:$0xf]
        %v4224 = vld [vmem:[%s12 + $0x10] sm:$0xf]
        %v4225 = vld [vmem:[%s12 + $0x14] sm:$0xf]
        %v4226 = vld [vmem:[%s12 + $0x18] sm:$0xf]
        %v4227 = vld [vmem:[%s12 + $0x1c] sm:$0xf]
        %v4236 = vunpack.c.l.b16 %v4220
        %v4237 = vunpack.c.l.b16 %v4221
        %v4238 = vunpack.c.l.b16 %v4222
        %v4239 = vunpack.c.l.b16 %v4223
        %v4240 = vunpack.c.l.b16 %v4224
        %v4241 = vunpack.c.l.b16 %v4225
        %v4242 = vunpack.c.l.b16 %v4226
        %v4243 = vunpack.c.l.b16 %v4227
        %v4244 = vpack.c.b16 %v4237, %v4236
        %v4245 = vpack.c.b16 %v4239, %v4238
        %v4246 = vpack.c.b16 %v4241, %v4240
        %v4247 = vpack.c.b16 %v4243, %v4242
        %4252 = vmatprep.subr.bf16.mxu0 0
        %4253 = vmatpush1.bf16.msra.mxu0 %v4115
        %4254 = vmatprep.subr.bf16.mxu0 0
        %4255 = vmatpush1.bf16.msra.mxu0 %v4116
        %4256 = vmatprep.subr.bf16.mxu0 0
        %4257 = vmatpush1.bf16.msra.mxu0 %v4117
        %4258 = vmatprep.subr.bf16.mxu0 0
        %4259 = vmatpush1.bf16.msra.mxu0 %v4118
        %4260 = vmatprep.subr.bf16.mxu0 0
        %4261 = vmatpush1.bf16.msra.mxu0 %v4119
        %4262 = vmatprep.subr.bf16.mxu0 0
        %4263 = vmatpush1.bf16.msra.mxu0 %v4120
        %4264 = vmatprep.subr.bf16.mxu0 0
        %4265 = vmatpush1.bf16.msra.mxu0 %v4121
        %4266 = vmatprep.subr.bf16.mxu0 0
        %4267 = vmatpush1.bf16.msra.mxu0 %v4122
        %4268 = vmatprep.subr.bf16.mxu0 0
        %4269 = vmatpush1.bf16.msra.mxu0 0
        %4270 = vmatprep.subr.bf16.mxu0 0
        %4271 = vmatpush1.bf16.msra.mxu0 0
        %4272 = vmatprep.subr.bf16.mxu0 0
        %4273 = vmatpush1.bf16.msra.mxu0 0
        %4274 = vmatprep.subr.bf16.mxu0 0
        %4275 = vmatpush1.bf16.msra.mxu0 0
        %4276 = vmatprep.subr.bf16.mxu0 0
        %4277 = vmatpush1.bf16.msra.mxu0 0
        %4278 = vmatprep.subr.bf16.mxu0 0
        %4279 = vmatpush1.bf16.msra.mxu0 0
        %4280 = vmatprep.subr.bf16.mxu0 0
        %4281 = vmatpush1.bf16.msra.mxu0 0
        %4282 = vmatprep.subr.bf16.mxu0 0
        %4283 = vmatpush1.bf16.msra.mxu0 0
        %4284 = vmatprep.mubr.bf16.mxu0 0
        %4285 = vmatmul.mubr.bf16.gmra.mrb[0].mxu0 %v4244
        %v4286 = vpop.f32.mrb[0].mxu0
        %v4287 = vadd.f32 0.0, %v4286
        %v4288 = vpop.f32.mrb[0].mxu0
        %v4289 = vpop.f32.mrb[0].mxu0
        %v4290 = vadd.f32 0.0, %v4289
        %v4291 = vpop.f32.mrb[0].mxu0
        %4292 = vmatprep.mubr.bf16.mxu0 0
        %4293 = vmatmul.mubr.bf16.gmra.mrb[0].mxu0 %v4245
        %v4294 = vpop.f32.mrb[0].mxu0
        %v4295 = vadd.f32 0.0, %v4294
        %v4296 = vpop.f32.mrb[0].mxu0
        %v4297 = vpop.f32.mrb[0].mxu0
        %v4298 = vadd.f32 0.0, %v4297
        %v4299 = vpop.f32.mrb[0].mxu0
        %4300 = vmatprep.mubr.bf16.mxu0 0
        %4301 = vmatmul.mubr.bf16.gmra.mrb[0].mxu0 %v4246
        %v4302 = vpop.f32.mrb[0].mxu0
        %v4303 = vadd.f32 0.0, %v4302
        %v4304 = vpop.f32.mrb[0].mxu0
        %v4305 = vpop.f32.mrb[0].mxu0
        %v4306 = vadd.f32 0.0, %v4305
        %v4307 = vpop.f32.mrb[0].mxu0
        %4308 = vmatprep.mubr.bf16.mxu0 0
        %4309 = vmatmul.mubr.bf16.gmra.mrb[0].mxu0 %v4247
        %v4310 = vpop.f32.mrb[0].mxu0
        %v4311 = vadd.f32 0.0, %v4310
        %v4312 = vpop.f32.mrb[0].mxu0
        %v4313 = vpop.f32.mrb[0].mxu0
        %v4314 = vadd.f32 0.0, %v4313
        %v4315 = vpop.f32.mrb[0].mxu0
        %4316 = vdwg.mxu0
        %v4317 = vmax.f32 %v4190, %v4287
        %v4318 = vmax.f32 %v4193, %v4290
        %v4319 = vmax.f32 %v4198, %v4295
        %v4320 = vmax.f32 %v4201, %v4298
        %v4321 = vmax.f32 %v4206, %v4303
        %v4322 = vmax.f32 %v4209, %v4306
        %v4323 = vmax.f32 %v4214, %v4311
        %v4324 = vmax.f32 %v4217, %v4314
        %v4325 = vpack.c.bf16 %v4318, %v4317
        %v4326 = vpack.c.bf16 %v4320, %v4319
        %v4327 = vpack.c.bf16 %v4322, %v4321
        %v4328 = vpack.c.bf16 %v4324, %v4323
        %v4329 = vld [vmem:[%s13] sm:$0xf]
        %v4330 = vld [vmem:[%s13 + $0x4] sm:$0xf]
        %v4331 = vld [vmem:[%s13 + $0x8] sm:$0xf]
        %v4332 = vld [vmem:[%s13 + $0xc] sm:$0xf]
        %v4333 = vld [vmem:[%s13 + $0x10] sm:$0xf]
        %v4334 = vld [vmem:[%s13 + $0x14] sm:$0xf]
        %v4335 = vld [vmem:[%s13 + $0x18] sm:$0xf]
        %v4336 = vld [vmem:[%s13 + $0x1c] sm:$0xf]
        %v4337 = vld [vmem:[%s13 + $0x20] sm:$0xf]
        %v4338 = vld [vmem:[%s13 + $0x24] sm:$0xf]
        %v4339 = vld [vmem:[%s13 + $0x28] sm:$0xf]
        %v4340 = vld [vmem:[%s13 + $0x2c] sm:$0xf]
        %v4341 = vld [vmem:[%s13 + $0x30] sm:$0xf]
        %v4342 = vld [vmem:[%s13 + $0x34] sm:$0xf]
        %v4357 = vunpack.c.l.b16 %v4329
        %v4358 = vunpack.c.l.b16 %v4330
        %v4359 = vunpack.c.l.b16 %v4331
        %v4360 = vunpack.c.l.b16 %v4332
        %v4361 = vunpack.c.l.b16 %v4333
        %v4362 = vunpack.c.l.b16 %v4334
        %v4363 = vunpack.c.l.b16 %v4335
        %v4364 = vunpack.c.l.b16 %v4336
        %v4365 = vunpack.c.l.b16 %v4337
        %v4366 = vunpack.c.l.b16 %v4338
        %v4367 = vunpack.c.l.b16 %v4339
        %v4368 = vunpack.c.l.b16 %v4340
        %v4369 = vunpack.c.l.b16 %v4341
        %v4370 = vunpack.c.l.b16 %v4342
        %v4371 = vpack.c.b16 %v4358, %v4357
        %v4372 = vpack.c.b16 %v4360, %v4359
        %v4373 = vpack.c.b16 %v4362, %v4361
        %v4374 = vpack.c.b16 %v4364, %v4363
        %v4375 = vpack.c.b16 %v4366, %v4365
        %v4376 = vpack.c.b16 %v4368, %v4367
        %v4377 = vpack.c.b16 %v4370, %v4369
        %vm4385 = vcmask 916480
        %v4387 = vsel %vm4385, %v4325, 0
        %v4390 = vsel %vm4385, %v4326, 0
        %v4393 = vsel %vm4385, %v4327, 0
        %v4396 = vsel %vm4385, %v4328, 0
        %4398 = vmatprep.subr.bf16.mxu0 0
        %4399 = vmatpush1.bf16.msra.mxu0 %v4371
        %4400 = vmatprep.subr.bf16.mxu0 0
        %4401 = vmatpush1.bf16.msra.mxu0 %v4372
        %4402 = vmatprep.subr.bf16.mxu0 0
        %4403 = vmatpush1.bf16.msra.mxu0 %v4373
        %4404 = vmatprep.subr.bf16.mxu0 0
        %4405 = vmatpush1.bf16.msra.mxu0 %v4374
        %4406 = vmatprep.subr.bf16.mxu0 0
        %4407 = vmatpush1.bf16.msra.mxu0 %v4375
        %4408 = vmatprep.subr.bf16.mxu0 0
        %4409 = vmatpush1.bf16.msra.mxu0 %v4376
        %4410 = vmatprep.subr.bf16.mxu0 0
        %4411 = vmatpush1.bf16.msra.mxu0 %v4377
        %4412 = vmatprep.subr.bf16.mxu0 0
        %4413 = vmatpush1.bf16.msra.mxu0 0
        %4414 = vmatprep.subr.bf16.mxu0 0
        %4415 = vmatpush1.bf16.msra.mxu0 0
        %4416 = vmatprep.subr.bf16.mxu0 0
        %4417 = vmatpush1.bf16.msra.mxu0 0
        %4418 = vmatprep.subr.bf16.mxu0 0
        %4419 = vmatpush1.bf16.msra.mxu0 0
        %4420 = vmatprep.subr.bf16.mxu0 0
        %4421 = vmatpush1.bf16.msra.mxu0 0
        %4422 = vmatprep.subr.bf16.mxu0 0
        %4423 = vmatpush1.bf16.msra.mxu0 0
        %4424 = vmatprep.subr.bf16.mxu0 0
        %4425 = vmatpush1.bf16.msra.mxu0 0
        %4426 = vmatprep.subr.bf16.mxu0 0
        %4427 = vmatpush1.bf16.msra.mxu0 0
        %4428 = vmatprep.subr.bf16.mxu0 0
        %4429 = vmatpush1.bf16.msra.mxu0 0
        %4430 = vmatprep.mubr.bf16.mxu0 0
        %4431 = vmatmul.mubr.bf16.gmra.mrb[0].mxu0 %v4387
        %v4432 = vpop.f32.mrb[0].mxu0
        %v4433 = vadd.f32 0.0, %v4432
        %v4434 = vpop.f32.mrb[0].mxu0
        %v4435 = vpop.f32.mrb[0].mxu0
        %v4436 = vadd.f32 0.0, %v4435
        %v4437 = vpop.f32.mrb[0].mxu0
        %4438 = vmatprep.mubr.bf16.mxu0 0
        %4439 = vmatmul.mubr.bf16.gmra.mrb[0].mxu0 %v4390
        %v4440 = vpop.f32.mrb[0].mxu0
        %v4441 = vadd.f32 0.0, %v4440
        %v4442 = vpop.f32.mrb[0].mxu0
        %v4443 = vpop.f32.mrb[0].mxu0
        %v4444 = vadd.f32 0.0, %v4443
        %v4445 = vpop.f32.mrb[0].mxu0
        %4446 = vmatprep.mubr.bf16.mxu0 0
        %4447 = vmatmul.mubr.bf16.gmra.mrb[0].mxu0 %v4393
        %v4448 = vpop.f32.mrb[0].mxu0
        %v4449 = vadd.f32 0.0, %v4448
        %v4450 = vpop.f32.mrb[0].mxu0
        %v4451 = vpop.f32.mrb[0].mxu0
        %v4452 = vadd.f32 0.0, %v4451
        %v4453 = vpop.f32.mrb[0].mxu0
        %4454 = vmatprep.mubr.bf16.mxu0 0
        %4455 = vmatmul.mubr.bf16.gmra.mrb[0].mxu0 %v4396
        %v4456 = vpop.f32.mrb[0].mxu0
        %v4457 = vadd.f32 0.0, %v4456
        %v4458 = vpop.f32.mrb[0].mxu0
        %v4459 = vpop.f32.mrb[0].mxu0
        %v4460 = vadd.f32 0.0, %v4459
        %v4461 = vpop.f32.mrb[0].mxu0
        %4462 = vdwg.mxu0
        %v4463 = vld [vmem:[%s14] sm:$0xff]
        %v4464 = vld [vmem:[%s14 + $0x8] sm:$0xff]
        %v4465 = vld [vmem:[%s14 + $0x10] sm:$0xff]
        %v4466 = vld [vmem:[%s14 + $0x18] sm:$0xff]
        %v4467 = vld [vmem:[%s14 + $0x20] sm:$0xff]
        %v4468 = vld [vmem:[%s14 + $0x28] sm:$0xff]
        %v4469 = vld [vmem:[%s14 + $0x30] sm:$0xff]
        %v4470 = vld [vmem:[%s14 + $0x38] sm:$0xff]
        %v4471 = vmul.f32 %v4433, %v4463
        %v4472 = vmul.f32 %v4436, %v4464
        %v4473 = vmul.f32 %v4441, %v4465
        %v4474 = vmul.f32 %v4444, %v4466
        %v4475 = vmul.f32 %v4449, %v4467
        %v4476 = vmul.f32 %v4452, %v4468
        %v4477 = vmul.f32 %v4457, %v4469
        %v4478 = vmul.f32 %v4460, %v4470
        %vm4479 = vcmask 572416
        %v4480 = vsel %vm4479, %v4471, 0.0
        %v4481 = vrot.slane %v4480, 4
        %v4482 = vadd.f32 %v4480, %v4481
        %v4483 = vrot.slane %v4482, 2
        %v4484 = vadd.f32 %v4482, %v4483
        %v4485 = vrot.slane %v4484, 1
        %v4486 = vadd.f32 %v4484, %v4485
        %v4487 = vsel %vm4479, %v4472, 0.0
        %v4488 = vrot.slane %v4487, 4
        %v4489 = vadd.f32 %v4487, %v4488
        %v4490 = vrot.slane %v4489, 2
        %v4491 = vadd.f32 %v4489, %v4490
        %v4492 = vrot.slane %v4491, 1
        %v4493 = vadd.f32 %v4491, %v4492
        %v4494 = vsel %vm4479, %v4473, 0.0
        %v4495 = vrot.slane %v4494, 4
        %v4496 = vadd.f32 %v4494, %v4495
        %v4497 = vrot.slane %v4496, 2
        %v4498 = vadd.f32 %v4496, %v4497
        %v4499 = vrot.slane %v4498, 1
        %v4500 = vadd.f32 %v4498, %v4499
        %v4501 = vsel %vm4479, %v4474, 0.0
        %v4502 = vrot.slane %v4501, 4
        %v4503 = vadd.f32 %v4501, %v4502
        %v4504 = vrot.slane %v4503, 2
        %v4505 = vadd.f32 %v4503, %v4504
        %v4506 = vrot.slane %v4505, 1
        %v4507 = vadd.f32 %v4505, %v4506
        %v4508 = vsel %vm4479, %v4475, 0.0
        %v4509 = vrot.slane %v4508, 4
        %v4510 = vadd.f32 %v4508, %v4509
        %v4511 = vrot.slane %v4510, 2
        %v4512 = vadd.f32 %v4510, %v4511
        %v4513 = vrot.slane %v4512, 1
        %v4514 = vadd.f32 %v4512, %v4513
        %v4515 = vsel %vm4479, %v4476, 0.0
        %v4516 = vrot.slane %v4515, 4
        %v4517 = vadd.f32 %v4515, %v4516
        %v4518 = vrot.slane %v4517, 2
        %v4519 = vadd.f32 %v4517, %v4518
        %v4520 = vrot.slane %v4519, 1
        %v4521 = vadd.f32 %v4519, %v4520
        %v4522 = vsel %vm4479, %v4477, 0.0
        %v4523 = vrot.slane %v4522, 4
        %v4524 = vadd.f32 %v4522, %v4523
        %v4525 = vrot.slane %v4524, 2
        %v4526 = vadd.f32 %v4524, %v4525
        %v4527 = vrot.slane %v4526, 1
        %v4528 = vadd.f32 %v4526, %v4527
        %v4529 = vsel %vm4479, %v4478, 0.0
        %v4530 = vrot.slane %v4529, 4
        %v4531 = vadd.f32 %v4529, %v4530
        %v4532 = vrot.slane %v4531, 2
        %v4533 = vadd.f32 %v4531, %v4532
        %v4534 = vrot.slane %v4533, 1
        %v4535 = vadd.f32 %v4533, %v4534
        %v4536 = vld [vmem:[%s15] sm:$0x1]
        %v4538 = vlaneseq
        %v4539 = vshrl.u32 %v4538, 7
        %v4540 = vsub.s32 0, %v4539
        %v4541 = vrot.slane %v4536, %v4540
        %vm4551 = vcmask 1041409
        %v4552 = vsel %vm4551, %v4493, %v4486
        %vm4553 = vcmask 1042434
        %v4554 = vsel %vm4553, %v4500, %v4552
        %vm4555 = vcmask 1043459
        %v4556 = vsel %vm4555, %v4507, %v4554
        %vm4557 = vcmask 1044484
        %v4558 = vsel %vm4557, %v4514, %v4556
        %vm4559 = vcmask 1045509
        %v4560 = vsel %vm4559, %v4521, %v4558
        %vm4561 = vcmask 1046534
        %v4562 = vsel %vm4561, %v4528, %v4560
        %vm4563 = vcmask 1047559
        %v4564 = vsel %vm4563, %v4535, %v4562
        %v4566 = vadd.f32 %v4541, %v4564
        %4567 = vrot.lane.b32.xlu0 %v4564, 118
        %v4568 = vpop.permute.xlu0 %4567
        %v4570 = vadd.f32 %v4566, %v4568
        %4571 = vrot.lane.b32.xlu0 %v4564, 108
        %v4572 = vpop.permute.xlu0 %4571
        %v4574 = vadd.f32 %v4570, %v4572
        %4575 = vrot.lane.b32.xlu0 %v4564, 98
        %v4576 = vpop.permute.xlu0 %4575
        %v4578 = vadd.f32 %v4574, %v4576
        %4579 = vrot.lane.b32.xlu0 %v4564, 88
        %v4580 = vpop.permute.xlu0 %4579
        %v4582 = vadd.f32 %v4578, %v4580
        %4583 = vrot.lane.b32.xlu0 %v4564, 78
        %v4584 = vpop.permute.xlu0 %4583
        %v4586 = vadd.f32 %v4582, %v4584
        %4587 = vrot.lane.b32.xlu0 %v4564, 68
        %v4588 = vpop.permute.xlu0 %4587
        %v4590 = vadd.f32 %v4586, %v4588
        %vm4591 = vcmask 80896
        %4592 = vst.msk [vmem:[%s514] sm:$0xff] %vm4591, %v4590
        %s4593 = sand.u32 %s379, 1
        %s4594 = scalar_lea.sflag [#allocation4], %s4593
        %s4595 = sand.u32 %s379, 1
        %s4596 = smul.addr %s4595, 8
        %s4597 = scalar_lea.vmem [#allocation3], %s4596
        // Predicated region
        $region85: #{cnn_forward.1} parent=83 // pred_check
          %p4598 = pneg %p389
        $region86: #{cnn_forward.1} parent=83 // pred_check_branch
          %4600 = sbr.rel (%p4598) target = $region88
        $region87: #{cnn_forward.1} parent=83 // pred_region
          %s4602 = ssub.s32 128, 128
          %4603 = vsyncadd %s4594, %s4602
          %s4604 = smul.addr %s30, 128
          %s4605 = scalar_lea.hbm %s16, %s4604
          %s4607 = sshll.u32 %s4597, 4
          %s4608 = int_to_ptr.vmem [resolvable:$true] %s4607
          %4610 = dma.vmem_to_hbm [thread:$0]  %s4608, 128, %s4605, %s4594
        $region88: #{cnn_forward.1} parent=83 // pred_fallthru
          _
      $region84: #{cnn_forward.1} parent=5 // pred_fallthru
        _
      %p4611 = scmp.le.s32.totalorder 2, %s25
      // Predicated region
      $region89: #{cnn_forward.1} parent=5 // pred_check
        %p4612 = pneg %p4611
      $region90: #{cnn_forward.1} parent=5 // pred_check_branch
        %4614 = sbr.rel (%p4612) target = $region92
      $region91: #{cnn_forward.1} parent=5 // pred_region
        %s4615 = ssub.s32 %s25, 2
        // Predicated region
        $region93: #{cnn_forward.1} parent=91 // pred_check
          %p4616 = pneg %p395
        $region94: #{cnn_forward.1} parent=91 // pred_check_branch
          %4618 = sbr.rel (%p4616) target = $region96
        $region95: #{cnn_forward.1} parent=91 // pred_region
          %s4619 = sand.u32 %s380, 1
          %s4620 = scalar_lea.sflag [#allocation4], %s4619
          %s4621 = sand.u32 %s380, 1
          %s4622 = smul.addr %s4621, 8
          %s4623 = scalar_lea.vmem [#allocation3], %s4622
          %4624 = dma.done %s4620, 128
        $region96: #{cnn_forward.1} parent=91 // pred_fallthru
          _
      $region92: #{cnn_forward.1} parent=5 // pred_fallthru
        _
    $region6: #{cnn_forward.1} parent=1 // loop_footer
      %s29 = sadd.s32 1, %s25
    $region7: #{cnn_forward.1} parent=1 // loop_footer_branch
      %24 = sbr.rel target = $region3
    $region8: #{cnn_forward.1} parent=1 // loop_exit
      _
    %4625 = vsyncpa [#allocation4], 1
    %s4626 = scalar_lea.sflag [#allocation4], 1
    %4627 = vsyncpa %s4626, 1

</llo_original>
